<compile_context>
chip_gen: v6e
topology: v6e:2x2x1
jax: 0.10.0
libtpu: 0.0.40
codegen_flags: <defaults>
</compile_context>

<pallas_src>
import math
import numpy as np
import jax
import jax.numpy as jnp
from jax.experimental import pallas as pl
from jax.experimental.pallas import tpu as pltpu

# ----------------------------- configuration --------------------------------
B = 2
L = 16                  # sequence length
D_MODEL = 64            # d_model
N_HEADS = 4
D_HEAD = D_MODEL // N_HEADS
D_INNER = 128           # mamba: expand * d_model
D_CONV = 4
D_STATE = 16
DT_RANK = 4             # ceil(d_model / 16)
EPS = 1e-5


def _sigmoid(x):
    # reference form (exact)
    return 1.0 / (1.0 + jnp.exp(-x))


def _sigmoid_eup(x):
    # kernel form: routes through the EUP tanh instead of an f32 VALU divide
    return 0.5 * jnp.tanh(0.5 * x) + 0.5


def _softplus(x):
    return jnp.maximum(x, 0.0) + jnp.log(1.0 + jnp.exp(-jnp.abs(x)))


def _layernorm(s, g, b):
    mu = jnp.mean(s, axis=-1, keepdims=True)
    c = s - mu
    var = jnp.mean(c * c, axis=-1, keepdims=True)
    return c * jax.lax.rsqrt(var + EPS) * g + b


# ------------------------------ fused kernel ---------------------------------
def _make_am_layer_kernel(bb):
    """bb = batch rows processed per grid step (1 on multi-TC chips, B on single-TC)."""

    def kernel(x_ref, wqkv_ref, bqkv_ref, wo_ref, bo_ref,
               ln1g_ref, ln1b_ref, ln2g_ref, ln2b_ref,
               win_ref, convw_ref, convb_ref,
               wdt_ref, dtb_ref, wbt_ref, wc_ref, a_ref, d_ref, wout_ref,
               o_ref, da_sc, dbx_sc, h_sc):
        scale = 1.0 / math.sqrt(D_HEAD)
        conv_w = convw_ref[...]                                   # (D_CONV, DI)
        a_sn = a_ref[...]                                         # (NS, DI)

        # block-diagonal selector mask for the post-scan C reduce (one MXU matmul)
        col = jax.lax.broadcasted_iota(jnp.int32, (L, L * D_STATE), 1)
        row = jax.lax.broadcasted_iota(jnp.int32, (L, L * D_STATE), 0)
        rel = col - row * D_STATE
        blk_mask = jnp.logical_and(rel >= 0, rel < D_STATE)

        for b in range(bb):
            x = x_ref[b]                                          # (L, D_MODEL)

            # ---------------- multi-head self-attention ----------------------
            qkv = jnp.dot(x, wqkv_ref[...],
                          preferred_element_type=jnp.float32) + bqkv_ref[...]   # (L, 3D)
            attn = bo_ref[...]                                    # (1, D_MODEL)
            for h in range(N_HEADS):
                qh = qkv[:, h * D_HEAD:(h + 1) * D_HEAD]
                kh = qkv[:, D_MODEL + h * D_HEAD:D_MODEL + (h + 1) * D_HEAD]
                vh = qkv[:, 2 * D_MODEL + h * D_HEAD:2 * D_MODEL + (h + 1) * D_HEAD]
                s = jax.lax.dot_general(qh, kh, (((1,), (1,)), ((), ())),
                                        preferred_element_type=jnp.float32) * scale
                m = jnp.max(s, axis=-1, keepdims=True)
                p = jnp.exp(s - m)
                p = p * pl.reciprocal(jnp.sum(p, axis=-1, keepdims=True), approx=True)
                oh = jnp.dot(p, vh, preferred_element_type=jnp.float32)          # (L, DH)
                # head concat folded into the output projection (MXU accumulate)
                attn = attn + jnp.dot(oh, wo_ref[h * D_HEAD:(h + 1) * D_HEAD, :],
                                      preferred_element_type=jnp.float32)

            # ---------------- residual + LayerNorm 1 -------------------------
            x1 = _layernorm(x + attn, ln1g_ref[...], ln1b_ref[...])   # (L, D_MODEL)

            # ---------------- Mamba block ------------------------------------
            xz = jnp.dot(x1, win_ref[...], preferred_element_type=jnp.float32)   # (L, 2*DI)
            xin = xz[:, :D_INNER]
            z = xz[:, D_INNER:]

            # causal depthwise conv1d, kept entirely in vregs (no scratch round trip)
            acc = convb_ref[...] + xin * conv_w[D_CONV - 1:D_CONV, :]
            for k in range(D_CONV - 1):
                shift = D_CONV - 1 - k
                shifted = jnp.concatenate(
                    [jnp.zeros((shift, D_INNER), jnp.float32), xin[:L - shift, :]],
                    axis=0)
                acc = acc + shifted * conv_w[k:k + 1, :]
            xc = acc * _sigmoid_eup(acc)                                    # SiLU (L, DI)

            # input-dependent SSM parameters
            dt = _softplus(jnp.dot(xc, wdt_ref[...],
                                   preferred_element_type=jnp.float32) + dtb_ref[...])  # (L, DI)
            bmT = jax.lax.dot_general(wbt_ref[...], xc, (((1,), (1,)), ((), ())),
                                      preferred_element_type=jnp.float32)       # (NS, L)
            cm = jnp.dot(xc, wc_ref[...], preferred_element_type=jnp.float32)   # (L, NS)
            dtx = dt * xc                                                        # (L, DI)

            # hoist exp() and the dt / B broadcasts OFF the serial h-chain,
            # staging all 16 steps in VMEM scratches (vld/vst slots have slack).
            for l in range(L):
                lo = l * D_STATE
                da_sc[lo:lo + D_STATE, :] = jnp.exp(dt[l:l + 1, :] * a_sn)        # (NS, DI)
                dbx_sc[lo:lo + D_STATE, :] = dtx[l:l + 1, :] * bmT[:, l:l + 1]    # (NS, DI)

            # serial selective scan: 2 VPU ops per step on the critical chain
            h_st = jnp.zeros((D_STATE, D_INNER), jnp.float32)
            for l in range(L):
                lo = l * D_STATE
                h_st = da_sc[lo:lo + D_STATE, :] * h_st + dbx_sc[lo:lo + D_STATE, :]
                h_sc[lo:lo + D_STATE, :] = h_st

            # y_l = cm[l,:] @ h_l for all l as ONE block-diagonal MXU matmul
            c_blk = jnp.where(blk_mask, jnp.concatenate([cm] * L, axis=1), 0.0)   # (L, L*NS)
            y = jnp.dot(c_blk, h_sc[...], preferred_element_type=jnp.float32)     # (L, DI)

            y = y + d_ref[...] * xc
            y = y * (z * _sigmoid_eup(z))                                   # SiLU gate
            m_out = jnp.dot(y, wout_ref[...], preferred_element_type=jnp.float32)  # (L, D)

            # ---------------- residual + LayerNorm 2 -------------------------
            o_ref[b] = _layernorm(x1 + m_out, ln2g_ref[...],
                                  ln2b_ref[...]).astype(o_ref.dtype)

    return kernel


# ------------------------------ wrapper ---------------------------------------
def _wspec(shape):
    nd = len(shape)
    return pl.BlockSpec(shape, lambda g, _nd=nd: (0,) * _nd)


def _batch_rows_per_grid_step():
    """One batch element per grid step on multi-TensorCore chips (v7x / megacore
    v4 / v5p -> parallel grid shards across cores); fold the whole batch into a
    single grid step on single-core v5e / v6e to halve per-step overhead."""
    try:
        kind = jax.devices()[0].device_kind.lower()
    except Exception:
        return 1
    single_core = any(t in kind for t in
                      ("v5e", "v5 lite", "v5lite", "v6e", "v6 lite", "v6lite"))
    return B if single_core else 1


def am_layer_forward(x, kp):
    bb = _batch_rows_per_grid_step()
    kernel = _make_am_layer_kernel(bb)
    xspec = pl.BlockSpec((bb, L, D_MODEL), lambda g: (g, 0, 0))
    return pl.pallas_call(
        kernel,
        out_shape=jax.ShapeDtypeStruct((B, L, D_MODEL), jnp.float32),
        grid=(B // bb,),
        in_specs=[xspec,
                  _wspec((D_MODEL, 3 * D_MODEL)), _wspec((1, 3 * D_MODEL)),
                  _wspec((D_MODEL, D_MODEL)), _wspec((1, D_MODEL)),
                  _wspec((1, D_MODEL)), _wspec((1, D_MODEL)),
                  _wspec((1, D_MODEL)), _wspec((1, D_MODEL)),
                  _wspec((D_MODEL, 2 * D_INNER)),
                  _wspec((D_CONV, D_INNER)), _wspec((1, D_INNER)),
                  _wspec((D_INNER, D_INNER)), _wspec((1, D_INNER)),
                  _wspec((D_STATE, D_INNER)), _wspec((D_INNER, D_STATE)),
                  _wspec((D_STATE, D_INNER)), _wspec((1, D_INNER)),
                  _wspec((D_INNER, D_MODEL))],
        out_specs=xspec,
        scratch_shapes=[pltpu.VMEM((L * D_STATE, D_INNER), jnp.float32),   # dA
                        pltpu.VMEM((L * D_STATE, D_INNER), jnp.float32),   # dB*x
                        pltpu.VMEM((L * D_STATE, D_INNER), jnp.float32)],  # H
        compiler_params=pltpu.CompilerParams(
            dimension_semantics=("parallel",)),
    )(x, kp['wqkv'], kp['bqkv'], kp['wo'], kp['bo'],
      kp['ln1_g'], kp['ln1_b'], kp['ln2_g'], kp['ln2_b'],
      kp['w_in'], kp['conv_w'], kp['conv_b'],
      kp['w_dt_full'], kp['dt_b'], kp['w_b_t'], kp['w_c'],
      kp['a_sn'], kp['d'], kp['w_out'])


# --------------------------- pure-JAX reference -------------------------------
def ref_forward(x, p):
    def attn(xx):
        q = xx @ p['wq'] + p['bq']
        k = xx @ p['wk'] + p['bk']
        v = xx @ p['wv'] + p['bv']
        qh = q.reshape(B, L, N_HEADS, D_HEAD)
        kh = k.reshape(B, L, N_HEADS, D_HEAD)
        vh = v.reshape(B, L, N_HEADS, D_HEAD)
        s = jnp.einsum('blhe,bshe->bhls', qh, kh) / math.sqrt(D_HEAD)
        a = jax.nn.softmax(s, axis=-1)
        o = jnp.einsum('bhls,bshd->blhd', a, vh).reshape(B, L, D_MODEL)
        return o @ p['wo'] + p['bo']

    def ln(xx, g, b):
        mu = xx.mean(-1, keepdims=True)
        var = ((xx - mu) ** 2).mean(-1, keepdims=True)
        return (xx - mu) * jax.lax.rsqrt(var + EPS) * g + b

    def mamba_one(xb):
        xin = xb @ p['w_in_x']
        z = xb @ p['w_in_z']
        pad = jnp.pad(xin, ((D_CONV - 1, 0), (0, 0)))
        conv = p['conv_b']
        for k in range(D_CONV):
            conv = conv + pad[k:k + L, :] * p['conv_w'][k][None, :]
        xc = conv * _sigmoid(conv)
        dt = _softplus(xc @ p['w_x_dt'] @ p['w_dt'] + p['dt_b'])      # (L, DI)
        bm = xc @ p['w_x_B']
        cm = xc @ p['w_x_C']
        A = -jnp.exp(p['A_log'])                                      # (DI, NS)

        def step(h, inp):
            dt_l, b_l, c_l, x_l = inp
            dA = jnp.exp(dt_l[:, None] * A)
            h = dA * h + (dt_l * x_l)[:, None] * b_l[None, :]
            y = (h * c_l[None, :]).sum(-1)
            return h, y

        _, ys = jax.lax.scan(step, jnp.zeros((D_INNER, D_STATE), jnp.float32),
                             (dt, bm, cm, xc))
        y = (ys + p['D'] * xc) * (z * _sigmoid(z))
        return y @ p['w_out']

    xx = x + attn(x)
    xx = ln(xx, p['ln1_g'], p['ln1_b'])
    xx = xx + jax.vmap(mamba_one)(xx)
    return ln(xx, p['ln2_g'], p['ln2_b'])


# ------------------------------- parameters -----------------------------------
def make_params(key):
    ks = list(jax.random.split(key, 24))

    def nrm(k, shape, scale=0.02):
        return (scale * jax.random.normal(k, shape)).astype(jnp.float32)

    p = {
        'wq': nrm(ks[0], (D_MODEL, D_MODEL)), 'bq': nrm(ks[1], (D_MODEL,)),
        'wk': nrm(ks[2], (D_MODEL, D_MODEL)), 'bk': nrm(ks[3], (D_MODEL,)),
        'wv': nrm(ks[4], (D_MODEL, D_MODEL)), 'bv': nrm(ks[5], (D_MODEL,)),
        'wo': nrm(ks[6], (D_MODEL, D_MODEL)), 'bo': nrm(ks[7], (D_MODEL,)),
        'ln1_g': (1.0 + nrm(ks[8], (1, D_MODEL))).astype(jnp.float32),
        'ln1_b': nrm(ks[9], (1, D_MODEL)),
        'ln2_g': (1.0 + nrm(ks[10], (1, D_MODEL))).astype(jnp.float32),
        'ln2_b': nrm(ks[11], (1, D_MODEL)),
        'w_in_x': nrm(ks[12], (D_MODEL, D_INNER)),
        'w_in_z': nrm(ks[13], (D_MODEL, D_INNER)),
        'conv_w': nrm(ks[14], (D_CONV, D_INNER), 0.1),
        'conv_b': nrm(ks[15], (1, D_INNER), 0.1),
        'w_x_dt': nrm(ks[16], (D_INNER, DT_RANK), 0.05),
        'w_x_B': nrm(ks[17], (D_INNER, D_STATE), 0.05),
        'w_x_C': nrm(ks[18], (D_INNER, D_STATE), 0.05),
        'w_dt': nrm(ks[19], (DT_RANK, D_INNER), 0.1),
        'dt_b': nrm(ks[20], (1, D_INNER), 0.1),
        'A_log': jnp.log(jnp.broadcast_to(
            jnp.arange(1, D_STATE + 1, dtype=jnp.float32), (D_INNER, D_STATE))),
        'D': jnp.ones((1, D_INNER), jnp.float32),
        'w_out': nrm(ks[21], (D_INNER, D_MODEL)),
    }
    return p


def pack_params(p):
    """Pack/fuse weights for the fused Pallas kernel (host-side, once)."""
    return {
        'wqkv': jnp.concatenate([p['wq'], p['wk'], p['wv']], axis=1),      # (64, 192)
        'bqkv': jnp.concatenate([p['bq'], p['bk'], p['bv']])[None, :],     # (1, 192)
        'wo': p['wo'],
        'bo': p['bo'][None, :],
        'ln1_g': p['ln1_g'], 'ln1_b': p['ln1_b'],
        'ln2_g': p['ln2_g'], 'ln2_b': p['ln2_b'],
        'w_in': jnp.concatenate([p['w_in_x'], p['w_in_z']], axis=1),       # (64, 256)
        'conv_w': p['conv_w'], 'conv_b': p['conv_b'],
        'w_dt_full': p['w_x_dt'] @ p['w_dt'],                              # (128, 128)
        'dt_b': p['dt_b'],
        'w_b_t': p['w_x_B'].T,                                             # (16, 128) B proj, state on sublanes
        'w_c': p['w_x_C'],                                                 # (128, 16) C proj, natural layout
        'a_sn': (-jnp.exp(p['A_log'])).T,                                  # (16, 128)
        'd': p['D'],
        'w_out': p['w_out'],
    }


# ---------------------------------- main ---------------------------------------
if __name__ == "__main__":
    key = jax.random.PRNGKey(0)
    kx, kp_key = jax.random.split(key)
    params = make_params(kp_key)
    kparams = pack_params(params)
    x = jax.random.normal(kx, (B, L, D_MODEL), dtype=jnp.float32)

    out = jax.jit(am_layer_forward)(x, kparams)
    out = jax.block_until_ready(out)
    assert out.shape == (B, L, D_MODEL)

    ref = jax.block_until_ready(ref_forward(x, params))
    if not np.allclose(np.asarray(out), np.asarray(ref), atol=2e-2, rtol=2e-2):
        raise AssertionError("Pallas output does not match JAX reference")

    print("KERNEL_OK")
</pallas_src>

<mosaic_0001>
module attributes {stable_mosaic.version = 11 : i64} {
  func.func @kernel(%arg0: i32, %arg1: memref<1x16x64xf32, #tpu.memory_space<vmem>>, %arg2: memref<64x192xf32, #tpu.memory_space<vmem>>, %arg3: memref<1x192xf32, #tpu.memory_space<vmem>>, %arg4: memref<64x64xf32, #tpu.memory_space<vmem>>, %arg5: memref<1x64xf32, #tpu.memory_space<vmem>>, %arg6: memref<1x64xf32, #tpu.memory_space<vmem>>, %arg7: memref<1x64xf32, #tpu.memory_space<vmem>>, %arg8: memref<1x64xf32, #tpu.memory_space<vmem>>, %arg9: memref<1x64xf32, #tpu.memory_space<vmem>>, %arg10: memref<64x256xf32, #tpu.memory_space<vmem>>, %arg11: memref<4x128xf32, #tpu.memory_space<vmem>>, %arg12: memref<1x128xf32, #tpu.memory_space<vmem>>, %arg13: memref<128x128xf32, #tpu.memory_space<vmem>>, %arg14: memref<1x128xf32, #tpu.memory_space<vmem>>, %arg15: memref<16x128xf32, #tpu.memory_space<vmem>>, %arg16: memref<128x16xf32, #tpu.memory_space<vmem>>, %arg17: memref<16x128xf32, #tpu.memory_space<vmem>>, %arg18: memref<1x128xf32, #tpu.memory_space<vmem>>, %arg19: memref<128x64xf32, #tpu.memory_space<vmem>>, %arg20: memref<1x16x64xf32, #tpu.memory_space<vmem>>, %arg21: memref<256x128xf32, #tpu.memory_space<vmem>>, %arg22: memref<256x128xf32, #tpu.memory_space<vmem>>, %arg23: memref<256x128xf32, #tpu.memory_space<vmem>>) attributes {dimension_semantics = [#tpu.dimension_semantics<parallel>], iteration_bounds = array<i64: 2>, scalar_prefetch = 0 : i64, scratch_operands = 3 : i64, tpu.core_type = #tpu.core_type<tc>, window_params = [{transform_indices = @transform_0, window_bounds = array<i64: 1, 16, 64>}, {pipeline_mode = #tpu.pipeline_mode<synchronous>, transform_indices = @transform_1, window_bounds = array<i64: 64, 192>}, {pipeline_mode = #tpu.pipeline_mode<synchronous>, transform_indices = @transform_2, window_bounds = array<i64: 1, 192>}, {pipeline_mode = #tpu.pipeline_mode<synchronous>, transform_indices = @transform_3, window_bounds = array<i64: 64, 64>}, {pipeline_mode = #tpu.pipeline_mode<synchronous>, transform_indices = @transform_4, window_bounds = array<i64: 1, 64>}, {pipeline_mode = #tpu.pipeline_mode<synchronous>, transform_indices = @transform_5, window_bounds = array<i64: 1, 64>}, {pipeline_mode = #tpu.pipeline_mode<synchronous>, transform_indices = @transform_6, window_bounds = array<i64: 1, 64>}, {pipeline_mode = #tpu.pipeline_mode<synchronous>, transform_indices = @transform_7, window_bounds = array<i64: 1, 64>}, {pipeline_mode = #tpu.pipeline_mode<synchronous>, transform_indices = @transform_8, window_bounds = array<i64: 1, 64>}, {pipeline_mode = #tpu.pipeline_mode<synchronous>, transform_indices = @transform_9, window_bounds = array<i64: 64, 256>}, {pipeline_mode = #tpu.pipeline_mode<synchronous>, transform_indices = @transform_10, window_bounds = array<i64: 4, 128>}, {pipeline_mode = #tpu.pipeline_mode<synchronous>, transform_indices = @transform_11, window_bounds = array<i64: 1, 128>}, {pipeline_mode = #tpu.pipeline_mode<synchronous>, transform_indices = @transform_12, window_bounds = array<i64: 128, 128>}, {pipeline_mode = #tpu.pipeline_mode<synchronous>, transform_indices = @transform_13, window_bounds = array<i64: 1, 128>}, {pipeline_mode = #tpu.pipeline_mode<synchronous>, transform_indices = @transform_14, window_bounds = array<i64: 16, 128>}, {pipeline_mode = #tpu.pipeline_mode<synchronous>, transform_indices = @transform_15, window_bounds = array<i64: 128, 16>}, {pipeline_mode = #tpu.pipeline_mode<synchronous>, transform_indices = @transform_16, window_bounds = array<i64: 16, 128>}, {pipeline_mode = #tpu.pipeline_mode<synchronous>, transform_indices = @transform_17, window_bounds = array<i64: 1, 128>}, {pipeline_mode = #tpu.pipeline_mode<synchronous>, transform_indices = @transform_18, window_bounds = array<i64: 128, 64>}, {transform_indices = @transform_19, window_bounds = array<i64: 1, 16, 64>}]} {
    %c0 = arith.constant 0 : index
    %c0_0 = arith.constant 0 : index
    %0 = vector.load %arg11[%c0, %c0_0] : memref<4x128xf32, #tpu.memory_space<vmem>>, vector<4x128xf32>
    %c0_1 = arith.constant 0 : index
    %c0_2 = arith.constant 0 : index
    %1 = vector.load %arg17[%c0_1, %c0_2] : memref<16x128xf32, #tpu.memory_space<vmem>>, vector<16x128xf32>
    %2 = tpu.iota {dimensions = array<i32: 1>} : vector<16x256xi32>
    %3 = tpu.iota {dimensions = array<i32: 0>} : vector<16x256xi32>
    %c16_i32 = arith.constant 16 : i32
    %4 = vector.broadcast %c16_i32 : i32 to vector<16x256xi32>
    %5 = arith.muli %3, %4 : vector<16x256xi32>
    %6 = arith.subi %2, %5 : vector<16x256xi32>
    %c0_i32 = arith.constant 0 : i32
    %7 = vector.broadcast %c0_i32 : i32 to vector<16x256xi32>
    %8 = arith.cmpi sge, %6, %7 : vector<16x256xi32>
    %c16_i32_3 = arith.constant 16 : i32
    %9 = vector.broadcast %c16_i32_3 : i32 to vector<16x256xi32>
    %10 = arith.cmpi slt, %6, %9 : vector<16x256xi32>
    %11 = arith.andi %8, %10 : vector<16x256xi1>
    %c0_4 = arith.constant 0 : index
    %c0_5 = arith.constant 0 : index
    %c0_6 = arith.constant 0 : index
    %12 = vector.load %arg1[%c0_4, %c0_5, %c0_6] : memref<1x16x64xf32, #tpu.memory_space<vmem>>, vector<1x16x64xf32>
    %13 = vector.shape_cast %12 : vector<1x16x64xf32> to vector<16x64xf32>
    %c0_7 = arith.constant 0 : index
    %c0_8 = arith.constant 0 : index
    %14 = vector.load %arg2[%c0_7, %c0_8] : memref<64x192xf32, #tpu.memory_space<vmem>>, vector<64x192xf32>
    %cst = arith.constant dense<0.000000e+00> : vector<16x192xf32>
    %15 = tpu.matmul %13, %14, %cst {dimension_numbers = #tpu.dot_dimension_numbers<[1], [0], [0], [1], [0, 0, 1, 1], [], []>} : vector<16x64xf32>, vector<64x192xf32>, vector<16x192xf32> -> vector<16x192xf32>
    %c0_9 = arith.constant 0 : index
    %c0_10 = arith.constant 0 : index
    %16 = vector.load %arg3[%c0_9, %c0_10] : memref<1x192xf32, #tpu.memory_space<vmem>>, vector<1x192xf32>
    %17 = vector.broadcast %16 : vector<1x192xf32> to vector<16x192xf32>
    %18 = arith.addf %15, %17 : vector<16x192xf32>
    %c0_11 = arith.constant 0 : index
    %c0_12 = arith.constant 0 : index
    %19 = vector.load %arg5[%c0_11, %c0_12] : memref<1x64xf32, #tpu.memory_space<vmem>>, vector<1x64xf32>
    %20 = vector.extract_strided_slice %18 {offsets = [0, 0], sizes = [16, 16], strides = [1, 1]} : vector<16x192xf32> to vector<16x16xf32>
    %21 = vector.extract_strided_slice %18 {offsets = [0, 64], sizes = [16, 16], strides = [1, 1]} : vector<16x192xf32> to vector<16x16xf32>
    %22 = vector.extract_strided_slice %18 {offsets = [0, 128], sizes = [16, 16], strides = [1, 1]} : vector<16x192xf32> to vector<16x16xf32>
    %cst_13 = arith.constant dense<0.000000e+00> : vector<16x16xf32>
    %23 = tpu.matmul %20, %21, %cst_13 {dimension_numbers = #tpu.dot_dimension_numbers<[1], [1], [0], [0], [0, 0, 1, 0], [], []>} : vector<16x16xf32>, vector<16x16xf32>, vector<16x16xf32> -> vector<16x16xf32>
    %cst_14 = arith.constant 2.500000e-01 : f32
    %24 = vector.broadcast %cst_14 : f32 to vector<16x16xf32>
    %25 = arith.mulf %23, %24 : vector<16x16xf32>
    %cst_15 = arith.constant dense<0xFF800000> : vector<16xf32>
    %26 = vector.multi_reduction <maximumf>, %25, %cst_15 [1] : vector<16x16xf32> to vector<16xf32>
    %27 = vector.shape_cast %26 : vector<16xf32> to vector<16x1xf32>
    %28 = vector.broadcast %27 : vector<16x1xf32> to vector<16x16xf32>
    %29 = arith.subf %25, %28 : vector<16x16xf32>
    %30 = math.exp %29 : vector<16x16xf32>
    %cst_16 = arith.constant dense<0.000000e+00> : vector<16xf32>
    %31 = vector.multi_reduction <add>, %30, %cst_16 [1] : vector<16x16xf32> to vector<16xf32>
    %32 = vector.shape_cast %31 : vector<16xf32> to vector<16x1xf32>
    %33 = tpu.reciprocal %32 {approx = true} : vector<16x1xf32> -> vector<16x1xf32>
    %34 = vector.broadcast %33 : vector<16x1xf32> to vector<16x16xf32>
    %35 = arith.mulf %30, %34 : vector<16x16xf32>
    %cst_17 = arith.constant dense<0.000000e+00> : vector<16x16xf32>
    %36 = tpu.matmul %35, %22, %cst_17 {dimension_numbers = #tpu.dot_dimension_numbers<[1], [0], [0], [1], [0, 0, 1, 1], [], []>} : vector<16x16xf32>, vector<16x16xf32>, vector<16x16xf32> -> vector<16x16xf32>
    %c0_18 = arith.constant 0 : index
    %c0_19 = arith.constant 0 : index
    %37 = vector.load %arg4[%c0_18, %c0_19] : memref<64x64xf32, #tpu.memory_space<vmem>>, vector<16x64xf32>
    %cst_20 = arith.constant dense<0.000000e+00> : vector<16x64xf32>
    %38 = tpu.matmul %36, %37, %cst_20 {dimension_numbers = #tpu.dot_dimension_numbers<[1], [0], [0], [1], [0, 0, 1, 1], [], []>} : vector<16x16xf32>, vector<16x64xf32>, vector<16x64xf32> -> vector<16x64xf32>
    %39 = vector.broadcast %19 : vector<1x64xf32> to vector<16x64xf32>
    %40 = arith.addf %39, %38 : vector<16x64xf32>
    %41 = vector.extract_strided_slice %18 {offsets = [0, 16], sizes = [16, 16], strides = [1, 1]} : vector<16x192xf32> to vector<16x16xf32>
    %42 = vector.extract_strided_slice %18 {offsets = [0, 80], sizes = [16, 16], strides = [1, 1]} : vector<16x192xf32> to vector<16x16xf32>
    %43 = vector.extract_strided_slice %18 {offsets = [0, 144], sizes = [16, 16], strides = [1, 1]} : vector<16x192xf32> to vector<16x16xf32>
    %cst_21 = arith.constant dense<0.000000e+00> : vector<16x16xf32>
    %44 = tpu.matmul %41, %42, %cst_21 {dimension_numbers = #tpu.dot_dimension_numbers<[1], [1], [0], [0], [0, 0, 1, 0], [], []>} : vector<16x16xf32>, vector<16x16xf32>, vector<16x16xf32> -> vector<16x16xf32>
    %cst_22 = arith.constant 2.500000e-01 : f32
    %45 = vector.broadcast %cst_22 : f32 to vector<16x16xf32>
    %46 = arith.mulf %44, %45 : vector<16x16xf32>
    %cst_23 = arith.constant dense<0xFF800000> : vector<16xf32>
    %47 = vector.multi_reduction <maximumf>, %46, %cst_23 [1] : vector<16x16xf32> to vector<16xf32>
    %48 = vector.shape_cast %47 : vector<16xf32> to vector<16x1xf32>
    %49 = vector.broadcast %48 : vector<16x1xf32> to vector<16x16xf32>
    %50 = arith.subf %46, %49 : vector<16x16xf32>
    %51 = math.exp %50 : vector<16x16xf32>
    %cst_24 = arith.constant dense<0.000000e+00> : vector<16xf32>
    %52 = vector.multi_reduction <add>, %51, %cst_24 [1] : vector<16x16xf32> to vector<16xf32>
    %53 = vector.shape_cast %52 : vector<16xf32> to vector<16x1xf32>
    %54 = tpu.reciprocal %53 {approx = true} : vector<16x1xf32> -> vector<16x1xf32>
    %55 = vector.broadcast %54 : vector<16x1xf32> to vector<16x16xf32>
    %56 = arith.mulf %51, %55 : vector<16x16xf32>
    %cst_25 = arith.constant dense<0.000000e+00> : vector<16x16xf32>
    %57 = tpu.matmul %56, %43, %cst_25 {dimension_numbers = #tpu.dot_dimension_numbers<[1], [0], [0], [1], [0, 0, 1, 1], [], []>} : vector<16x16xf32>, vector<16x16xf32>, vector<16x16xf32> -> vector<16x16xf32>
    %c16 = arith.constant 16 : index
    %c0_26 = arith.constant 0 : index
    %58 = vector.load %arg4[%c16, %c0_26] : memref<64x64xf32, #tpu.memory_space<vmem>>, vector<16x64xf32>
    %cst_27 = arith.constant dense<0.000000e+00> : vector<16x64xf32>
    %59 = tpu.matmul %57, %58, %cst_27 {dimension_numbers = #tpu.dot_dimension_numbers<[1], [0], [0], [1], [0, 0, 1, 1], [], []>} : vector<16x16xf32>, vector<16x64xf32>, vector<16x64xf32> -> vector<16x64xf32>
    %60 = arith.addf %40, %59 : vector<16x64xf32>
    %61 = vector.extract_strided_slice %18 {offsets = [0, 32], sizes = [16, 16], strides = [1, 1]} : vector<16x192xf32> to vector<16x16xf32>
    %62 = vector.extract_strided_slice %18 {offsets = [0, 96], sizes = [16, 16], strides = [1, 1]} : vector<16x192xf32> to vector<16x16xf32>
    %63 = vector.extract_strided_slice %18 {offsets = [0, 160], sizes = [16, 16], strides = [1, 1]} : vector<16x192xf32> to vector<16x16xf32>
    %cst_28 = arith.constant dense<0.000000e+00> : vector<16x16xf32>
    %64 = tpu.matmul %61, %62, %cst_28 {dimension_numbers = #tpu.dot_dimension_numbers<[1], [1], [0], [0], [0, 0, 1, 0], [], []>} : vector<16x16xf32>, vector<16x16xf32>, vector<16x16xf32> -> vector<16x16xf32>
    %cst_29 = arith.constant 2.500000e-01 : f32
    %65 = vector.broadcast %cst_29 : f32 to vector<16x16xf32>
    %66 = arith.mulf %64, %65 : vector<16x16xf32>
    %cst_30 = arith.constant dense<0xFF800000> : vector<16xf32>
    %67 = vector.multi_reduction <maximumf>, %66, %cst_30 [1] : vector<16x16xf32> to vector<16xf32>
    %68 = vector.shape_cast %67 : vector<16xf32> to vector<16x1xf32>
    %69 = vector.broadcast %68 : vector<16x1xf32> to vector<16x16xf32>
    %70 = arith.subf %66, %69 : vector<16x16xf32>
    %71 = math.exp %70 : vector<16x16xf32>
    %cst_31 = arith.constant dense<0.000000e+00> : vector<16xf32>
    %72 = vector.multi_reduction <add>, %71, %cst_31 [1] : vector<16x16xf32> to vector<16xf32>
    %73 = vector.shape_cast %72 : vector<16xf32> to vector<16x1xf32>
    %74 = tpu.reciprocal %73 {approx = true} : vector<16x1xf32> -> vector<16x1xf32>
    %75 = vector.broadcast %74 : vector<16x1xf32> to vector<16x16xf32>
    %76 = arith.mulf %71, %75 : vector<16x16xf32>
    %cst_32 = arith.constant dense<0.000000e+00> : vector<16x16xf32>
    %77 = tpu.matmul %76, %63, %cst_32 {dimension_numbers = #tpu.dot_dimension_numbers<[1], [0], [0], [1], [0, 0, 1, 1], [], []>} : vector<16x16xf32>, vector<16x16xf32>, vector<16x16xf32> -> vector<16x16xf32>
    %c32 = arith.constant 32 : index
    %c0_33 = arith.constant 0 : index
    %78 = vector.load %arg4[%c32, %c0_33] : memref<64x64xf32, #tpu.memory_space<vmem>>, vector<16x64xf32>
    %cst_34 = arith.constant dense<0.000000e+00> : vector<16x64xf32>
    %79 = tpu.matmul %77, %78, %cst_34 {dimension_numbers = #tpu.dot_dimension_numbers<[1], [0], [0], [1], [0, 0, 1, 1], [], []>} : vector<16x16xf32>, vector<16x64xf32>, vector<16x64xf32> -> vector<16x64xf32>
    %80 = arith.addf %60, %79 : vector<16x64xf32>
    %81 = vector.extract_strided_slice %18 {offsets = [0, 48], sizes = [16, 16], strides = [1, 1]} : vector<16x192xf32> to vector<16x16xf32>
    %82 = vector.extract_strided_slice %18 {offsets = [0, 112], sizes = [16, 16], strides = [1, 1]} : vector<16x192xf32> to vector<16x16xf32>
    %83 = vector.extract_strided_slice %18 {offsets = [0, 176], sizes = [16, 16], strides = [1, 1]} : vector<16x192xf32> to vector<16x16xf32>
    %cst_35 = arith.constant dense<0.000000e+00> : vector<16x16xf32>
    %84 = tpu.matmul %81, %82, %cst_35 {dimension_numbers = #tpu.dot_dimension_numbers<[1], [1], [0], [0], [0, 0, 1, 0], [], []>} : vector<16x16xf32>, vector<16x16xf32>, vector<16x16xf32> -> vector<16x16xf32>
    %cst_36 = arith.constant 2.500000e-01 : f32
    %85 = vector.broadcast %cst_36 : f32 to vector<16x16xf32>
    %86 = arith.mulf %84, %85 : vector<16x16xf32>
    %cst_37 = arith.constant dense<0xFF800000> : vector<16xf32>
    %87 = vector.multi_reduction <maximumf>, %86, %cst_37 [1] : vector<16x16xf32> to vector<16xf32>
    %88 = vector.shape_cast %87 : vector<16xf32> to vector<16x1xf32>
    %89 = vector.broadcast %88 : vector<16x1xf32> to vector<16x16xf32>
    %90 = arith.subf %86, %89 : vector<16x16xf32>
    %91 = math.exp %90 : vector<16x16xf32>
    %cst_38 = arith.constant dense<0.000000e+00> : vector<16xf32>
    %92 = vector.multi_reduction <add>, %91, %cst_38 [1] : vector<16x16xf32> to vector<16xf32>
    %93 = vector.shape_cast %92 : vector<16xf32> to vector<16x1xf32>
    %94 = tpu.reciprocal %93 {approx = true} : vector<16x1xf32> -> vector<16x1xf32>
    %95 = vector.broadcast %94 : vector<16x1xf32> to vector<16x16xf32>
    %96 = arith.mulf %91, %95 : vector<16x16xf32>
    %cst_39 = arith.constant dense<0.000000e+00> : vector<16x16xf32>
    %97 = tpu.matmul %96, %83, %cst_39 {dimension_numbers = #tpu.dot_dimension_numbers<[1], [0], [0], [1], [0, 0, 1, 1], [], []>} : vector<16x16xf32>, vector<16x16xf32>, vector<16x16xf32> -> vector<16x16xf32>
    %c48 = arith.constant 48 : index
    %c0_40 = arith.constant 0 : index
    %98 = vector.load %arg4[%c48, %c0_40] : memref<64x64xf32, #tpu.memory_space<vmem>>, vector<16x64xf32>
    %cst_41 = arith.constant dense<0.000000e+00> : vector<16x64xf32>
    %99 = tpu.matmul %97, %98, %cst_41 {dimension_numbers = #tpu.dot_dimension_numbers<[1], [0], [0], [1], [0, 0, 1, 1], [], []>} : vector<16x16xf32>, vector<16x64xf32>, vector<16x64xf32> -> vector<16x64xf32>
    %100 = arith.addf %80, %99 : vector<16x64xf32>
    %101 = arith.addf %13, %100 : vector<16x64xf32>
    %c0_42 = arith.constant 0 : index
    %c0_43 = arith.constant 0 : index
    %102 = vector.load %arg6[%c0_42, %c0_43] : memref<1x64xf32, #tpu.memory_space<vmem>>, vector<1x64xf32>
    %c0_44 = arith.constant 0 : index
    %c0_45 = arith.constant 0 : index
    %103 = vector.load %arg7[%c0_44, %c0_45] : memref<1x64xf32, #tpu.memory_space<vmem>>, vector<1x64xf32>
    %cst_46 = arith.constant dense<0.000000e+00> : vector<16xf32>
    %104 = vector.multi_reduction <add>, %101, %cst_46 [1] : vector<16x64xf32> to vector<16xf32>
    %105 = vector.shape_cast %104 : vector<16xf32> to vector<16x1xf32>
    %cst_47 = arith.constant 6.400000e+01 : f32
    %106 = vector.broadcast %cst_47 : f32 to vector<16x1xf32>
    %107 = arith.divf %105, %106 : vector<16x1xf32>
    %108 = vector.broadcast %107 : vector<16x1xf32> to vector<16x64xf32>
    %109 = arith.subf %101, %108 : vector<16x64xf32>
    %110 = arith.mulf %109, %109 : vector<16x64xf32>
    %cst_48 = arith.constant dense<0.000000e+00> : vector<16xf32>
    %111 = vector.multi_reduction <add>, %110, %cst_48 [1] : vector<16x64xf32> to vector<16xf32>
    %112 = vector.shape_cast %111 : vector<16xf32> to vector<16x1xf32>
    %cst_49 = arith.constant 6.400000e+01 : f32
    %113 = vector.broadcast %cst_49 : f32 to vector<16x1xf32>
    %114 = arith.divf %112, %113 : vector<16x1xf32>
    %cst_50 = arith.constant 9.99999974E-6 : f32
    %115 = vector.broadcast %cst_50 : f32 to vector<16x1xf32>
    %116 = arith.addf %114, %115 : vector<16x1xf32>
    %117 = math.rsqrt %116 : vector<16x1xf32>
    %118 = vector.broadcast %117 : vector<16x1xf32> to vector<16x64xf32>
    %119 = arith.mulf %109, %118 : vector<16x64xf32>
    %120 = vector.broadcast %102 : vector<1x64xf32> to vector<16x64xf32>
    %121 = arith.mulf %119, %120 : vector<16x64xf32>
    %122 = vector.broadcast %103 : vector<1x64xf32> to vector<16x64xf32>
    %123 = arith.addf %121, %122 : vector<16x64xf32>
    %c0_51 = arith.constant 0 : index
    %c0_52 = arith.constant 0 : index
    %124 = vector.load %arg10[%c0_51, %c0_52] : memref<64x256xf32, #tpu.memory_space<vmem>>, vector<64x256xf32>
    %cst_53 = arith.constant dense<0.000000e+00> : vector<16x256xf32>
    %125 = tpu.matmul %123, %124, %cst_53 {dimension_numbers = #tpu.dot_dimension_numbers<[1], [0], [0], [1], [0, 0, 1, 1], [], []>} : vector<16x64xf32>, vector<64x256xf32>, vector<16x256xf32> -> vector<16x256xf32>
    %126 = vector.extract_strided_slice %125 {offsets = [0, 0], sizes = [16, 128], strides = [1, 1]} : vector<16x256xf32> to vector<16x128xf32>
    %127 = vector.extract_strided_slice %125 {offsets = [0, 128], sizes = [16, 128], strides = [1, 1]} : vector<16x256xf32> to vector<16x128xf32>
    %c0_54 = arith.constant 0 : index
    %c0_55 = arith.constant 0 : index
    %128 = vector.load %arg12[%c0_54, %c0_55] : memref<1x128xf32, #tpu.memory_space<vmem>>, vector<1x128xf32>
    %129 = vector.extract_strided_slice %0 {offsets = [3, 0], sizes = [1, 128], strides = [1, 1]} : vector<4x128xf32> to vector<1x128xf32>
    %130 = vector.broadcast %129 : vector<1x128xf32> to vector<16x128xf32>
    %131 = arith.mulf %126, %130 : vector<16x128xf32>
    %132 = vector.broadcast %128 : vector<1x128xf32> to vector<16x128xf32>
    %133 = arith.addf %132, %131 : vector<16x128xf32>
    %cst_56 = arith.constant 0.000000e+00 : f32
    %134 = vector.broadcast %cst_56 : f32 to vector<3x128xf32>
    %135 = vector.extract_strided_slice %126 {offsets = [0, 0], sizes = [13, 128], strides = [1, 1]} : vector<16x128xf32> to vector<13x128xf32>
    %136 = tpu.concatenate %134, %135 in 0 : vector<3x128xf32>, vector<13x128xf32> -> vector<16x128xf32>
    %137 = vector.extract_strided_slice %0 {offsets = [0, 0], sizes = [1, 128], strides = [1, 1]} : vector<4x128xf32> to vector<1x128xf32>
    %138 = vector.broadcast %137 : vector<1x128xf32> to vector<16x128xf32>
    %139 = arith.mulf %136, %138 : vector<16x128xf32>
    %140 = arith.addf %133, %139 : vector<16x128xf32>
    %cst_57 = arith.constant 0.000000e+00 : f32
    %141 = vector.broadcast %cst_57 : f32 to vector<2x128xf32>
    %142 = vector.extract_strided_slice %126 {offsets = [0, 0], sizes = [14, 128], strides = [1, 1]} : vector<16x128xf32> to vector<14x128xf32>
    %143 = tpu.concatenate %141, %142 in 0 : vector<2x128xf32>, vector<14x128xf32> -> vector<16x128xf32>
    %144 = vector.extract_strided_slice %0 {offsets = [1, 0], sizes = [1, 128], strides = [1, 1]} : vector<4x128xf32> to vector<1x128xf32>
    %145 = vector.broadcast %144 : vector<1x128xf32> to vector<16x128xf32>
    %146 = arith.mulf %143, %145 : vector<16x128xf32>
    %147 = arith.addf %140, %146 : vector<16x128xf32>
    %cst_58 = arith.constant 0.000000e+00 : f32
    %148 = vector.broadcast %cst_58 : f32 to vector<1x128xf32>
    %149 = vector.extract_strided_slice %126 {offsets = [0, 0], sizes = [15, 128], strides = [1, 1]} : vector<16x128xf32> to vector<15x128xf32>
    %150 = tpu.concatenate %148, %149 in 0 : vector<1x128xf32>, vector<15x128xf32> -> vector<16x128xf32>
    %151 = vector.extract_strided_slice %0 {offsets = [2, 0], sizes = [1, 128], strides = [1, 1]} : vector<4x128xf32> to vector<1x128xf32>
    %152 = vector.broadcast %151 : vector<1x128xf32> to vector<16x128xf32>
    %153 = arith.mulf %150, %152 : vector<16x128xf32>
    %154 = arith.addf %147, %153 : vector<16x128xf32>
    %cst_59 = arith.constant 5.000000e-01 : f32
    %155 = vector.broadcast %cst_59 : f32 to vector<16x128xf32>
    %156 = arith.mulf %155, %154 : vector<16x128xf32>
    %157 = math.tanh %156 : vector<16x128xf32>
    %cst_60 = arith.constant 5.000000e-01 : f32
    %158 = vector.broadcast %cst_60 : f32 to vector<16x128xf32>
    %159 = arith.mulf %158, %157 : vector<16x128xf32>
    %cst_61 = arith.constant 5.000000e-01 : f32
    %160 = vector.broadcast %cst_61 : f32 to vector<16x128xf32>
    %161 = arith.addf %159, %160 : vector<16x128xf32>
    %162 = arith.mulf %154, %161 : vector<16x128xf32>
    %c0_62 = arith.constant 0 : index
    %c0_63 = arith.constant 0 : index
    %163 = vector.load %arg13[%c0_62, %c0_63] : memref<128x128xf32, #tpu.memory_space<vmem>>, vector<128x128xf32>
    %cst_64 = arith.constant dense<0.000000e+00> : vector<16x128xf32>
    %164 = tpu.matmul %162, %163, %cst_64 {dimension_numbers = #tpu.dot_dimension_numbers<[1], [0], [0], [1], [0, 0, 1, 1], [], []>} : vector<16x128xf32>, vector<128x128xf32>, vector<16x128xf32> -> vector<16x128xf32>
    %c0_65 = arith.constant 0 : index
    %c0_66 = arith.constant 0 : index
    %165 = vector.load %arg14[%c0_65, %c0_66] : memref<1x128xf32, #tpu.memory_space<vmem>>, vector<1x128xf32>
    %166 = vector.broadcast %165 : vector<1x128xf32> to vector<16x128xf32>
    %167 = arith.addf %164, %166 : vector<16x128xf32>
    %cst_67 = arith.constant 0.000000e+00 : f32
    %168 = vector.broadcast %cst_67 : f32 to vector<16x128xf32>
    %169 = arith.maximumf %167, %168 : vector<16x128xf32>
    %170 = math.absf %167 : vector<16x128xf32>
    %cst_68 = arith.constant 0.000000e+00 : f32
    %171 = vector.broadcast %cst_68 : f32 to vector<16x128xf32>
    %172 = arith.subf %171, %170 : vector<16x128xf32>
    %173 = math.exp %172 : vector<16x128xf32>
    %cst_69 = arith.constant 1.000000e+00 : f32
    %174 = vector.broadcast %cst_69 : f32 to vector<16x128xf32>
    %175 = arith.addf %174, %173 : vector<16x128xf32>
    %176 = math.log %175 : vector<16x128xf32>
    %177 = arith.addf %169, %176 : vector<16x128xf32>
    %c0_70 = arith.constant 0 : index
    %c0_71 = arith.constant 0 : index
    %178 = vector.load %arg15[%c0_70, %c0_71] : memref<16x128xf32, #tpu.memory_space<vmem>>, vector<16x128xf32>
    %cst_72 = arith.constant dense<0.000000e+00> : vector<16x16xf32>
    %179 = tpu.matmul %178, %162, %cst_72 {dimension_numbers = #tpu.dot_dimension_numbers<[1], [1], [0], [0], [0, 0, 1, 0], [], []>} : vector<16x128xf32>, vector<16x128xf32>, vector<16x16xf32> -> vector<16x16xf32>
    %c0_73 = arith.constant 0 : index
    %c0_74 = arith.constant 0 : index
    %180 = vector.load %arg16[%c0_73, %c0_74] : memref<128x16xf32, #tpu.memory_space<vmem>>, vector<128x16xf32>
    %cst_75 = arith.constant dense<0.000000e+00> : vector<16x16xf32>
    %181 = tpu.matmul %162, %180, %cst_75 {dimension_numbers = #tpu.dot_dimension_numbers<[1], [0], [0], [1], [0, 0, 1, 1], [], []>} : vector<16x128xf32>, vector<128x16xf32>, vector<16x16xf32> -> vector<16x16xf32>
    %182 = arith.mulf %177, %162 : vector<16x128xf32>
    %183 = vector.extract_strided_slice %177 {offsets = [0, 0], sizes = [1, 128], strides = [1, 1]} : vector<16x128xf32> to vector<1x128xf32>
    %184 = vector.broadcast %183 : vector<1x128xf32> to vector<16x128xf32>
    %185 = arith.mulf %184, %1 : vector<16x128xf32>
    %186 = math.exp %185 : vector<16x128xf32>
    %c0_76 = arith.constant 0 : index
    %c0_77 = arith.constant 0 : index
    %187 = vector.load %arg21[%c0_76, %c0_77] : memref<256x128xf32, #tpu.memory_space<vmem>>, vector<16x128xf32>
    tpu.vector_store %arg21[%c0_76, %c0_77], %186 {strides = array<i32>} : memref<256x128xf32, #tpu.memory_space<vmem>>, vector<16x128xf32>,
    %188 = vector.extract_strided_slice %182 {offsets = [0, 0], sizes = [1, 128], strides = [1, 1]} : vector<16x128xf32> to vector<1x128xf32>
    %189 = vector.extract_strided_slice %179 {offsets = [0, 0], sizes = [16, 1], strides = [1, 1]} : vector<16x16xf32> to vector<16x1xf32>
    %190 = vector.broadcast %188 : vector<1x128xf32> to vector<16x128xf32>
    %191 = vector.broadcast %189 : vector<16x1xf32> to vector<16x128xf32>
    %192 = arith.mulf %190, %191 : vector<16x128xf32>
    %c0_78 = arith.constant 0 : index
    %c0_79 = arith.constant 0 : index
    %193 = vector.load %arg22[%c0_78, %c0_79] : memref<256x128xf32, #tpu.memory_space<vmem>>, vector<16x128xf32>
    tpu.vector_store %arg22[%c0_78, %c0_79], %192 {strides = array<i32>} : memref<256x128xf32, #tpu.memory_space<vmem>>, vector<16x128xf32>,
    %194 = vector.extract_strided_slice %177 {offsets = [1, 0], sizes = [1, 128], strides = [1, 1]} : vector<16x128xf32> to vector<1x128xf32>
    %195 = vector.broadcast %194 : vector<1x128xf32> to vector<16x128xf32>
    %196 = arith.mulf %195, %1 : vector<16x128xf32>
    %197 = math.exp %196 : vector<16x128xf32>
    %c16_80 = arith.constant 16 : index
    %c0_81 = arith.constant 0 : index
    %198 = vector.load %arg21[%c16_80, %c0_81] : memref<256x128xf32, #tpu.memory_space<vmem>>, vector<16x128xf32>
    tpu.vector_store %arg21[%c16_80, %c0_81], %197 {strides = array<i32>} : memref<256x128xf32, #tpu.memory_space<vmem>>, vector<16x128xf32>,
    %199 = vector.extract_strided_slice %182 {offsets = [1, 0], sizes = [1, 128], strides = [1, 1]} : vector<16x128xf32> to vector<1x128xf32>
    %200 = vector.extract_strided_slice %179 {offsets = [0, 1], sizes = [16, 1], strides = [1, 1]} : vector<16x16xf32> to vector<16x1xf32>
    %201 = vector.broadcast %199 : vector<1x128xf32> to vector<16x128xf32>
    %202 = vector.broadcast %200 : vector<16x1xf32> to vector<16x128xf32>
    %203 = arith.mulf %201, %202 : vector<16x128xf32>
    %c16_82 = arith.constant 16 : index
    %c0_83 = arith.constant 0 : index
    %204 = vector.load %arg22[%c16_82, %c0_83] : memref<256x128xf32, #tpu.memory_space<vmem>>, vector<16x128xf32>
    tpu.vector_store %arg22[%c16_82, %c0_83], %203 {strides = array<i32>} : memref<256x128xf32, #tpu.memory_space<vmem>>, vector<16x128xf32>,
    %205 = vector.extract_strided_slice %177 {offsets = [2, 0], sizes = [1, 128], strides = [1, 1]} : vector<16x128xf32> to vector<1x128xf32>
    %206 = vector.broadcast %205 : vector<1x128xf32> to vector<16x128xf32>
    %207 = arith.mulf %206, %1 : vector<16x128xf32>
    %208 = math.exp %207 : vector<16x128xf32>
    %c32_84 = arith.constant 32 : index
    %c0_85 = arith.constant 0 : index
    %209 = vector.load %arg21[%c32_84, %c0_85] : memref<256x128xf32, #tpu.memory_space<vmem>>, vector<16x128xf32>
    tpu.vector_store %arg21[%c32_84, %c0_85], %208 {strides = array<i32>} : memref<256x128xf32, #tpu.memory_space<vmem>>, vector<16x128xf32>,
    %210 = vector.extract_strided_slice %182 {offsets = [2, 0], sizes = [1, 128], strides = [1, 1]} : vector<16x128xf32> to vector<1x128xf32>
    %211 = vector.extract_strided_slice %179 {offsets = [0, 2], sizes = [16, 1], strides = [1, 1]} : vector<16x16xf32> to vector<16x1xf32>
    %212 = vector.broadcast %210 : vector<1x128xf32> to vector<16x128xf32>
    %213 = vector.broadcast %211 : vector<16x1xf32> to vector<16x128xf32>
    %214 = arith.mulf %212, %213 : vector<16x128xf32>
    %c32_86 = arith.constant 32 : index
    %c0_87 = arith.constant 0 : index
    %215 = vector.load %arg22[%c32_86, %c0_87] : memref<256x128xf32, #tpu.memory_space<vmem>>, vector<16x128xf32>
    tpu.vector_store %arg22[%c32_86, %c0_87], %214 {strides = array<i32>} : memref<256x128xf32, #tpu.memory_space<vmem>>, vector<16x128xf32>,
    %216 = vector.extract_strided_slice %177 {offsets = [3, 0], sizes = [1, 128], strides = [1, 1]} : vector<16x128xf32> to vector<1x128xf32>
    %217 = vector.broadcast %216 : vector<1x128xf32> to vector<16x128xf32>
    %218 = arith.mulf %217, %1 : vector<16x128xf32>
    %219 = math.exp %218 : vector<16x128xf32>
    %c48_88 = arith.constant 48 : index
    %c0_89 = arith.constant 0 : index
    %220 = vector.load %arg21[%c48_88, %c0_89] : memref<256x128xf32, #tpu.memory_space<vmem>>, vector<16x128xf32>
    tpu.vector_store %arg21[%c48_88, %c0_89], %219 {strides = array<i32>} : memref<256x128xf32, #tpu.memory_space<vmem>>, vector<16x128xf32>,
    %221 = vector.extract_strided_slice %182 {offsets = [3, 0], sizes = [1, 128], strides = [1, 1]} : vector<16x128xf32> to vector<1x128xf32>
    %222 = vector.extract_strided_slice %179 {offsets = [0, 3], sizes = [16, 1], strides = [1, 1]} : vector<16x16xf32> to vector<16x1xf32>
    %223 = vector.broadcast %221 : vector<1x128xf32> to vector<16x128xf32>
    %224 = vector.broadcast %222 : vector<16x1xf32> to vector<16x128xf32>
    %225 = arith.mulf %223, %224 : vector<16x128xf32>
    %c48_90 = arith.constant 48 : index
    %c0_91 = arith.constant 0 : index
    %226 = vector.load %arg22[%c48_90, %c0_91] : memref<256x128xf32, #tpu.memory_space<vmem>>, vector<16x128xf32>
    tpu.vector_store %arg22[%c48_90, %c0_91], %225 {strides = array<i32>} : memref<256x128xf32, #tpu.memory_space<vmem>>, vector<16x128xf32>,
    %227 = vector.extract_strided_slice %177 {offsets = [4, 0], sizes = [1, 128], strides = [1, 1]} : vector<16x128xf32> to vector<1x128xf32>
    %228 = vector.broadcast %227 : vector<1x128xf32> to vector<16x128xf32>
    %229 = arith.mulf %228, %1 : vector<16x128xf32>
    %230 = math.exp %229 : vector<16x128xf32>
    %c64 = arith.constant 64 : index
    %c0_92 = arith.constant 0 : index
    %231 = vector.load %arg21[%c64, %c0_92] : memref<256x128xf32, #tpu.memory_space<vmem>>, vector<16x128xf32>
    tpu.vector_store %arg21[%c64, %c0_92], %230 {strides = array<i32>} : memref<256x128xf32, #tpu.memory_space<vmem>>, vector<16x128xf32>,
    %232 = vector.extract_strided_slice %182 {offsets = [4, 0], sizes = [1, 128], strides = [1, 1]} : vector<16x128xf32> to vector<1x128xf32>
    %233 = vector.extract_strided_slice %179 {offsets = [0, 4], sizes = [16, 1], strides = [1, 1]} : vector<16x16xf32> to vector<16x1xf32>
    %234 = vector.broadcast %232 : vector<1x128xf32> to vector<16x128xf32>
    %235 = vector.broadcast %233 : vector<16x1xf32> to vector<16x128xf32>
    %236 = arith.mulf %234, %235 : vector<16x128xf32>
    %c64_93 = arith.constant 64 : index
    %c0_94 = arith.constant 0 : index
    %237 = vector.load %arg22[%c64_93, %c0_94] : memref<256x128xf32, #tpu.memory_space<vmem>>, vector<16x128xf32>
    tpu.vector_store %arg22[%c64_93, %c0_94], %236 {strides = array<i32>} : memref<256x128xf32, #tpu.memory_space<vmem>>, vector<16x128xf32>,
    %238 = vector.extract_strided_slice %177 {offsets = [5, 0], sizes = [1, 128], strides = [1, 1]} : vector<16x128xf32> to vector<1x128xf32>
    %239 = vector.broadcast %238 : vector<1x128xf32> to vector<16x128xf32>
    %240 = arith.mulf %239, %1 : vector<16x128xf32>
    %241 = math.exp %240 : vector<16x128xf32>
    %c80 = arith.constant 80 : index
    %c0_95 = arith.constant 0 : index
    %242 = vector.load %arg21[%c80, %c0_95] : memref<256x128xf32, #tpu.memory_space<vmem>>, vector<16x128xf32>
    tpu.vector_store %arg21[%c80, %c0_95], %241 {strides = array<i32>} : memref<256x128xf32, #tpu.memory_space<vmem>>, vector<16x128xf32>,
    %243 = vector.extract_strided_slice %182 {offsets = [5, 0], sizes = [1, 128], strides = [1, 1]} : vector<16x128xf32> to vector<1x128xf32>
    %244 = vector.extract_strided_slice %179 {offsets = [0, 5], sizes = [16, 1], strides = [1, 1]} : vector<16x16xf32> to vector<16x1xf32>
    %245 = vector.broadcast %243 : vector<1x128xf32> to vector<16x128xf32>
    %246 = vector.broadcast %244 : vector<16x1xf32> to vector<16x128xf32>
    %247 = arith.mulf %245, %246 : vector<16x128xf32>
    %c80_96 = arith.constant 80 : index
    %c0_97 = arith.constant 0 : index
    %248 = vector.load %arg22[%c80_96, %c0_97] : memref<256x128xf32, #tpu.memory_space<vmem>>, vector<16x128xf32>
    tpu.vector_store %arg22[%c80_96, %c0_97], %247 {strides = array<i32>} : memref<256x128xf32, #tpu.memory_space<vmem>>, vector<16x128xf32>,
    %249 = vector.extract_strided_slice %177 {offsets = [6, 0], sizes = [1, 128], strides = [1, 1]} : vector<16x128xf32> to vector<1x128xf32>
    %250 = vector.broadcast %249 : vector<1x128xf32> to vector<16x128xf32>
    %251 = arith.mulf %250, %1 : vector<16x128xf32>
    %252 = math.exp %251 : vector<16x128xf32>
    %c96 = arith.constant 96 : index
    %c0_98 = arith.constant 0 : index
    %253 = vector.load %arg21[%c96, %c0_98] : memref<256x128xf32, #tpu.memory_space<vmem>>, vector<16x128xf32>
    tpu.vector_store %arg21[%c96, %c0_98], %252 {strides = array<i32>} : memref<256x128xf32, #tpu.memory_space<vmem>>, vector<16x128xf32>,
    %254 = vector.extract_strided_slice %182 {offsets = [6, 0], sizes = [1, 128], strides = [1, 1]} : vector<16x128xf32> to vector<1x128xf32>
    %255 = vector.extract_strided_slice %179 {offsets = [0, 6], sizes = [16, 1], strides = [1, 1]} : vector<16x16xf32> to vector<16x1xf32>
    %256 = vector.broadcast %254 : vector<1x128xf32> to vector<16x128xf32>
    %257 = vector.broadcast %255 : vector<16x1xf32> to vector<16x128xf32>
    %258 = arith.mulf %256, %257 : vector<16x128xf32>
    %c96_99 = arith.constant 96 : index
    %c0_100 = arith.constant 0 : index
    %259 = vector.load %arg22[%c96_99, %c0_100] : memref<256x128xf32, #tpu.memory_space<vmem>>, vector<16x128xf32>
    tpu.vector_store %arg22[%c96_99, %c0_100], %258 {strides = array<i32>} : memref<256x128xf32, #tpu.memory_space<vmem>>, vector<16x128xf32>,
    %260 = vector.extract_strided_slice %177 {offsets = [7, 0], sizes = [1, 128], strides = [1, 1]} : vector<16x128xf32> to vector<1x128xf32>
    %261 = vector.broadcast %260 : vector<1x128xf32> to vector<16x128xf32>
    %262 = arith.mulf %261, %1 : vector<16x128xf32>
    %263 = math.exp %262 : vector<16x128xf32>
    %c112 = arith.constant 112 : index
    %c0_101 = arith.constant 0 : index
    %264 = vector.load %arg21[%c112, %c0_101] : memref<256x128xf32, #tpu.memory_space<vmem>>, vector<16x128xf32>
    tpu.vector_store %arg21[%c112, %c0_101], %263 {strides = array<i32>} : memref<256x128xf32, #tpu.memory_space<vmem>>, vector<16x128xf32>,
    %265 = vector.extract_strided_slice %182 {offsets = [7, 0], sizes = [1, 128], strides = [1, 1]} : vector<16x128xf32> to vector<1x128xf32>
    %266 = vector.extract_strided_slice %179 {offsets = [0, 7], sizes = [16, 1], strides = [1, 1]} : vector<16x16xf32> to vector<16x1xf32>
    %267 = vector.broadcast %265 : vector<1x128xf32> to vector<16x128xf32>
    %268 = vector.broadcast %266 : vector<16x1xf32> to vector<16x128xf32>
    %269 = arith.mulf %267, %268 : vector<16x128xf32>
    %c112_102 = arith.constant 112 : index
    %c0_103 = arith.constant 0 : index
    %270 = vector.load %arg22[%c112_102, %c0_103] : memref<256x128xf32, #tpu.memory_space<vmem>>, vector<16x128xf32>
    tpu.vector_store %arg22[%c112_102, %c0_103], %269 {strides = array<i32>} : memref<256x128xf32, #tpu.memory_space<vmem>>, vector<16x128xf32>,
    %271 = vector.extract_strided_slice %177 {offsets = [8, 0], sizes = [1, 128], strides = [1, 1]} : vector<16x128xf32> to vector<1x128xf32>
    %272 = vector.broadcast %271 : vector<1x128xf32> to vector<16x128xf32>
    %273 = arith.mulf %272, %1 : vector<16x128xf32>
    %274 = math.exp %273 : vector<16x128xf32>
    %c128 = arith.constant 128 : index
    %c0_104 = arith.constant 0 : index
    %275 = vector.load %arg21[%c128, %c0_104] : memref<256x128xf32, #tpu.memory_space<vmem>>, vector<16x128xf32>
    tpu.vector_store %arg21[%c128, %c0_104], %274 {strides = array<i32>} : memref<256x128xf32, #tpu.memory_space<vmem>>, vector<16x128xf32>,
    %276 = vector.extract_strided_slice %182 {offsets = [8, 0], sizes = [1, 128], strides = [1, 1]} : vector<16x128xf32> to vector<1x128xf32>
    %277 = vector.extract_strided_slice %179 {offsets = [0, 8], sizes = [16, 1], strides = [1, 1]} : vector<16x16xf32> to vector<16x1xf32>
    %278 = vector.broadcast %276 : vector<1x128xf32> to vector<16x128xf32>
    %279 = vector.broadcast %277 : vector<16x1xf32> to vector<16x128xf32>
    %280 = arith.mulf %278, %279 : vector<16x128xf32>
    %c128_105 = arith.constant 128 : index
    %c0_106 = arith.constant 0 : index
    %281 = vector.load %arg22[%c128_105, %c0_106] : memref<256x128xf32, #tpu.memory_space<vmem>>, vector<16x128xf32>
    tpu.vector_store %arg22[%c128_105, %c0_106], %280 {strides = array<i32>} : memref<256x128xf32, #tpu.memory_space<vmem>>, vector<16x128xf32>,
    %282 = vector.extract_strided_slice %177 {offsets = [9, 0], sizes = [1, 128], strides = [1, 1]} : vector<16x128xf32> to vector<1x128xf32>
    %283 = vector.broadcast %282 : vector<1x128xf32> to vector<16x128xf32>
    %284 = arith.mulf %283, %1 : vector<16x128xf32>
    %285 = math.exp %284 : vector<16x128xf32>
    %c144 = arith.constant 144 : index
    %c0_107 = arith.constant 0 : index
    %286 = vector.load %arg21[%c144, %c0_107] : memref<256x128xf32, #tpu.memory_space<vmem>>, vector<16x128xf32>
    tpu.vector_store %arg21[%c144, %c0_107], %285 {strides = array<i32>} : memref<256x128xf32, #tpu.memory_space<vmem>>, vector<16x128xf32>,
    %287 = vector.extract_strided_slice %182 {offsets = [9, 0], sizes = [1, 128], strides = [1, 1]} : vector<16x128xf32> to vector<1x128xf32>
    %288 = vector.extract_strided_slice %179 {offsets = [0, 9], sizes = [16, 1], strides = [1, 1]} : vector<16x16xf32> to vector<16x1xf32>
    %289 = vector.broadcast %287 : vector<1x128xf32> to vector<16x128xf32>
    %290 = vector.broadcast %288 : vector<16x1xf32> to vector<16x128xf32>
    %291 = arith.mulf %289, %290 : vector<16x128xf32>
    %c144_108 = arith.constant 144 : index
    %c0_109 = arith.constant 0 : index
    %292 = vector.load %arg22[%c144_108, %c0_109] : memref<256x128xf32, #tpu.memory_space<vmem>>, vector<16x128xf32>
    tpu.vector_store %arg22[%c144_108, %c0_109], %291 {strides = array<i32>} : memref<256x128xf32, #tpu.memory_space<vmem>>, vector<16x128xf32>,
    %293 = vector.extract_strided_slice %177 {offsets = [10, 0], sizes = [1, 128], strides = [1, 1]} : vector<16x128xf32> to vector<1x128xf32>
    %294 = vector.broadcast %293 : vector<1x128xf32> to vector<16x128xf32>
    %295 = arith.mulf %294, %1 : vector<16x128xf32>
    %296 = math.exp %295 : vector<16x128xf32>
    %c160 = arith.constant 160 : index
    %c0_110 = arith.constant 0 : index
    %297 = vector.load %arg21[%c160, %c0_110] : memref<256x128xf32, #tpu.memory_space<vmem>>, vector<16x128xf32>
    tpu.vector_store %arg21[%c160, %c0_110], %296 {strides = array<i32>} : memref<256x128xf32, #tpu.memory_space<vmem>>, vector<16x128xf32>,
    %298 = vector.extract_strided_slice %182 {offsets = [10, 0], sizes = [1, 128], strides = [1, 1]} : vector<16x128xf32> to vector<1x128xf32>
    %299 = vector.extract_strided_slice %179 {offsets = [0, 10], sizes = [16, 1], strides = [1, 1]} : vector<16x16xf32> to vector<16x1xf32>
    %300 = vector.broadcast %298 : vector<1x128xf32> to vector<16x128xf32>
    %301 = vector.broadcast %299 : vector<16x1xf32> to vector<16x128xf32>
    %302 = arith.mulf %300, %301 : vector<16x128xf32>
    %c160_111 = arith.constant 160 : index
    %c0_112 = arith.constant 0 : index
    %303 = vector.load %arg22[%c160_111, %c0_112] : memref<256x128xf32, #tpu.memory_space<vmem>>, vector<16x128xf32>
    tpu.vector_store %arg22[%c160_111, %c0_112], %302 {strides = array<i32>} : memref<256x128xf32, #tpu.memory_space<vmem>>, vector<16x128xf32>,
    %304 = vector.extract_strided_slice %177 {offsets = [11, 0], sizes = [1, 128], strides = [1, 1]} : vector<16x128xf32> to vector<1x128xf32>
    %305 = vector.broadcast %304 : vector<1x128xf32> to vector<16x128xf32>
    %306 = arith.mulf %305, %1 : vector<16x128xf32>
    %307 = math.exp %306 : vector<16x128xf32>
    %c176 = arith.constant 176 : index
    %c0_113 = arith.constant 0 : index
    %308 = vector.load %arg21[%c176, %c0_113] : memref<256x128xf32, #tpu.memory_space<vmem>>, vector<16x128xf32>
    tpu.vector_store %arg21[%c176, %c0_113], %307 {strides = array<i32>} : memref<256x128xf32, #tpu.memory_space<vmem>>, vector<16x128xf32>,
    %309 = vector.extract_strided_slice %182 {offsets = [11, 0], sizes = [1, 128], strides = [1, 1]} : vector<16x128xf32> to vector<1x128xf32>
    %310 = vector.extract_strided_slice %179 {offsets = [0, 11], sizes = [16, 1], strides = [1, 1]} : vector<16x16xf32> to vector<16x1xf32>
    %311 = vector.broadcast %309 : vector<1x128xf32> to vector<16x128xf32>
    %312 = vector.broadcast %310 : vector<16x1xf32> to vector<16x128xf32>
    %313 = arith.mulf %311, %312 : vector<16x128xf32>
    %c176_114 = arith.constant 176 : index
    %c0_115 = arith.constant 0 : index
    %314 = vector.load %arg22[%c176_114, %c0_115] : memref<256x128xf32, #tpu.memory_space<vmem>>, vector<16x128xf32>
    tpu.vector_store %arg22[%c176_114, %c0_115], %313 {strides = array<i32>} : memref<256x128xf32, #tpu.memory_space<vmem>>, vector<16x128xf32>,
    %315 = vector.extract_strided_slice %177 {offsets = [12, 0], sizes = [1, 128], strides = [1, 1]} : vector<16x128xf32> to vector<1x128xf32>
    %316 = vector.broadcast %315 : vector<1x128xf32> to vector<16x128xf32>
    %317 = arith.mulf %316, %1 : vector<16x128xf32>
    %318 = math.exp %317 : vector<16x128xf32>
    %c192 = arith.constant 192 : index
    %c0_116 = arith.constant 0 : index
    %319 = vector.load %arg21[%c192, %c0_116] : memref<256x128xf32, #tpu.memory_space<vmem>>, vector<16x128xf32>
    tpu.vector_store %arg21[%c192, %c0_116], %318 {strides = array<i32>} : memref<256x128xf32, #tpu.memory_space<vmem>>, vector<16x128xf32>,
    %320 = vector.extract_strided_slice %182 {offsets = [12, 0], sizes = [1, 128], strides = [1, 1]} : vector<16x128xf32> to vector<1x128xf32>
    %321 = vector.extract_strided_slice %179 {offsets = [0, 12], sizes = [16, 1], strides = [1, 1]} : vector<16x16xf32> to vector<16x1xf32>
    %322 = vector.broadcast %320 : vector<1x128xf32> to vector<16x128xf32>
    %323 = vector.broadcast %321 : vector<16x1xf32> to vector<16x128xf32>
    %324 = arith.mulf %322, %323 : vector<16x128xf32>
    %c192_117 = arith.constant 192 : index
    %c0_118 = arith.constant 0 : index
    %325 = vector.load %arg22[%c192_117, %c0_118] : memref<256x128xf32, #tpu.memory_space<vmem>>, vector<16x128xf32>
    tpu.vector_store %arg22[%c192_117, %c0_118], %324 {strides = array<i32>} : memref<256x128xf32, #tpu.memory_space<vmem>>, vector<16x128xf32>,
    %326 = vector.extract_strided_slice %177 {offsets = [13, 0], sizes = [1, 128], strides = [1, 1]} : vector<16x128xf32> to vector<1x128xf32>
    %327 = vector.broadcast %326 : vector<1x128xf32> to vector<16x128xf32>
    %328 = arith.mulf %327, %1 : vector<16x128xf32>
    %329 = math.exp %328 : vector<16x128xf32>
    %c208 = arith.constant 208 : index
    %c0_119 = arith.constant 0 : index
    %330 = vector.load %arg21[%c208, %c0_119] : memref<256x128xf32, #tpu.memory_space<vmem>>, vector<16x128xf32>
    tpu.vector_store %arg21[%c208, %c0_119], %329 {strides = array<i32>} : memref<256x128xf32, #tpu.memory_space<vmem>>, vector<16x128xf32>,
    %331 = vector.extract_strided_slice %182 {offsets = [13, 0], sizes = [1, 128], strides = [1, 1]} : vector<16x128xf32> to vector<1x128xf32>
    %332 = vector.extract_strided_slice %179 {offsets = [0, 13], sizes = [16, 1], strides = [1, 1]} : vector<16x16xf32> to vector<16x1xf32>
    %333 = vector.broadcast %331 : vector<1x128xf32> to vector<16x128xf32>
    %334 = vector.broadcast %332 : vector<16x1xf32> to vector<16x128xf32>
    %335 = arith.mulf %333, %334 : vector<16x128xf32>
    %c208_120 = arith.constant 208 : index
    %c0_121 = arith.constant 0 : index
    %336 = vector.load %arg22[%c208_120, %c0_121] : memref<256x128xf32, #tpu.memory_space<vmem>>, vector<16x128xf32>
    tpu.vector_store %arg22[%c208_120, %c0_121], %335 {strides = array<i32>} : memref<256x128xf32, #tpu.memory_space<vmem>>, vector<16x128xf32>,
    %337 = vector.extract_strided_slice %177 {offsets = [14, 0], sizes = [1, 128], strides = [1, 1]} : vector<16x128xf32> to vector<1x128xf32>
    %338 = vector.broadcast %337 : vector<1x128xf32> to vector<16x128xf32>
    %339 = arith.mulf %338, %1 : vector<16x128xf32>
    %340 = math.exp %339 : vector<16x128xf32>
    %c224 = arith.constant 224 : index
    %c0_122 = arith.constant 0 : index
    %341 = vector.load %arg21[%c224, %c0_122] : memref<256x128xf32, #tpu.memory_space<vmem>>, vector<16x128xf32>
    tpu.vector_store %arg21[%c224, %c0_122], %340 {strides = array<i32>} : memref<256x128xf32, #tpu.memory_space<vmem>>, vector<16x128xf32>,
    %342 = vector.extract_strided_slice %182 {offsets = [14, 0], sizes = [1, 128], strides = [1, 1]} : vector<16x128xf32> to vector<1x128xf32>
    %343 = vector.extract_strided_slice %179 {offsets = [0, 14], sizes = [16, 1], strides = [1, 1]} : vector<16x16xf32> to vector<16x1xf32>
    %344 = vector.broadcast %342 : vector<1x128xf32> to vector<16x128xf32>
    %345 = vector.broadcast %343 : vector<16x1xf32> to vector<16x128xf32>
    %346 = arith.mulf %344, %345 : vector<16x128xf32>
    %c224_123 = arith.constant 224 : index
    %c0_124 = arith.constant 0 : index
    %347 = vector.load %arg22[%c224_123, %c0_124] : memref<256x128xf32, #tpu.memory_space<vmem>>, vector<16x128xf32>
    tpu.vector_store %arg22[%c224_123, %c0_124], %346 {strides = array<i32>} : memref<256x128xf32, #tpu.memory_space<vmem>>, vector<16x128xf32>,
    %348 = vector.extract_strided_slice %177 {offsets = [15, 0], sizes = [1, 128], strides = [1, 1]} : vector<16x128xf32> to vector<1x128xf32>
    %349 = vector.broadcast %348 : vector<1x128xf32> to vector<16x128xf32>
    %350 = arith.mulf %349, %1 : vector<16x128xf32>
    %351 = math.exp %350 : vector<16x128xf32>
    %c240 = arith.constant 240 : index
    %c0_125 = arith.constant 0 : index
    %352 = vector.load %arg21[%c240, %c0_125] : memref<256x128xf32, #tpu.memory_space<vmem>>, vector<16x128xf32>
    tpu.vector_store %arg21[%c240, %c0_125], %351 {strides = array<i32>} : memref<256x128xf32, #tpu.memory_space<vmem>>, vector<16x128xf32>,
    %353 = vector.extract_strided_slice %182 {offsets = [15, 0], sizes = [1, 128], strides = [1, 1]} : vector<16x128xf32> to vector<1x128xf32>
    %354 = vector.extract_strided_slice %179 {offsets = [0, 15], sizes = [16, 1], strides = [1, 1]} : vector<16x16xf32> to vector<16x1xf32>
    %355 = vector.broadcast %353 : vector<1x128xf32> to vector<16x128xf32>
    %356 = vector.broadcast %354 : vector<16x1xf32> to vector<16x128xf32>
    %357 = arith.mulf %355, %356 : vector<16x128xf32>
    %c240_126 = arith.constant 240 : index
    %c0_127 = arith.constant 0 : index
    %358 = vector.load %arg22[%c240_126, %c0_127] : memref<256x128xf32, #tpu.memory_space<vmem>>, vector<16x128xf32>
    tpu.vector_store %arg22[%c240_126, %c0_127], %357 {strides = array<i32>} : memref<256x128xf32, #tpu.memory_space<vmem>>, vector<16x128xf32>,
    %cst_128 = arith.constant 0.000000e+00 : f32
    %359 = vector.broadcast %cst_128 : f32 to vector<16x128xf32>
    %c0_129 = arith.constant 0 : index
    %c0_130 = arith.constant 0 : index
    %360 = vector.load %arg21[%c0_129, %c0_130] : memref<256x128xf32, #tpu.memory_space<vmem>>, vector<16x128xf32>
    %361 = arith.mulf %360, %359 : vector<16x128xf32>
    %c0_131 = arith.constant 0 : index
    %c0_132 = arith.constant 0 : index
    %362 = vector.load %arg22[%c0_131, %c0_132] : memref<256x128xf32, #tpu.memory_space<vmem>>, vector<16x128xf32>
    %363 = arith.addf %361, %362 : vector<16x128xf32>
    %c0_133 = arith.constant 0 : index
    %c0_134 = arith.constant 0 : index
    %364 = vector.load %arg23[%c0_133, %c0_134] : memref<256x128xf32, #tpu.memory_space<vmem>>, vector<16x128xf32>
    tpu.vector_store %arg23[%c0_133, %c0_134], %363 {strides = array<i32>} : memref<256x128xf32, #tpu.memory_space<vmem>>, vector<16x128xf32>,
    %c16_135 = arith.constant 16 : index
    %c0_136 = arith.constant 0 : index
    %365 = vector.load %arg21[%c16_135, %c0_136] : memref<256x128xf32, #tpu.memory_space<vmem>>, vector<16x128xf32>
    %366 = arith.mulf %365, %363 : vector<16x128xf32>
    %c16_137 = arith.constant 16 : index
    %c0_138 = arith.constant 0 : index
    %367 = vector.load %arg22[%c16_137, %c0_138] : memref<256x128xf32, #tpu.memory_space<vmem>>, vector<16x128xf32>
    %368 = arith.addf %366, %367 : vector<16x128xf32>
    %c16_139 = arith.constant 16 : index
    %c0_140 = arith.constant 0 : index
    %369 = vector.load %arg23[%c16_139, %c0_140] : memref<256x128xf32, #tpu.memory_space<vmem>>, vector<16x128xf32>
    tpu.vector_store %arg23[%c16_139, %c0_140], %368 {strides = array<i32>} : memref<256x128xf32, #tpu.memory_space<vmem>>, vector<16x128xf32>,
    %c32_141 = arith.constant 32 : index
    %c0_142 = arith.constant 0 : index
    %370 = vector.load %arg21[%c32_141, %c0_142] : memref<256x128xf32, #tpu.memory_space<vmem>>, vector<16x128xf32>
    %371 = arith.mulf %370, %368 : vector<16x128xf32>
    %c32_143 = arith.constant 32 : index
    %c0_144 = arith.constant 0 : index
    %372 = vector.load %arg22[%c32_143, %c0_144] : memref<256x128xf32, #tpu.memory_space<vmem>>, vector<16x128xf32>
    %373 = arith.addf %371, %372 : vector<16x128xf32>
    %c32_145 = arith.constant 32 : index
    %c0_146 = arith.constant 0 : index
    %374 = vector.load %arg23[%c32_145, %c0_146] : memref<256x128xf32, #tpu.memory_space<vmem>>, vector<16x128xf32>
    tpu.vector_store %arg23[%c32_145, %c0_146], %373 {strides = array<i32>} : memref<256x128xf32, #tpu.memory_space<vmem>>, vector<16x128xf32>,
    %c48_147 = arith.constant 48 : index
    %c0_148 = arith.constant 0 : index
    %375 = vector.load %arg21[%c48_147, %c0_148] : memref<256x128xf32, #tpu.memory_space<vmem>>, vector<16x128xf32>
    %376 = arith.mulf %375, %373 : vector<16x128xf32>
    %c48_149 = arith.constant 48 : index
    %c0_150 = arith.constant 0 : index
    %377 = vector.load %arg22[%c48_149, %c0_150] : memref<256x128xf32, #tpu.memory_space<vmem>>, vector<16x128xf32>
    %378 = arith.addf %376, %377 : vector<16x128xf32>
    %c48_151 = arith.constant 48 : index
    %c0_152 = arith.constant 0 : index
    %379 = vector.load %arg23[%c48_151, %c0_152] : memref<256x128xf32, #tpu.memory_space<vmem>>, vector<16x128xf32>
    tpu.vector_store %arg23[%c48_151, %c0_152], %378 {strides = array<i32>} : memref<256x128xf32, #tpu.memory_space<vmem>>, vector<16x128xf32>,
    %c64_153 = arith.constant 64 : index
    %c0_154 = arith.constant 0 : index
    %380 = vector.load %arg21[%c64_153, %c0_154] : memref<256x128xf32, #tpu.memory_space<vmem>>, vector<16x128xf32>
    %381 = arith.mulf %380, %378 : vector<16x128xf32>
    %c64_155 = arith.constant 64 : index
    %c0_156 = arith.constant 0 : index
    %382 = vector.load %arg22[%c64_155, %c0_156] : memref<256x128xf32, #tpu.memory_space<vmem>>, vector<16x128xf32>
    %383 = arith.addf %381, %382 : vector<16x128xf32>
    %c64_157 = arith.constant 64 : index
    %c0_158 = arith.constant 0 : index
    %384 = vector.load %arg23[%c64_157, %c0_158] : memref<256x128xf32, #tpu.memory_space<vmem>>, vector<16x128xf32>
    tpu.vector_store %arg23[%c64_157, %c0_158], %383 {strides = array<i32>} : memref<256x128xf32, #tpu.memory_space<vmem>>, vector<16x128xf32>,
    %c80_159 = arith.constant 80 : index
    %c0_160 = arith.constant 0 : index
    %385 = vector.load %arg21[%c80_159, %c0_160] : memref<256x128xf32, #tpu.memory_space<vmem>>, vector<16x128xf32>
    %386 = arith.mulf %385, %383 : vector<16x128xf32>
    %c80_161 = arith.constant 80 : index
    %c0_162 = arith.constant 0 : index
    %387 = vector.load %arg22[%c80_161, %c0_162] : memref<256x128xf32, #tpu.memory_space<vmem>>, vector<16x128xf32>
    %388 = arith.addf %386, %387 : vector<16x128xf32>
    %c80_163 = arith.constant 80 : index
    %c0_164 = arith.constant 0 : index
    %389 = vector.load %arg23[%c80_163, %c0_164] : memref<256x128xf32, #tpu.memory_space<vmem>>, vector<16x128xf32>
    tpu.vector_store %arg23[%c80_163, %c0_164], %388 {strides = array<i32>} : memref<256x128xf32, #tpu.memory_space<vmem>>, vector<16x128xf32>,
    %c96_165 = arith.constant 96 : index
    %c0_166 = arith.constant 0 : index
    %390 = vector.load %arg21[%c96_165, %c0_166] : memref<256x128xf32, #tpu.memory_space<vmem>>, vector<16x128xf32>
    %391 = arith.mulf %390, %388 : vector<16x128xf32>
    %c96_167 = arith.constant 96 : index
    %c0_168 = arith.constant 0 : index
    %392 = vector.load %arg22[%c96_167, %c0_168] : memref<256x128xf32, #tpu.memory_space<vmem>>, vector<16x128xf32>
    %393 = arith.addf %391, %392 : vector<16x128xf32>
    %c96_169 = arith.constant 96 : index
    %c0_170 = arith.constant 0 : index
    %394 = vector.load %arg23[%c96_169, %c0_170] : memref<256x128xf32, #tpu.memory_space<vmem>>, vector<16x128xf32>
    tpu.vector_store %arg23[%c96_169, %c0_170], %393 {strides = array<i32>} : memref<256x128xf32, #tpu.memory_space<vmem>>, vector<16x128xf32>,
    %c112_171 = arith.constant 112 : index
    %c0_172 = arith.constant 0 : index
    %395 = vector.load %arg21[%c112_171, %c0_172] : memref<256x128xf32, #tpu.memory_space<vmem>>, vector<16x128xf32>
    %396 = arith.mulf %395, %393 : vector<16x128xf32>
    %c112_173 = arith.constant 112 : index
    %c0_174 = arith.constant 0 : index
    %397 = vector.load %arg22[%c112_173, %c0_174] : memref<256x128xf32, #tpu.memory_space<vmem>>, vector<16x128xf32>
    %398 = arith.addf %396, %397 : vector<16x128xf32>
    %c112_175 = arith.constant 112 : index
    %c0_176 = arith.constant 0 : index
    %399 = vector.load %arg23[%c112_175, %c0_176] : memref<256x128xf32, #tpu.memory_space<vmem>>, vector<16x128xf32>
    tpu.vector_store %arg23[%c112_175, %c0_176], %398 {strides = array<i32>} : memref<256x128xf32, #tpu.memory_space<vmem>>, vector<16x128xf32>,
    %c128_177 = arith.constant 128 : index
    %c0_178 = arith.constant 0 : index
    %400 = vector.load %arg21[%c128_177, %c0_178] : memref<256x128xf32, #tpu.memory_space<vmem>>, vector<16x128xf32>
    %401 = arith.mulf %400, %398 : vector<16x128xf32>
    %c128_179 = arith.constant 128 : index
    %c0_180 = arith.constant 0 : index
    %402 = vector.load %arg22[%c128_179, %c0_180] : memref<256x128xf32, #tpu.memory_space<vmem>>, vector<16x128xf32>
    %403 = arith.addf %401, %402 : vector<16x128xf32>
    %c128_181 = arith.constant 128 : index
    %c0_182 = arith.constant 0 : index
    %404 = vector.load %arg23[%c128_181, %c0_182] : memref<256x128xf32, #tpu.memory_space<vmem>>, vector<16x128xf32>
    tpu.vector_store %arg23[%c128_181, %c0_182], %403 {strides = array<i32>} : memref<256x128xf32, #tpu.memory_space<vmem>>, vector<16x128xf32>,
    %c144_183 = arith.constant 144 : index
    %c0_184 = arith.constant 0 : index
    %405 = vector.load %arg21[%c144_183, %c0_184] : memref<256x128xf32, #tpu.memory_space<vmem>>, vector<16x128xf32>
    %406 = arith.mulf %405, %403 : vector<16x128xf32>
    %c144_185 = arith.constant 144 : index
    %c0_186 = arith.constant 0 : index
    %407 = vector.load %arg22[%c144_185, %c0_186] : memref<256x128xf32, #tpu.memory_space<vmem>>, vector<16x128xf32>
    %408 = arith.addf %406, %407 : vector<16x128xf32>
    %c144_187 = arith.constant 144 : index
    %c0_188 = arith.constant 0 : index
    %409 = vector.load %arg23[%c144_187, %c0_188] : memref<256x128xf32, #tpu.memory_space<vmem>>, vector<16x128xf32>
    tpu.vector_store %arg23[%c144_187, %c0_188], %408 {strides = array<i32>} : memref<256x128xf32, #tpu.memory_space<vmem>>, vector<16x128xf32>,
    %c160_189 = arith.constant 160 : index
    %c0_190 = arith.constant 0 : index
    %410 = vector.load %arg21[%c160_189, %c0_190] : memref<256x128xf32, #tpu.memory_space<vmem>>, vector<16x128xf32>
    %411 = arith.mulf %410, %408 : vector<16x128xf32>
    %c160_191 = arith.constant 160 : index
    %c0_192 = arith.constant 0 : index
    %412 = vector.load %arg22[%c160_191, %c0_192] : memref<256x128xf32, #tpu.memory_space<vmem>>, vector<16x128xf32>
    %413 = arith.addf %411, %412 : vector<16x128xf32>
    %c160_193 = arith.constant 160 : index
    %c0_194 = arith.constant 0 : index
    %414 = vector.load %arg23[%c160_193, %c0_194] : memref<256x128xf32, #tpu.memory_space<vmem>>, vector<16x128xf32>
    tpu.vector_store %arg23[%c160_193, %c0_194], %413 {strides = array<i32>} : memref<256x128xf32, #tpu.memory_space<vmem>>, vector<16x128xf32>,
    %c176_195 = arith.constant 176 : index
    %c0_196 = arith.constant 0 : index
    %415 = vector.load %arg21[%c176_195, %c0_196] : memref<256x128xf32, #tpu.memory_space<vmem>>, vector<16x128xf32>
    %416 = arith.mulf %415, %413 : vector<16x128xf32>
    %c176_197 = arith.constant 176 : index
    %c0_198 = arith.constant 0 : index
    %417 = vector.load %arg22[%c176_197, %c0_198] : memref<256x128xf32, #tpu.memory_space<vmem>>, vector<16x128xf32>
    %418 = arith.addf %416, %417 : vector<16x128xf32>
    %c176_199 = arith.constant 176 : index
    %c0_200 = arith.constant 0 : index
    %419 = vector.load %arg23[%c176_199, %c0_200] : memref<256x128xf32, #tpu.memory_space<vmem>>, vector<16x128xf32>
    tpu.vector_store %arg23[%c176_199, %c0_200], %418 {strides = array<i32>} : memref<256x128xf32, #tpu.memory_space<vmem>>, vector<16x128xf32>,
    %c192_201 = arith.constant 192 : index
    %c0_202 = arith.constant 0 : index
    %420 = vector.load %arg21[%c192_201, %c0_202] : memref<256x128xf32, #tpu.memory_space<vmem>>, vector<16x128xf32>
    %421 = arith.mulf %420, %418 : vector<16x128xf32>
    %c192_203 = arith.constant 192 : index
    %c0_204 = arith.constant 0 : index
    %422 = vector.load %arg22[%c192_203, %c0_204] : memref<256x128xf32, #tpu.memory_space<vmem>>, vector<16x128xf32>
    %423 = arith.addf %421, %422 : vector<16x128xf32>
    %c192_205 = arith.constant 192 : index
    %c0_206 = arith.constant 0 : index
    %424 = vector.load %arg23[%c192_205, %c0_206] : memref<256x128xf32, #tpu.memory_space<vmem>>, vector<16x128xf32>
    tpu.vector_store %arg23[%c192_205, %c0_206], %423 {strides = array<i32>} : memref<256x128xf32, #tpu.memory_space<vmem>>, vector<16x128xf32>,
    %c208_207 = arith.constant 208 : index
    %c0_208 = arith.constant 0 : index
    %425 = vector.load %arg21[%c208_207, %c0_208] : memref<256x128xf32, #tpu.memory_space<vmem>>, vector<16x128xf32>
    %426 = arith.mulf %425, %423 : vector<16x128xf32>
    %c208_209 = arith.constant 208 : index
    %c0_210 = arith.constant 0 : index
    %427 = vector.load %arg22[%c208_209, %c0_210] : memref<256x128xf32, #tpu.memory_space<vmem>>, vector<16x128xf32>
    %428 = arith.addf %426, %427 : vector<16x128xf32>
    %c208_211 = arith.constant 208 : index
    %c0_212 = arith.constant 0 : index
    %429 = vector.load %arg23[%c208_211, %c0_212] : memref<256x128xf32, #tpu.memory_space<vmem>>, vector<16x128xf32>
    tpu.vector_store %arg23[%c208_211, %c0_212], %428 {strides = array<i32>} : memref<256x128xf32, #tpu.memory_space<vmem>>, vector<16x128xf32>,
    %c224_213 = arith.constant 224 : index
    %c0_214 = arith.constant 0 : index
    %430 = vector.load %arg21[%c224_213, %c0_214] : memref<256x128xf32, #tpu.memory_space<vmem>>, vector<16x128xf32>
    %431 = arith.mulf %430, %428 : vector<16x128xf32>
    %c224_215 = arith.constant 224 : index
    %c0_216 = arith.constant 0 : index
    %432 = vector.load %arg22[%c224_215, %c0_216] : memref<256x128xf32, #tpu.memory_space<vmem>>, vector<16x128xf32>
    %433 = arith.addf %431, %432 : vector<16x128xf32>
    %c224_217 = arith.constant 224 : index
    %c0_218 = arith.constant 0 : index
    %434 = vector.load %arg23[%c224_217, %c0_218] : memref<256x128xf32, #tpu.memory_space<vmem>>, vector<16x128xf32>
    tpu.vector_store %arg23[%c224_217, %c0_218], %433 {strides = array<i32>} : memref<256x128xf32, #tpu.memory_space<vmem>>, vector<16x128xf32>,
    %c240_219 = arith.constant 240 : index
    %c0_220 = arith.constant 0 : index
    %435 = vector.load %arg21[%c240_219, %c0_220] : memref<256x128xf32, #tpu.memory_space<vmem>>, vector<16x128xf32>
    %436 = arith.mulf %435, %433 : vector<16x128xf32>
    %c240_221 = arith.constant 240 : index
    %c0_222 = arith.constant 0 : index
    %437 = vector.load %arg22[%c240_221, %c0_222] : memref<256x128xf32, #tpu.memory_space<vmem>>, vector<16x128xf32>
    %438 = arith.addf %436, %437 : vector<16x128xf32>
    %c240_223 = arith.constant 240 : index
    %c0_224 = arith.constant 0 : index
    %439 = vector.load %arg23[%c240_223, %c0_224] : memref<256x128xf32, #tpu.memory_space<vmem>>, vector<16x128xf32>
    tpu.vector_store %arg23[%c240_223, %c0_224], %438 {strides = array<i32>} : memref<256x128xf32, #tpu.memory_space<vmem>>, vector<16x128xf32>,
    %440 = tpu.concatenate %181, %181, %181, %181, %181, %181, %181, %181, %181, %181, %181, %181, %181, %181, %181, %181 in 1 : vector<16x16xf32>, vector<16x16xf32>, vector<16x16xf32>, vector<16x16xf32>, vector<16x16xf32>, vector<16x16xf32>, vector<16x16xf32>, vector<16x16xf32>, vector<16x16xf32>, vector<16x16xf32>, vector<16x16xf32>, vector<16x16xf32>, vector<16x16xf32>, vector<16x16xf32>, vector<16x16xf32>, vector<16x16xf32> -> vector<16x256xf32>
    %cst_225 = arith.constant 0.000000e+00 : f32
    %441 = vector.broadcast %cst_225 : f32 to vector<16x256xf32>
    %442 = arith.select %11, %440, %441 : vector<16x256xi1>, vector<16x256xf32>
    %c0_226 = arith.constant 0 : index
    %c0_227 = arith.constant 0 : index
    %443 = vector.load %arg23[%c0_226, %c0_227] : memref<256x128xf32, #tpu.memory_space<vmem>>, vector<256x128xf32>
    %cst_228 = arith.constant dense<0.000000e+00> : vector<16x128xf32>
    %444 = tpu.matmul %442, %443, %cst_228 {dimension_numbers = #tpu.dot_dimension_numbers<[1], [0], [0], [1], [0, 0, 1, 1], [], []>} : vector<16x256xf32>, vector<256x128xf32>, vector<16x128xf32> -> vector<16x128xf32>
    %c0_229 = arith.constant 0 : index
    %c0_230 = arith.constant 0 : index
    %445 = vector.load %arg18[%c0_229, %c0_230] : memref<1x128xf32, #tpu.memory_space<vmem>>, vector<1x128xf32>
    %446 = vector.broadcast %445 : vector<1x128xf32> to vector<16x128xf32>
    %447 = arith.mulf %446, %162 : vector<16x128xf32>
    %448 = arith.addf %444, %447 : vector<16x128xf32>
    %cst_231 = arith.constant 5.000000e-01 : f32
    %449 = vector.broadcast %cst_231 : f32 to vector<16x128xf32>
    %450 = arith.mulf %449, %127 : vector<16x128xf32>
    %451 = math.tanh %450 : vector<16x128xf32>
    %cst_232 = arith.constant 5.000000e-01 : f32
    %452 = vector.broadcast %cst_232 : f32 to vector<16x128xf32>
    %453 = arith.mulf %452, %451 : vector<16x128xf32>
    %cst_233 = arith.constant 5.000000e-01 : f32
    %454 = vector.broadcast %cst_233 : f32 to vector<16x128xf32>
    %455 = arith.addf %453, %454 : vector<16x128xf32>
    %456 = arith.mulf %127, %455 : vector<16x128xf32>
    %457 = arith.mulf %448, %456 : vector<16x128xf32>
    %c0_234 = arith.constant 0 : index
    %c0_235 = arith.constant 0 : index
    %458 = vector.load %arg19[%c0_234, %c0_235] : memref<128x64xf32, #tpu.memory_space<vmem>>, vector<128x64xf32>
    %cst_236 = arith.constant dense<0.000000e+00> : vector<16x64xf32>
    %459 = tpu.matmul %457, %458, %cst_236 {dimension_numbers = #tpu.dot_dimension_numbers<[1], [0], [0], [1], [0, 0, 1, 1], [], []>} : vector<16x128xf32>, vector<128x64xf32>, vector<16x64xf32> -> vector<16x64xf32>
    %460 = arith.addf %123, %459 : vector<16x64xf32>
    %c0_237 = arith.constant 0 : index
    %c0_238 = arith.constant 0 : index
    %461 = vector.load %arg8[%c0_237, %c0_238] : memref<1x64xf32, #tpu.memory_space<vmem>>, vector<1x64xf32>
    %c0_239 = arith.constant 0 : index
    %c0_240 = arith.constant 0 : index
    %462 = vector.load %arg9[%c0_239, %c0_240] : memref<1x64xf32, #tpu.memory_space<vmem>>, vector<1x64xf32>
    %cst_241 = arith.constant dense<0.000000e+00> : vector<16xf32>
    %463 = vector.multi_reduction <add>, %460, %cst_241 [1] : vector<16x64xf32> to vector<16xf32>
    %464 = vector.shape_cast %463 : vector<16xf32> to vector<16x1xf32>
    %cst_242 = arith.constant 6.400000e+01 : f32
    %465 = vector.broadcast %cst_242 : f32 to vector<16x1xf32>
    %466 = arith.divf %464, %465 : vector<16x1xf32>
    %467 = vector.broadcast %466 : vector<16x1xf32> to vector<16x64xf32>
    %468 = arith.subf %460, %467 : vector<16x64xf32>
    %469 = arith.mulf %468, %468 : vector<16x64xf32>
    %cst_243 = arith.constant dense<0.000000e+00> : vector<16xf32>
    %470 = vector.multi_reduction <add>, %469, %cst_243 [1] : vector<16x64xf32> to vector<16xf32>
    %471 = vector.shape_cast %470 : vector<16xf32> to vector<16x1xf32>
    %cst_244 = arith.constant 6.400000e+01 : f32
    %472 = vector.broadcast %cst_244 : f32 to vector<16x1xf32>
    %473 = arith.divf %471, %472 : vector<16x1xf32>
    %cst_245 = arith.constant 9.99999974E-6 : f32
    %474 = vector.broadcast %cst_245 : f32 to vector<16x1xf32>
    %475 = arith.addf %473, %474 : vector<16x1xf32>
    %476 = math.rsqrt %475 : vector<16x1xf32>
    %477 = vector.broadcast %476 : vector<16x1xf32> to vector<16x64xf32>
    %478 = arith.mulf %468, %477 : vector<16x64xf32>
    %479 = vector.broadcast %461 : vector<1x64xf32> to vector<16x64xf32>
    %480 = arith.mulf %478, %479 : vector<16x64xf32>
    %481 = vector.broadcast %462 : vector<1x64xf32> to vector<16x64xf32>
    %482 = arith.addf %480, %481 : vector<16x64xf32>
    %c0_246 = arith.constant 0 : index
    %c0_247 = arith.constant 0 : index
    %c0_248 = arith.constant 0 : index
    %483 = vector.load %arg20[%c0_246, %c0_247, %c0_248] : memref<1x16x64xf32, #tpu.memory_space<vmem>>, vector<1x16x64xf32>
    %484 = vector.shape_cast %483 : vector<1x16x64xf32> to vector<16x64xf32>
    %485 = vector.shape_cast %482 : vector<16x64xf32> to vector<1x16x64xf32>
    tpu.vector_store %arg20[%c0_246, %c0_247, %c0_248], %485 {strides = array<i32>} : memref<1x16x64xf32, #tpu.memory_space<vmem>>, vector<1x16x64xf32>,
    return
  }
  func.func @transform_0(%arg0: i32) -> (i32, i32, i32) {
    %c0_i32 = arith.constant 0 : i32
    %c0_i32_0 = arith.constant 0 : i32
    %c0_i32_1 = arith.constant 0 : i32
    return %arg0, %c0_i32, %c0_i32_0 : i32, i32, i32
  }
  func.func @transform_1(%arg0: i32) -> (i32, i32) {
    %c0_i32 = arith.constant 0 : i32
    %c0_i32_0 = arith.constant 0 : i32
    %c0_i32_1 = arith.constant 0 : i32
    return %c0_i32, %c0_i32_0 : i32, i32
  }
  func.func @transform_2(%arg0: i32) -> (i32, i32) {
    %c0_i32 = arith.constant 0 : i32
    %c0_i32_0 = arith.constant 0 : i32
    %c0_i32_1 = arith.constant 0 : i32
    return %c0_i32, %c0_i32_0 : i32, i32
  }
  func.func @transform_3(%arg0: i32) -> (i32, i32) {
    %c0_i32 = arith.constant 0 : i32
    %c0_i32_0 = arith.constant 0 : i32
    %c0_i32_1 = arith.constant 0 : i32
    return %c0_i32, %c0_i32_0 : i32, i32
  }
  func.func @transform_4(%arg0: i32) -> (i32, i32) {
    %c0_i32 = arith.constant 0 : i32
    %c0_i32_0 = arith.constant 0 : i32
    %c0_i32_1 = arith.constant 0 : i32
    return %c0_i32, %c0_i32_0 : i32, i32
  }
  func.func @transform_5(%arg0: i32) -> (i32, i32) {
    %c0_i32 = arith.constant 0 : i32
    %c0_i32_0 = arith.constant 0 : i32
    %c0_i32_1 = arith.constant 0 : i32
    return %c0_i32, %c0_i32_0 : i32, i32
  }
  func.func @transform_6(%arg0: i32) -> (i32, i32) {
    %c0_i32 = arith.constant 0 : i32
    %c0_i32_0 = arith.constant 0 : i32
    %c0_i32_1 = arith.constant 0 : i32
    return %c0_i32, %c0_i32_0 : i32, i32
  }
  func.func @transform_7(%arg0: i32) -> (i32, i32) {
    %c0_i32 = arith.constant 0 : i32
    %c0_i32_0 = arith.constant 0 : i32
    %c0_i32_1 = arith.constant 0 : i32
    return %c0_i32, %c0_i32_0 : i32, i32
  }
  func.func @transform_8(%arg0: i32) -> (i32, i32) {
    %c0_i32 = arith.constant 0 : i32
    %c0_i32_0 = arith.constant 0 : i32
    %c0_i32_1 = arith.constant 0 : i32
    return %c0_i32, %c0_i32_0 : i32, i32
  }
  func.func @transform_9(%arg0: i32) -> (i32, i32) {
    %c0_i32 = arith.constant 0 : i32
    %c0_i32_0 = arith.constant 0 : i32
    %c0_i32_1 = arith.constant 0 : i32
    return %c0_i32, %c0_i32_0 : i32, i32
  }
  func.func @transform_10(%arg0: i32) -> (i32, i32) {
    %c0_i32 = arith.constant 0 : i32
    %c0_i32_0 = arith.constant 0 : i32
    %c0_i32_1 = arith.constant 0 : i32
    return %c0_i32, %c0_i32_0 : i32, i32
  }
  func.func @transform_11(%arg0: i32) -> (i32, i32) {
    %c0_i32 = arith.constant 0 : i32
    %c0_i32_0 = arith.constant 0 : i32
    %c0_i32_1 = arith.constant 0 : i32
    return %c0_i32, %c0_i32_0 : i32, i32
  }
  func.func @transform_12(%arg0: i32) -> (i32, i32) {
    %c0_i32 = arith.constant 0 : i32
    %c0_i32_0 = arith.constant 0 : i32
    %c0_i32_1 = arith.constant 0 : i32
    return %c0_i32, %c0_i32_0 : i32, i32
  }
  func.func @transform_13(%arg0: i32) -> (i32, i32) {
    %c0_i32 = arith.constant 0 : i32
    %c0_i32_0 = arith.constant 0 : i32
    %c0_i32_1 = arith.constant 0 : i32
    return %c0_i32, %c0_i32_0 : i32, i32
  }
  func.func @transform_14(%arg0: i32) -> (i32, i32) {
    %c0_i32 = arith.constant 0 : i32
    %c0_i32_0 = arith.constant 0 : i32
    %c0_i32_1 = arith.constant 0 : i32
    return %c0_i32, %c0_i32_0 : i32, i32
  }
  func.func @transform_15(%arg0: i32) -> (i32, i32) {
    %c0_i32 = arith.constant 0 : i32
    %c0_i32_0 = arith.constant 0 : i32
    %c0_i32_1 = arith.constant 0 : i32
    return %c0_i32, %c0_i32_0 : i32, i32
  }
  func.func @transform_16(%arg0: i32) -> (i32, i32) {
    %c0_i32 = arith.constant 0 : i32
    %c0_i32_0 = arith.constant 0 : i32
    %c0_i32_1 = arith.constant 0 : i32
    return %c0_i32, %c0_i32_0 : i32, i32
  }
  func.func @transform_17(%arg0: i32) -> (i32, i32) {
    %c0_i32 = arith.constant 0 : i32
    %c0_i32_0 = arith.constant 0 : i32
    %c0_i32_1 = arith.constant 0 : i32
    return %c0_i32, %c0_i32_0 : i32, i32
  }
  func.func @transform_18(%arg0: i32) -> (i32, i32) {
    %c0_i32 = arith.constant 0 : i32
    %c0_i32_0 = arith.constant 0 : i32
    %c0_i32_1 = arith.constant 0 : i32
    return %c0_i32, %c0_i32_0 : i32, i32
  }
  func.func @transform_19(%arg0: i32) -> (i32, i32, i32) {
    %c0_i32 = arith.constant 0 : i32
    %c0_i32_0 = arith.constant 0 : i32
    %c0_i32_1 = arith.constant 0 : i32
    return %arg0, %c0_i32, %c0_i32_0 : i32, i32, i32
  }
}

</mosaic_0001>

<llo_original>
// kernel: am_layer_forward.1
$region0: #{am_layer_forward.1}
  #allocation0 [shape = 'u32[]', space=smem, size = 0x4, offset = 0x4, fixed_abs, tag = 'smem constant byte address 0x4 - core index']
  #allocation1 [shape = 'u32[144,128]{1,0:T(1,128)}', space=vmem, size = 0x12000, scoped, tag = 'internal scratch']
  #allocation2 [shape = 'f32[256,128]{1,0:T(8,128)}', space=vmem, size = 0x20000, scoped, tag = 'scratch operand']
  #allocation3 [shape = 'f32[256,128]{1,0:T(8,128)}', space=vmem, size = 0x20000, scoped, tag = 'scratch operand']
  #allocation4 [shape = 'f32[256,128]{1,0:T(8,128)}', space=vmem, size = 0x20000, scoped, tag = 'scratch operand']
  %s0 = inlined_call_operand.hbm [shape: f32[2,16,64], index: 0, kind: input, shape index: {}]
  %s1 = inlined_call_operand.vmem [shape: f32[64,192], index: 1, kind: input, shape index: {}]
  %s2 = inlined_call_operand.vmem [shape: f32[1,192], index: 2, kind: input, shape index: {}]
  %s3 = inlined_call_operand.hbm [shape: f32[64,64], index: 3, kind: input, shape index: {}]
  %s4 = inlined_call_operand.vmem [shape: f32[1,64], index: 4, kind: input, shape index: {}]
  %s5 = inlined_call_operand.hbm [shape: f32[1,64], index: 5, kind: input, shape index: {}]
  %s6 = inlined_call_operand.hbm [shape: f32[1,64], index: 6, kind: input, shape index: {}]
  %s7 = inlined_call_operand.hbm [shape: f32[1,64], index: 7, kind: input, shape index: {}]
  %s8 = inlined_call_operand.hbm [shape: f32[1,64], index: 8, kind: input, shape index: {}]
  %s9 = inlined_call_operand.vmem [shape: f32[64,256], index: 9, kind: input, shape index: {}]
  %s10 = inlined_call_operand.vmem [shape: f32[4,128], index: 10, kind: input, shape index: {}]
  %s11 = inlined_call_operand.hbm [shape: f32[1,128], index: 11, kind: input, shape index: {}]
  %s12 = inlined_call_operand.hbm [shape: f32[128,128], index: 12, kind: input, shape index: {}]
  %s13 = inlined_call_operand.hbm [shape: f32[1,128], index: 13, kind: input, shape index: {}]
  %s14 = inlined_call_operand.vmem [shape: f32[16,128], index: 14, kind: input, shape index: {}]
  %s15 = inlined_call_operand.vmem [shape: f32[128,16], index: 15, kind: input, shape index: {}]
  %s16 = inlined_call_operand.hbm [shape: f32[16,128], index: 16, kind: input, shape index: {}]
  %s17 = inlined_call_operand.hbm [shape: f32[1,128], index: 17, kind: input, shape index: {}]
  %s18 = inlined_call_operand.vmem [shape: f32[128,64], index: 18, kind: input, shape index: {}]
  %s19 = inlined_call_operand.hbm [shape: f32[2,16,64], index: 19, kind: output, shape index: {}]
  %s20 = sld [smem:[#allocation0]]
  $region153: #{am_layer_forward.1} parent=0
    _
  %s22 = ssub.s32 1, %s20
  %s23 = scalar_select 0, %s22, %s20
  $region1: #{am_layer_forward.1} parent=0
    #allocation5 [shape = 'u8[16384]{0}', space=vmem, size = 0x4000, scoped, tag = 'input window, operand 0']
    #allocation6 [shape = 's32[2]{0}', space=sflag, size = 0x8, scoped, tag = 'scoped memory for am_layer_forward.1']
    #allocation7 [shape = 's32[2]{0}', space=sflag, size = 0x8, scoped, tag = 'scoped memory for am_layer_forward.1']
    #allocation8 [shape = 'u8[32768]{0}', space=vmem, size = 0x8000, scoped, tag = 'input window, operand 3, single buffered']
    #allocation9 [shape = 's32[1]{0}', space=sflag, size = 0x4, scoped, tag = 'scoped memory for am_layer_forward.1']
    #allocation10 [shape = 'u8[512]{0}', space=vmem, size = 0x400, scoped, tag = 'input window, operand 5, single buffered']
    #allocation11 [shape = 'u8[512]{0}', space=vmem, size = 0x400, scoped, tag = 'input window, operand 6, single buffered']
    #allocation12 [shape = 's32[1]{0}', space=sflag, size = 0x4, scoped, tag = 'scoped memory for am_layer_forward.1']
    #allocation13 [shape = 'u8[512]{0}', space=vmem, size = 0x400, scoped, tag = 'input window, operand 7, single buffered']
    #allocation14 [shape = 'u8[512]{0}', space=vmem, size = 0x400, scoped, tag = 'input window, operand 8, single buffered']
    #allocation15 [shape = 's32[1]{0}', space=sflag, size = 0x4, scoped, tag = 'scoped memory for am_layer_forward.1']
    #allocation16 [shape = 'u8[512]{0}', space=vmem, size = 0x400, scoped, tag = 'input window, operand 11, single buffered']
    #allocation17 [shape = 'u8[65536]{0}', space=vmem, size = 0x10000, scoped, tag = 'input window, operand 12, single buffered']
    #allocation18 [shape = 's32[1]{0}', space=sflag, size = 0x4, scoped, tag = 'scoped memory for am_layer_forward.1']
    #allocation19 [shape = 'u8[512]{0}', space=vmem, size = 0x400, scoped, tag = 'input window, operand 13, single buffered']
    #allocation20 [shape = 'u8[8192]{0}', space=vmem, size = 0x2000, scoped, tag = 'input window, operand 16, single buffered']
    #allocation21 [shape = 's32[1]{0}', space=sflag, size = 0x4, scoped, tag = 'scoped memory for am_layer_forward.1']
    #allocation22 [shape = 'u8[512]{0}', space=vmem, size = 0x400, scoped, tag = 'input window, operand 17, single buffered']
    #allocation23 [shape = 'u8[16384]{0}', space=vmem, size = 0x4000, scoped, tag = 'output window, operand 0']
    %24 = vsyncpa [#allocation6], 0
    %s25 = scalar_lea.sflag [#allocation6], 1
    %26 = vsyncpa %s25, 0
    %27 = vsyncpa [#allocation9], 0
    %28 = vsyncpa [#allocation12], 0
    %29 = vsyncpa [#allocation15], 0
    %30 = vsyncpa [#allocation18], 0
    %31 = vsyncpa [#allocation21], 0
    %32 = vsyncpa [#allocation7], 0
    %s33 = scalar_lea.sflag [#allocation7], 1
    %34 = vsyncpa %s33, 0
    loop: start=0, step=1, limit=4
    $region2: #{am_layer_forward.1} parent=1 // loop_pre_header
      _
    $region3: #{am_layer_forward.1} parent=1 // loop_header
      %s36 = sphi 0, %s40
      %p37 = scmp.ge.s32.totalorder %s36, 4
      %s46 = sphi 0, %s48
      %s49 = sphi 0, %s46
      %s50 = sphi 0, %s49
      %s66 = sphi 0, %s50
      %s70 = sphi 0, %s70
      %s72 = sphi 0, %s70
      %s73 = sphi 0, %s72
      %s87 = sphi 0, %s73
      %s91 = sphi 0, %s91
      %s93 = sphi 0, %s91
      %s94 = sphi 0, %s93
      %s108 = sphi 0, %s94
      %s112 = sphi 0, %s112
      %s114 = sphi 0, %s112
      %s115 = sphi 0, %s114
      %s129 = sphi 0, %s115
      %s133 = sphi 0, %s133
      %s135 = sphi 0, %s133
      %s136 = sphi 0, %s135
      %s150 = sphi 0, %s136
      %s154 = sphi 0, %s154
      %s156 = sphi 0, %s154
      %s157 = sphi 0, %s156
      %s171 = sphi 0, %s157
      %s175 = sphi 0, %s175
      %s177 = sphi 0, %s175
      %s178 = sphi 0, %s177
      %s192 = sphi 0, %s178
      %s196 = sphi 0, %s196
      %s198 = sphi 0, %s196
      %s199 = sphi 0, %s198
      %s213 = sphi 0, %s199
      %s217 = sphi 0, %s217
      %s219 = sphi 0, %s217
      %s220 = sphi 0, %s219
      %s234 = sphi 0, %s220
      %s238 = sphi 0, %s238
      %s240 = sphi 0, %s238
      %s241 = sphi 0, %s240
      %s255 = sphi 0, %s241
      %s259 = sphi 0, %s259
      %s261 = sphi 0, %s259
      %s262 = sphi 0, %s261
      %s276 = sphi 0, %s262
      %s280 = sphi 0, %s280
      %s282 = sphi 0, %s280
      %s283 = sphi 0, %s282
      %s297 = sphi 0, %s283
      %s301 = sphi 0, %s301
      %s303 = sphi 0, %s301
      %s304 = sphi 0, %s303
      %s318 = sphi 0, %s304
      %s322 = sphi 0, %s322
      %s324 = sphi 0, %s322
      %s325 = sphi 0, %s324
      %s339 = sphi 0, %s325
      %s343 = sphi 0, %s343
      %s345 = sphi 0, %s343
      %s346 = sphi 0, %s345
      %s360 = sphi 0, %s346
      %s364 = sphi 0, %s364
      %s366 = sphi 0, %s364
      %s367 = sphi 0, %s366
      %s381 = sphi 0, %s367
      %s385 = sphi 0, %s385
      %s387 = sphi 0, %s385
      %s388 = sphi 0, %s387
      %s402 = sphi 0, %s388
      %s406 = sphi 0, %s406
      %s408 = sphi 0, %s406
      %s409 = sphi 0, %s408
      %s423 = sphi 0, %s409
      %s427 = sphi 0, %s427
      %s429 = sphi 0, %s427
      %s430 = sphi 0, %s429
      %s444 = sphi 0, %s430
      %s450 = sphi 0, %s452
      %s453 = sphi 0, %s450
      %s454 = sphi 0, %s453
      %s470 = sphi 0, %s454
    $region4: #{am_layer_forward.1} parent=1 // loop_header_branch
      %39 = sbr.rel (%p37) target = $region8
    $region5: #{am_layer_forward.1} parent=1 // loop_body
      %s41 = ssub.s32 %s36, 1
      %s42 = ssub.s32 %s36, 2
      %s43 = sadd.s32 %s36, 1
      %s44 = ssub.s32 %s36, %s43
      %p45 = scmp.eq.s32.totalorder %s44, 0
      %s47 = sadd.s32 %s46, 1
      %s48 = scalar_select %p45, %s46, %s47
      %p51 = pneg %p45
      %p52 = scmp.eq.s32.totalorder %s36, 1
      %p53 = por %p51, %p52
      %p54 = scmp.ne.s32.totalorder %s46, %s49
      %p55 = scmp.eq.s32.totalorder %s36, 0
      %p56 = por %p54, %p55
      %p57 = scmp.ne.s32.totalorder %s46, %s49
      %p58 = scmp.eq.s32.totalorder %s41, 1
      %p59 = por %p57, %p58
      %p60 = scmp.ne.s32.totalorder %s49, %s50
      %p61 = scmp.eq.s32.totalorder %s41, 0
      %p62 = por %p60, %p61
      %p63 = scmp.ne.s32.totalorder %s49, %s50
      %p64 = scmp.eq.s32.totalorder %s42, 1
      %p65 = por %p63, %p64
      %p67 = scmp.ne.s32.totalorder %s50, %s66
      %p68 = scmp.eq.s32.totalorder %s42, 0
      %p69 = por %p67, %p68
      %s71 = sadd.s32 %s70, 1
      %p74 = scmp.eq.s32.totalorder %s36, 1
      %p75 = scmp.ne.s32.totalorder %s70, %s72
      %p76 = scmp.eq.s32.totalorder %s36, 0
      %p77 = por %p75, %p76
      %p78 = scmp.ne.s32.totalorder %s70, %s72
      %p79 = scmp.eq.s32.totalorder %s41, 1
      %p80 = por %p78, %p79
      %p81 = scmp.ne.s32.totalorder %s72, %s73
      %p82 = scmp.eq.s32.totalorder %s41, 0
      %p83 = por %p81, %p82
      %p84 = scmp.ne.s32.totalorder %s72, %s73
      %p85 = scmp.eq.s32.totalorder %s42, 1
      %p86 = por %p84, %p85
      %p88 = scmp.ne.s32.totalorder %s73, %s87
      %p89 = scmp.eq.s32.totalorder %s42, 0
      %p90 = por %p88, %p89
      %s92 = sadd.s32 %s91, 1
      %p95 = scmp.eq.s32.totalorder %s36, 1
      %p96 = scmp.ne.s32.totalorder %s91, %s93
      %p97 = scmp.eq.s32.totalorder %s36, 0
      %p98 = por %p96, %p97
      %p99 = scmp.ne.s32.totalorder %s91, %s93
      %p100 = scmp.eq.s32.totalorder %s41, 1
      %p101 = por %p99, %p100
      %p102 = scmp.ne.s32.totalorder %s93, %s94
      %p103 = scmp.eq.s32.totalorder %s41, 0
      %p104 = por %p102, %p103
      %p105 = scmp.ne.s32.totalorder %s93, %s94
      %p106 = scmp.eq.s32.totalorder %s42, 1
      %p107 = por %p105, %p106
      %p109 = scmp.ne.s32.totalorder %s94, %s108
      %p110 = scmp.eq.s32.totalorder %s42, 0
      %p111 = por %p109, %p110
      %s113 = sadd.s32 %s112, 1
      %p116 = scmp.eq.s32.totalorder %s36, 1
      %p117 = scmp.ne.s32.totalorder %s112, %s114
      %p118 = scmp.eq.s32.totalorder %s36, 0
      %p119 = por %p117, %p118
      %p120 = scmp.ne.s32.totalorder %s112, %s114
      %p121 = scmp.eq.s32.totalorder %s41, 1
      %p122 = por %p120, %p121
      %p123 = scmp.ne.s32.totalorder %s114, %s115
      %p124 = scmp.eq.s32.totalorder %s41, 0
      %p125 = por %p123, %p124
      %p126 = scmp.ne.s32.totalorder %s114, %s115
      %p127 = scmp.eq.s32.totalorder %s42, 1
      %p128 = por %p126, %p127
      %p130 = scmp.ne.s32.totalorder %s115, %s129
      %p131 = scmp.eq.s32.totalorder %s42, 0
      %p132 = por %p130, %p131
      %s134 = sadd.s32 %s133, 1
      %p137 = scmp.eq.s32.totalorder %s36, 1
      %p138 = scmp.ne.s32.totalorder %s133, %s135
      %p139 = scmp.eq.s32.totalorder %s36, 0
      %p140 = por %p138, %p139
      %p141 = scmp.ne.s32.totalorder %s133, %s135
      %p142 = scmp.eq.s32.totalorder %s41, 1
      %p143 = por %p141, %p142
      %p144 = scmp.ne.s32.totalorder %s135, %s136
      %p145 = scmp.eq.s32.totalorder %s41, 0
      %p146 = por %p144, %p145
      %p147 = scmp.ne.s32.totalorder %s135, %s136
      %p148 = scmp.eq.s32.totalorder %s42, 1
      %p149 = por %p147, %p148
      %p151 = scmp.ne.s32.totalorder %s136, %s150
      %p152 = scmp.eq.s32.totalorder %s42, 0
      %p153 = por %p151, %p152
      %s155 = sadd.s32 %s154, 1
      %p158 = scmp.eq.s32.totalorder %s36, 1
      %p159 = scmp.ne.s32.totalorder %s154, %s156
      %p160 = scmp.eq.s32.totalorder %s36, 0
      %p161 = por %p159, %p160
      %p162 = scmp.ne.s32.totalorder %s154, %s156
      %p163 = scmp.eq.s32.totalorder %s41, 1
      %p164 = por %p162, %p163
      %p165 = scmp.ne.s32.totalorder %s156, %s157
      %p166 = scmp.eq.s32.totalorder %s41, 0
      %p167 = por %p165, %p166
      %p168 = scmp.ne.s32.totalorder %s156, %s157
      %p169 = scmp.eq.s32.totalorder %s42, 1
      %p170 = por %p168, %p169
      %p172 = scmp.ne.s32.totalorder %s157, %s171
      %p173 = scmp.eq.s32.totalorder %s42, 0
      %p174 = por %p172, %p173
      %s176 = sadd.s32 %s175, 1
      %p179 = scmp.eq.s32.totalorder %s36, 1
      %p180 = scmp.ne.s32.totalorder %s175, %s177
      %p181 = scmp.eq.s32.totalorder %s36, 0
      %p182 = por %p180, %p181
      %p183 = scmp.ne.s32.totalorder %s175, %s177
      %p184 = scmp.eq.s32.totalorder %s41, 1
      %p185 = por %p183, %p184
      %p186 = scmp.ne.s32.totalorder %s177, %s178
      %p187 = scmp.eq.s32.totalorder %s41, 0
      %p188 = por %p186, %p187
      %p189 = scmp.ne.s32.totalorder %s177, %s178
      %p190 = scmp.eq.s32.totalorder %s42, 1
      %p191 = por %p189, %p190
      %p193 = scmp.ne.s32.totalorder %s178, %s192
      %p194 = scmp.eq.s32.totalorder %s42, 0
      %p195 = por %p193, %p194
      %s197 = sadd.s32 %s196, 1
      %p200 = scmp.eq.s32.totalorder %s36, 1
      %p201 = scmp.ne.s32.totalorder %s196, %s198
      %p202 = scmp.eq.s32.totalorder %s36, 0
      %p203 = por %p201, %p202
      %p204 = scmp.ne.s32.totalorder %s196, %s198
      %p205 = scmp.eq.s32.totalorder %s41, 1
      %p206 = por %p204, %p205
      %p207 = scmp.ne.s32.totalorder %s198, %s199
      %p208 = scmp.eq.s32.totalorder %s41, 0
      %p209 = por %p207, %p208
      %p210 = scmp.ne.s32.totalorder %s198, %s199
      %p211 = scmp.eq.s32.totalorder %s42, 1
      %p212 = por %p210, %p211
      %p214 = scmp.ne.s32.totalorder %s199, %s213
      %p215 = scmp.eq.s32.totalorder %s42, 0
      %p216 = por %p214, %p215
      %s218 = sadd.s32 %s217, 1
      %p221 = scmp.eq.s32.totalorder %s36, 1
      %p222 = scmp.ne.s32.totalorder %s217, %s219
      %p223 = scmp.eq.s32.totalorder %s36, 0
      %p224 = por %p222, %p223
      %p225 = scmp.ne.s32.totalorder %s217, %s219
      %p226 = scmp.eq.s32.totalorder %s41, 1
      %p227 = por %p225, %p226
      %p228 = scmp.ne.s32.totalorder %s219, %s220
      %p229 = scmp.eq.s32.totalorder %s41, 0
      %p230 = por %p228, %p229
      %p231 = scmp.ne.s32.totalorder %s219, %s220
      %p232 = scmp.eq.s32.totalorder %s42, 1
      %p233 = por %p231, %p232
      %p235 = scmp.ne.s32.totalorder %s220, %s234
      %p236 = scmp.eq.s32.totalorder %s42, 0
      %p237 = por %p235, %p236
      %s239 = sadd.s32 %s238, 1
      %p242 = scmp.eq.s32.totalorder %s36, 1
      %p243 = scmp.ne.s32.totalorder %s238, %s240
      %p244 = scmp.eq.s32.totalorder %s36, 0
      %p245 = por %p243, %p244
      %p246 = scmp.ne.s32.totalorder %s238, %s240
      %p247 = scmp.eq.s32.totalorder %s41, 1
      %p248 = por %p246, %p247
      %p249 = scmp.ne.s32.totalorder %s240, %s241
      %p250 = scmp.eq.s32.totalorder %s41, 0
      %p251 = por %p249, %p250
      %p252 = scmp.ne.s32.totalorder %s240, %s241
      %p253 = scmp.eq.s32.totalorder %s42, 1
      %p254 = por %p252, %p253
      %p256 = scmp.ne.s32.totalorder %s241, %s255
      %p257 = scmp.eq.s32.totalorder %s42, 0
      %p258 = por %p256, %p257
      %s260 = sadd.s32 %s259, 1
      %p263 = scmp.eq.s32.totalorder %s36, 1
      %p264 = scmp.ne.s32.totalorder %s259, %s261
      %p265 = scmp.eq.s32.totalorder %s36, 0
      %p266 = por %p264, %p265
      %p267 = scmp.ne.s32.totalorder %s259, %s261
      %p268 = scmp.eq.s32.totalorder %s41, 1
      %p269 = por %p267, %p268
      %p270 = scmp.ne.s32.totalorder %s261, %s262
      %p271 = scmp.eq.s32.totalorder %s41, 0
      %p272 = por %p270, %p271
      %p273 = scmp.ne.s32.totalorder %s261, %s262
      %p274 = scmp.eq.s32.totalorder %s42, 1
      %p275 = por %p273, %p274
      %p277 = scmp.ne.s32.totalorder %s262, %s276
      %p278 = scmp.eq.s32.totalorder %s42, 0
      %p279 = por %p277, %p278
      %s281 = sadd.s32 %s280, 1
      %p284 = scmp.eq.s32.totalorder %s36, 1
      %p285 = scmp.ne.s32.totalorder %s280, %s282
      %p286 = scmp.eq.s32.totalorder %s36, 0
      %p287 = por %p285, %p286
      %p288 = scmp.ne.s32.totalorder %s280, %s282
      %p289 = scmp.eq.s32.totalorder %s41, 1
      %p290 = por %p288, %p289
      %p291 = scmp.ne.s32.totalorder %s282, %s283
      %p292 = scmp.eq.s32.totalorder %s41, 0
      %p293 = por %p291, %p292
      %p294 = scmp.ne.s32.totalorder %s282, %s283
      %p295 = scmp.eq.s32.totalorder %s42, 1
      %p296 = por %p294, %p295
      %p298 = scmp.ne.s32.totalorder %s283, %s297
      %p299 = scmp.eq.s32.totalorder %s42, 0
      %p300 = por %p298, %p299
      %s302 = sadd.s32 %s301, 1
      %p305 = scmp.eq.s32.totalorder %s36, 1
      %p306 = scmp.ne.s32.totalorder %s301, %s303
      %p307 = scmp.eq.s32.totalorder %s36, 0
      %p308 = por %p306, %p307
      %p309 = scmp.ne.s32.totalorder %s301, %s303
      %p310 = scmp.eq.s32.totalorder %s41, 1
      %p311 = por %p309, %p310
      %p312 = scmp.ne.s32.totalorder %s303, %s304
      %p313 = scmp.eq.s32.totalorder %s41, 0
      %p314 = por %p312, %p313
      %p315 = scmp.ne.s32.totalorder %s303, %s304
      %p316 = scmp.eq.s32.totalorder %s42, 1
      %p317 = por %p315, %p316
      %p319 = scmp.ne.s32.totalorder %s304, %s318
      %p320 = scmp.eq.s32.totalorder %s42, 0
      %p321 = por %p319, %p320
      %s323 = sadd.s32 %s322, 1
      %p326 = scmp.eq.s32.totalorder %s36, 1
      %p327 = scmp.ne.s32.totalorder %s322, %s324
      %p328 = scmp.eq.s32.totalorder %s36, 0
      %p329 = por %p327, %p328
      %p330 = scmp.ne.s32.totalorder %s322, %s324
      %p331 = scmp.eq.s32.totalorder %s41, 1
      %p332 = por %p330, %p331
      %p333 = scmp.ne.s32.totalorder %s324, %s325
      %p334 = scmp.eq.s32.totalorder %s41, 0
      %p335 = por %p333, %p334
      %p336 = scmp.ne.s32.totalorder %s324, %s325
      %p337 = scmp.eq.s32.totalorder %s42, 1
      %p338 = por %p336, %p337
      %p340 = scmp.ne.s32.totalorder %s325, %s339
      %p341 = scmp.eq.s32.totalorder %s42, 0
      %p342 = por %p340, %p341
      %s344 = sadd.s32 %s343, 1
      %p347 = scmp.eq.s32.totalorder %s36, 1
      %p348 = scmp.ne.s32.totalorder %s343, %s345
      %p349 = scmp.eq.s32.totalorder %s36, 0
      %p350 = por %p348, %p349
      %p351 = scmp.ne.s32.totalorder %s343, %s345
      %p352 = scmp.eq.s32.totalorder %s41, 1
      %p353 = por %p351, %p352
      %p354 = scmp.ne.s32.totalorder %s345, %s346
      %p355 = scmp.eq.s32.totalorder %s41, 0
      %p356 = por %p354, %p355
      %p357 = scmp.ne.s32.totalorder %s345, %s346
      %p358 = scmp.eq.s32.totalorder %s42, 1
      %p359 = por %p357, %p358
      %p361 = scmp.ne.s32.totalorder %s346, %s360
      %p362 = scmp.eq.s32.totalorder %s42, 0
      %p363 = por %p361, %p362
      %s365 = sadd.s32 %s364, 1
      %p368 = scmp.eq.s32.totalorder %s36, 1
      %p369 = scmp.ne.s32.totalorder %s364, %s366
      %p370 = scmp.eq.s32.totalorder %s36, 0
      %p371 = por %p369, %p370
      %p372 = scmp.ne.s32.totalorder %s364, %s366
      %p373 = scmp.eq.s32.totalorder %s41, 1
      %p374 = por %p372, %p373
      %p375 = scmp.ne.s32.totalorder %s366, %s367
      %p376 = scmp.eq.s32.totalorder %s41, 0
      %p377 = por %p375, %p376
      %p378 = scmp.ne.s32.totalorder %s366, %s367
      %p379 = scmp.eq.s32.totalorder %s42, 1
      %p380 = por %p378, %p379
      %p382 = scmp.ne.s32.totalorder %s367, %s381
      %p383 = scmp.eq.s32.totalorder %s42, 0
      %p384 = por %p382, %p383
      %s386 = sadd.s32 %s385, 1
      %p389 = scmp.eq.s32.totalorder %s36, 1
      %p390 = scmp.ne.s32.totalorder %s385, %s387
      %p391 = scmp.eq.s32.totalorder %s36, 0
      %p392 = por %p390, %p391
      %p393 = scmp.ne.s32.totalorder %s385, %s387
      %p394 = scmp.eq.s32.totalorder %s41, 1
      %p395 = por %p393, %p394
      %p396 = scmp.ne.s32.totalorder %s387, %s388
      %p397 = scmp.eq.s32.totalorder %s41, 0
      %p398 = por %p396, %p397
      %p399 = scmp.ne.s32.totalorder %s387, %s388
      %p400 = scmp.eq.s32.totalorder %s42, 1
      %p401 = por %p399, %p400
      %p403 = scmp.ne.s32.totalorder %s388, %s402
      %p404 = scmp.eq.s32.totalorder %s42, 0
      %p405 = por %p403, %p404
      %s407 = sadd.s32 %s406, 1
      %p410 = scmp.eq.s32.totalorder %s36, 1
      %p411 = scmp.ne.s32.totalorder %s406, %s408
      %p412 = scmp.eq.s32.totalorder %s36, 0
      %p413 = por %p411, %p412
      %p414 = scmp.ne.s32.totalorder %s406, %s408
      %p415 = scmp.eq.s32.totalorder %s41, 1
      %p416 = por %p414, %p415
      %p417 = scmp.ne.s32.totalorder %s408, %s409
      %p418 = scmp.eq.s32.totalorder %s41, 0
      %p419 = por %p417, %p418
      %p420 = scmp.ne.s32.totalorder %s408, %s409
      %p421 = scmp.eq.s32.totalorder %s42, 1
      %p422 = por %p420, %p421
      %p424 = scmp.ne.s32.totalorder %s409, %s423
      %p425 = scmp.eq.s32.totalorder %s42, 0
      %p426 = por %p424, %p425
      %s428 = sadd.s32 %s427, 1
      %p431 = scmp.eq.s32.totalorder %s36, 1
      %p432 = scmp.ne.s32.totalorder %s427, %s429
      %p433 = scmp.eq.s32.totalorder %s36, 0
      %p434 = por %p432, %p433
      %p435 = scmp.ne.s32.totalorder %s427, %s429
      %p436 = scmp.eq.s32.totalorder %s41, 1
      %p437 = por %p435, %p436
      %p438 = scmp.ne.s32.totalorder %s429, %s430
      %p439 = scmp.eq.s32.totalorder %s41, 0
      %p440 = por %p438, %p439
      %p441 = scmp.ne.s32.totalorder %s429, %s430
      %p442 = scmp.eq.s32.totalorder %s42, 1
      %p443 = por %p441, %p442
      %p445 = scmp.ne.s32.totalorder %s430, %s444
      %p446 = scmp.eq.s32.totalorder %s42, 0
      %p447 = por %p445, %p446
      %s448 = ssub.s32 %s36, %s43
      %p449 = scmp.eq.s32.totalorder %s448, 0
      %s451 = sadd.s32 %s450, 1
      %s452 = scalar_select %p449, %s450, %s451
      %p455 = pneg %p449
      %p456 = scmp.eq.s32.totalorder %s36, 1
      %p457 = por %p455, %p456
      %p458 = scmp.ne.s32.totalorder %s450, %s453
      %p459 = scmp.eq.s32.totalorder %s36, 0
      %p460 = por %p458, %p459
      %p461 = scmp.ne.s32.totalorder %s450, %s453
      %p462 = scmp.eq.s32.totalorder %s41, 1
      %p463 = por %p461, %p462
      %p464 = scmp.ne.s32.totalorder %s453, %s454
      %p465 = scmp.eq.s32.totalorder %s41, 0
      %p466 = por %p464, %p465
      %p467 = scmp.ne.s32.totalorder %s453, %s454
      %p468 = scmp.eq.s32.totalorder %s42, 1
      %p469 = por %p467, %p468
      %p471 = scmp.ne.s32.totalorder %s454, %s470
      %p472 = scmp.eq.s32.totalorder %s42, 0
      %p473 = por %p471, %p472
      %p474 = scmp.le.s32.totalorder 1, %s36
      %p475 = scmp.lt.s32.totalorder %s36, 3
      %p476 = pnand %p474, %p475
      %p477 = pneg %p476
      // Predicated region
      $region9: #{am_layer_forward.1} parent=5 // pred_check
        _
      $region10: #{am_layer_forward.1} parent=5 // pred_check_branch
        %479 = sbr.rel (%p476) target = $region12
      $region11: #{am_layer_forward.1} parent=5 // pred_region
        %s480 = ssub.s32 %s36, 1
        // Predicated region
        $region13: #{am_layer_forward.1} parent=11 // pred_check
          %p481 = pneg %p83
        $region14: #{am_layer_forward.1} parent=11 // pred_check_branch
          %483 = sbr.rel (%p481) target = $region16
        $region15: #{am_layer_forward.1} parent=11 // pred_region
          _
        $region16: #{am_layer_forward.1} parent=11 // pred_fallthru
          _
        // Predicated region
        $region17: #{am_layer_forward.1} parent=11 // pred_check
          %p484 = pneg %p104
        $region18: #{am_layer_forward.1} parent=11 // pred_check_branch
          %486 = sbr.rel (%p484) target = $region20
        $region19: #{am_layer_forward.1} parent=11 // pred_region
          _
        $region20: #{am_layer_forward.1} parent=11 // pred_fallthru
          _
        // Predicated region
        $region21: #{am_layer_forward.1} parent=11 // pred_check
          %p487 = pneg %p125
        $region22: #{am_layer_forward.1} parent=11 // pred_check_branch
          %489 = sbr.rel (%p487) target = $region24
        $region23: #{am_layer_forward.1} parent=11 // pred_region
          %s491 = ssub.s32 1024, 1024
          %492 = vsyncadd [#allocation9], %s491
          %s493 = sshll.u32 [#allocation8], 4
          %s494 = int_to_ptr.vmem [resolvable:$true] %s493
          %499 = dma.hbm_to_vmem [thread:$0]  %s3, 1024, %s494, [#allocation9], 128, 128, 8
        $region24: #{am_layer_forward.1} parent=11 // pred_fallthru
          _
        // Predicated region
        $region25: #{am_layer_forward.1} parent=11 // pred_check
          %p500 = pneg %p146
        $region26: #{am_layer_forward.1} parent=11 // pred_check_branch
          %502 = sbr.rel (%p500) target = $region28
        $region27: #{am_layer_forward.1} parent=11 // pred_region
          _
        $region28: #{am_layer_forward.1} parent=11 // pred_fallthru
          _
        // Predicated region
        $region29: #{am_layer_forward.1} parent=11 // pred_check
          %p503 = pneg %p167
        $region30: #{am_layer_forward.1} parent=11 // pred_check_branch
          %505 = sbr.rel (%p503) target = $region32
        $region31: #{am_layer_forward.1} parent=11 // pred_region
          %s507 = ssub.s32 16, 16
          %508 = vsyncadd [#allocation9], %s507
          %s510 = sshll.u32 [#allocation10], 4
          %s511 = int_to_ptr.vmem [resolvable:$true] %s510
          %513 = dma.hbm_to_vmem [thread:$0]  %s5, 16, %s511, [#allocation9]
        $region32: #{am_layer_forward.1} parent=11 // pred_fallthru
          _
        // Predicated region
        $region33: #{am_layer_forward.1} parent=11 // pred_check
          %p514 = pneg %p188
        $region34: #{am_layer_forward.1} parent=11 // pred_check_branch
          %516 = sbr.rel (%p514) target = $region36
        $region35: #{am_layer_forward.1} parent=11 // pred_region
          %s518 = ssub.s32 16, 16
          %519 = vsyncadd [#allocation12], %s518
          %s521 = sshll.u32 [#allocation11], 4
          %s522 = int_to_ptr.vmem [resolvable:$true] %s521
          %524 = dma.hbm_to_vmem [thread:$0]  %s6, 16, %s522, [#allocation12]
        $region36: #{am_layer_forward.1} parent=11 // pred_fallthru
          _
        // Predicated region
        $region37: #{am_layer_forward.1} parent=11 // pred_check
          %p525 = pneg %p209
        $region38: #{am_layer_forward.1} parent=11 // pred_check_branch
          %527 = sbr.rel (%p525) target = $region40
        $region39: #{am_layer_forward.1} parent=11 // pred_region
          %s529 = ssub.s32 16, 16
          %530 = vsyncadd [#allocation12], %s529
          %s532 = sshll.u32 [#allocation13], 4
          %s533 = int_to_ptr.vmem [resolvable:$true] %s532
          %535 = dma.hbm_to_vmem [thread:$0]  %s7, 16, %s533, [#allocation12]
        $region40: #{am_layer_forward.1} parent=11 // pred_fallthru
          _
        // Predicated region
        $region41: #{am_layer_forward.1} parent=11 // pred_check
          %p536 = pneg %p230
        $region42: #{am_layer_forward.1} parent=11 // pred_check_branch
          %538 = sbr.rel (%p536) target = $region44
        $region43: #{am_layer_forward.1} parent=11 // pred_region
          %s540 = ssub.s32 16, 16
          %541 = vsyncadd [#allocation15], %s540
          %s543 = sshll.u32 [#allocation14], 4
          %s544 = int_to_ptr.vmem [resolvable:$true] %s543
          %546 = dma.hbm_to_vmem [thread:$0]  %s8, 16, %s544, [#allocation15]
        $region44: #{am_layer_forward.1} parent=11 // pred_fallthru
          _
        // Predicated region
        $region45: #{am_layer_forward.1} parent=11 // pred_check
          %p547 = pneg %p251
        $region46: #{am_layer_forward.1} parent=11 // pred_check_branch
          %549 = sbr.rel (%p547) target = $region48
        $region47: #{am_layer_forward.1} parent=11 // pred_region
          _
        $region48: #{am_layer_forward.1} parent=11 // pred_fallthru
          _
        // Predicated region
        $region49: #{am_layer_forward.1} parent=11 // pred_check
          %p550 = pneg %p272
        $region50: #{am_layer_forward.1} parent=11 // pred_check_branch
          %552 = sbr.rel (%p550) target = $region52
        $region51: #{am_layer_forward.1} parent=11 // pred_region
          _
        $region52: #{am_layer_forward.1} parent=11 // pred_fallthru
          _
        // Predicated region
        $region53: #{am_layer_forward.1} parent=11 // pred_check
          %p553 = pneg %p293
        $region54: #{am_layer_forward.1} parent=11 // pred_check_branch
          %555 = sbr.rel (%p553) target = $region56
        $region55: #{am_layer_forward.1} parent=11 // pred_region
          %s557 = ssub.s32 16, 16
          %558 = vsyncadd [#allocation15], %s557
          %s560 = sshll.u32 [#allocation16], 4
          %s561 = int_to_ptr.vmem [resolvable:$true] %s560
          %563 = dma.hbm_to_vmem [thread:$0]  %s11, 16, %s561, [#allocation15]
        $region56: #{am_layer_forward.1} parent=11 // pred_fallthru
          _
        // Predicated region
        $region57: #{am_layer_forward.1} parent=11 // pred_check
          %p564 = pneg %p314
        $region58: #{am_layer_forward.1} parent=11 // pred_check_branch
          %566 = sbr.rel (%p564) target = $region60
        $region59: #{am_layer_forward.1} parent=11 // pred_region
          %s568 = ssub.s32 2048, 2048
          %569 = vsyncadd [#allocation18], %s568
          %s570 = sshll.u32 [#allocation17], 4
          %s571 = int_to_ptr.vmem [resolvable:$true] %s570
          %576 = dma.hbm_to_vmem [thread:$0]  %s12, 2048, %s571, [#allocation18], 128, 128, 8
        $region60: #{am_layer_forward.1} parent=11 // pred_fallthru
          _
        // Predicated region
        $region61: #{am_layer_forward.1} parent=11 // pred_check
          %p577 = pneg %p335
        $region62: #{am_layer_forward.1} parent=11 // pred_check_branch
          %579 = sbr.rel (%p577) target = $region64
        $region63: #{am_layer_forward.1} parent=11 // pred_region
          %s581 = ssub.s32 16, 16
          %582 = vsyncadd [#allocation18], %s581
          %s584 = sshll.u32 [#allocation19], 4
          %s585 = int_to_ptr.vmem [resolvable:$true] %s584
          %587 = dma.hbm_to_vmem [thread:$0]  %s13, 16, %s585, [#allocation18]
        $region64: #{am_layer_forward.1} parent=11 // pred_fallthru
          _
        // Predicated region
        $region65: #{am_layer_forward.1} parent=11 // pred_check
          %p588 = pneg %p356
        $region66: #{am_layer_forward.1} parent=11 // pred_check_branch
          %590 = sbr.rel (%p588) target = $region68
        $region67: #{am_layer_forward.1} parent=11 // pred_region
          _
        $region68: #{am_layer_forward.1} parent=11 // pred_fallthru
          _
        // Predicated region
        $region69: #{am_layer_forward.1} parent=11 // pred_check
          %p591 = pneg %p377
        $region70: #{am_layer_forward.1} parent=11 // pred_check_branch
          %593 = sbr.rel (%p591) target = $region72
        $region71: #{am_layer_forward.1} parent=11 // pred_region
          _
        $region72: #{am_layer_forward.1} parent=11 // pred_fallthru
          _
        // Predicated region
        $region73: #{am_layer_forward.1} parent=11 // pred_check
          %p594 = pneg %p398
        $region74: #{am_layer_forward.1} parent=11 // pred_check_branch
          %596 = sbr.rel (%p594) target = $region76
        $region75: #{am_layer_forward.1} parent=11 // pred_region
          %s598 = ssub.s32 256, 256
          %599 = vsyncadd [#allocation21], %s598
          %s600 = sshll.u32 [#allocation20], 4
          %s601 = int_to_ptr.vmem [resolvable:$true] %s600
          %606 = dma.hbm_to_vmem [thread:$0]  %s16, 256, %s601, [#allocation21], 128, 128, 8
        $region76: #{am_layer_forward.1} parent=11 // pred_fallthru
          _
        // Predicated region
        $region77: #{am_layer_forward.1} parent=11 // pred_check
          %p607 = pneg %p419
        $region78: #{am_layer_forward.1} parent=11 // pred_check_branch
          %609 = sbr.rel (%p607) target = $region80
        $region79: #{am_layer_forward.1} parent=11 // pred_region
          %s611 = ssub.s32 16, 16
          %612 = vsyncadd [#allocation21], %s611
          %s614 = sshll.u32 [#allocation22], 4
          %s615 = int_to_ptr.vmem [resolvable:$true] %s614
          %617 = dma.hbm_to_vmem [thread:$0]  %s17, 16, %s615, [#allocation21]
        $region80: #{am_layer_forward.1} parent=11 // pred_fallthru
          _
        // Predicated region
        $region81: #{am_layer_forward.1} parent=11 // pred_check
          %p618 = pneg %p440
        $region82: #{am_layer_forward.1} parent=11 // pred_check_branch
          %620 = sbr.rel (%p618) target = $region84
        $region83: #{am_layer_forward.1} parent=11 // pred_region
          _
        $region84: #{am_layer_forward.1} parent=11 // pred_fallthru
          _
      $region12: #{am_layer_forward.1} parent=5 // pred_fallthru
        _
      %p621 = scmp.lt.s32.totalorder %s36, 2
      // Predicated region
      $region85: #{am_layer_forward.1} parent=5 // pred_check
        %p622 = pneg %p621
      $region86: #{am_layer_forward.1} parent=5 // pred_check_branch
        %624 = sbr.rel (%p622) target = $region88
      $region87: #{am_layer_forward.1} parent=5 // pred_region
        // Predicated region
        $region89: #{am_layer_forward.1} parent=87 // pred_check
          %p625 = pneg %p56
        $region90: #{am_layer_forward.1} parent=87 // pred_check_branch
          %627 = sbr.rel (%p625) target = $region92
        $region91: #{am_layer_forward.1} parent=87 // pred_region
          %s628 = sand.u32 %s46, 1
          %s629 = scalar_lea.sflag [#allocation6], %s628
          %s630 = sand.u32 %s46, 1
          %s631 = smul.addr %s630, 16
          %s632 = scalar_lea.vmem [#allocation5], %s631
          %s634 = ssub.s32 256, 256
          %635 = vsyncadd %s629, %s634
          %s636 = smul.addr %s36, 2
          %s637 = smul.addr %s636, 128
          %s638 = scalar_lea.hbm %s0, %s637
          %s639 = sshll.u32 %s632, 4
          %s640 = int_to_ptr.vmem [resolvable:$true] %s639
          %645 = dma.hbm_to_vmem [thread:$0]  %s638, 256, %s640, %s629, 128, 128, 8
        $region92: #{am_layer_forward.1} parent=87 // pred_fallthru
          _
      $region88: #{am_layer_forward.1} parent=5 // pred_fallthru
        _
      %p646 = scmp.le.s32.totalorder 1, %s36
      %p647 = scmp.lt.s32.totalorder %s36, 3
      %p648 = pnand %p646, %p647
      %p649 = pneg %p648
      // Predicated region
      $region93: #{am_layer_forward.1} parent=5 // pred_check
        _
      $region94: #{am_layer_forward.1} parent=5 // pred_check_branch
        %651 = sbr.rel (%p648) target = $region96
      $region95: #{am_layer_forward.1} parent=5 // pred_region
        %s652 = ssub.s32 %s36, 1
        %s653 = sand.u32 %s49, 1
        %s654 = scalar_lea.sflag [#allocation6], %s653
        %s655 = sand.u32 %s49, 1
        %s656 = smul.addr %s655, 16
        %s657 = scalar_lea.vmem [#allocation5], %s656
        // Predicated region
        $region97: #{am_layer_forward.1} parent=95 // pred_check
          %p658 = pneg %p62
        $region98: #{am_layer_forward.1} parent=95 // pred_check_branch
          %660 = sbr.rel (%p658) target = $region100
        $region99: #{am_layer_forward.1} parent=95 // pred_region
          %661 = dma.done %s654, 256
        $region100: #{am_layer_forward.1} parent=95 // pred_fallthru
          _
        // Predicated region
        $region101: #{am_layer_forward.1} parent=95 // pred_check
          %p662 = pneg %p125
        $region102: #{am_layer_forward.1} parent=95 // pred_check_branch
          %664 = sbr.rel (%p662) target = $region104
        $region103: #{am_layer_forward.1} parent=95 // pred_region
          %665 = dma.done [#allocation9], 1024
        $region104: #{am_layer_forward.1} parent=95 // pred_fallthru
          _
        // Predicated region
        $region105: #{am_layer_forward.1} parent=95 // pred_check
          %p666 = pneg %p167
        $region106: #{am_layer_forward.1} parent=95 // pred_check_branch
          %668 = sbr.rel (%p666) target = $region108
        $region107: #{am_layer_forward.1} parent=95 // pred_region
          %669 = dma.done [#allocation9], 16
        $region108: #{am_layer_forward.1} parent=95 // pred_fallthru
          _
        // Predicated region
        $region109: #{am_layer_forward.1} parent=95 // pred_check
          %p670 = pneg %p188
        $region110: #{am_layer_forward.1} parent=95 // pred_check_branch
          %672 = sbr.rel (%p670) target = $region112
        $region111: #{am_layer_forward.1} parent=95 // pred_region
          %673 = dma.done [#allocation12], 16
        $region112: #{am_layer_forward.1} parent=95 // pred_fallthru
          _
        // Predicated region
        $region113: #{am_layer_forward.1} parent=95 // pred_check
          %p674 = pneg %p209
        $region114: #{am_layer_forward.1} parent=95 // pred_check_branch
          %676 = sbr.rel (%p674) target = $region116
        $region115: #{am_layer_forward.1} parent=95 // pred_region
          %677 = dma.done [#allocation12], 16
        $region116: #{am_layer_forward.1} parent=95 // pred_fallthru
          _
        // Predicated region
        $region117: #{am_layer_forward.1} parent=95 // pred_check
          %p678 = pneg %p230
        $region118: #{am_layer_forward.1} parent=95 // pred_check_branch
          %680 = sbr.rel (%p678) target = $region120
        $region119: #{am_layer_forward.1} parent=95 // pred_region
          %681 = dma.done [#allocation15], 16
        $region120: #{am_layer_forward.1} parent=95 // pred_fallthru
          _
        // Predicated region
        $region121: #{am_layer_forward.1} parent=95 // pred_check
          %p682 = pneg %p293
        $region122: #{am_layer_forward.1} parent=95 // pred_check_branch
          %684 = sbr.rel (%p682) target = $region124
        $region123: #{am_layer_forward.1} parent=95 // pred_region
          %685 = dma.done [#allocation15], 16
        $region124: #{am_layer_forward.1} parent=95 // pred_fallthru
          _
        // Predicated region
        $region125: #{am_layer_forward.1} parent=95 // pred_check
          %p686 = pneg %p314
        $region126: #{am_layer_forward.1} parent=95 // pred_check_branch
          %688 = sbr.rel (%p686) target = $region128
        $region127: #{am_layer_forward.1} parent=95 // pred_region
          %689 = dma.done [#allocation18], 2048
        $region128: #{am_layer_forward.1} parent=95 // pred_fallthru
          _
        // Predicated region
        $region129: #{am_layer_forward.1} parent=95 // pred_check
          %p690 = pneg %p335
        $region130: #{am_layer_forward.1} parent=95 // pred_check_branch
          %692 = sbr.rel (%p690) target = $region132
        $region131: #{am_layer_forward.1} parent=95 // pred_region
          %693 = dma.done [#allocation18], 16
        $region132: #{am_layer_forward.1} parent=95 // pred_fallthru
          _
        // Predicated region
        $region133: #{am_layer_forward.1} parent=95 // pred_check
          %p694 = pneg %p398
        $region134: #{am_layer_forward.1} parent=95 // pred_check_branch
          %696 = sbr.rel (%p694) target = $region136
        $region135: #{am_layer_forward.1} parent=95 // pred_region
          %697 = dma.done [#allocation21], 256
        $region136: #{am_layer_forward.1} parent=95 // pred_fallthru
          _
        // Predicated region
        $region137: #{am_layer_forward.1} parent=95 // pred_check
          %p698 = pneg %p419
        $region138: #{am_layer_forward.1} parent=95 // pred_check_branch
          %700 = sbr.rel (%p698) target = $region140
        $region139: #{am_layer_forward.1} parent=95 // pred_region
          %701 = dma.done [#allocation21], 16
        $region140: #{am_layer_forward.1} parent=95 // pred_fallthru
          _
        %s702 = sand.u32 %s49, 1
        %s703 = scalar_lea.sflag [#allocation6], %s702
        %s704 = sand.u32 %s49, 1
        %s705 = smul.addr %s704, 16
        %s706 = scalar_lea.vmem [#allocation5], %s705
        %p707 = pneg %p62
        %p708 = pneg %p59
        %p709 = pneg %p83
        %p710 = pneg %p80
        %p711 = pneg %p104
        %p712 = pneg %p101
        %p713 = pneg %p125
        %p714 = pneg %p122
        %p715 = pneg %p146
        %p716 = pneg %p143
        %p717 = pneg %p167
        %p718 = pneg %p164
        %p719 = pneg %p188
        %p720 = pneg %p185
        %p721 = pneg %p209
        %p722 = pneg %p206
        %p723 = pneg %p230
        %p724 = pneg %p227
        %p725 = pneg %p251
        %p726 = pneg %p248
        %p727 = pneg %p272
        %p728 = pneg %p269
        %p729 = pneg %p293
        %p730 = pneg %p290
        %p731 = pneg %p314
        %p732 = pneg %p311
        %p733 = pneg %p335
        %p734 = pneg %p332
        %p735 = pneg %p356
        %p736 = pneg %p353
        %p737 = pneg %p377
        %p738 = pneg %p374
        %p739 = pneg %p398
        %p740 = pneg %p395
        %p741 = pneg %p419
        %p742 = pneg %p416
        %p743 = pneg %p440
        %p744 = pneg %p437
        %p745 = pneg %p466
        %p746 = pneg %p463
        %s747 = sand.u32 %s453, 1
        %s748 = scalar_lea.sflag [#allocation7], %s747
        %s749 = sand.u32 %s453, 1
        %s750 = smul.addr %s749, 16
        %s751 = scalar_lea.vmem [#allocation23], %s750
        %v752 = vld [vmem:[%s10] sm:$0xf]
        %v753 = vld [vmem:[#allocation20] sm:$0xff]
        %v754 = vld [vmem:[#allocation20 + $0x8] sm:$0xff]
        %v755 = vlaneseq
        %v756 = vand.u32 %v755, 127
        %v757 = vadd.s32 %v756, 128
        %v758 = vlaneseq
        %v759 = vshrl.u32 %v758, 7
        %v760 = vadd.s32 %v759, 8
        %v761 = vmul.u32 %v759, 16
        %v762 = vmul.u32 %v760, 16
        %v763 = vsub.s32 %v756, %v761
        %v764 = vsub.s32 %v757, %v761
        %v765 = vsub.s32 %v756, %v762
        %v766 = vsub.s32 %v757, %v762
        %vm767 = vcmp.ge.s32.totalorder %v763, 0
        %vm768 = vcmp.ge.s32.totalorder %v764, 0
        %vm769 = vcmp.ge.s32.totalorder %v765, 0
        %vm770 = vcmp.ge.s32.totalorder %v766, 0
        %vm771 = vcmp.lt.s32.totalorder %v763, 16
        %vm772 = vcmp.lt.s32.totalorder %v764, 16
        %vm773 = vcmp.lt.s32.totalorder %v765, 16
        %vm774 = vcmp.lt.s32.totalorder %v766, 16
        %vm775 = vmand %vm767, %vm771
        %vm776 = vmand %vm768, %vm772
        %vm777 = vmand %vm769, %vm773
        %vm778 = vmand %vm770, %vm774
        %v779 = vld [vmem:[%s657] sm:$0xff]
        %v780 = vld [vmem:[%s657 + $0x8] sm:$0xff]
        %v781 = vld [vmem:[%s1] sm:$0xff]
        %v782 = vld [vmem:[%s1 + $0x8] sm:$0xff]
        %v783 = vld [vmem:[%s1 + $0x10] sm:$0xff]
        %v784 = vld [vmem:[%s1 + $0x18] sm:$0xff]
        %v785 = vld [vmem:[%s1 + $0x20] sm:$0xff]
        %v786 = vld [vmem:[%s1 + $0x28] sm:$0xff]
        %v787 = vld [vmem:[%s1 + $0x30] sm:$0xff]
        %v788 = vld [vmem:[%s1 + $0x38] sm:$0xff]
        %v789 = vld [vmem:[%s1 + $0x40] sm:$0xff]
        %v790 = vld [vmem:[%s1 + $0x48] sm:$0xff]
        %v791 = vld [vmem:[%s1 + $0x50] sm:$0xff]
        %v792 = vld [vmem:[%s1 + $0x58] sm:$0xff]
        %v793 = vld [vmem:[%s1 + $0x60] sm:$0xff]
        %v794 = vld [vmem:[%s1 + $0x68] sm:$0xff]
        %v795 = vld [vmem:[%s1 + $0x70] sm:$0xff]
        %v796 = vld [vmem:[%s1 + $0x78] sm:$0xff]
        %v797 = vld [vmem:[%s2] sm:$0x3]
        %v799 = vlaneseq
        %v800 = vshrl.u32 %v799, 7
        %v801 = vsub.s32 0, %v800
        %v802 = vrot.slane %v797, %v801
        %v803 = vlaneseq
        %v804 = vshrl.u32 %v803, 7
        %v805 = vsub.s32 1, %v804
        %v806 = vrot.slane %v797, %v805
        %vm809 = vcmask 523264
        %v811 = vsel %vm809, %v779, 0
        %v814 = vsel %vm809, %v780, 0
        %816 = vmatprep.subr.mxu0 0.0
        %817 = vmatpush1.msra.mxu0 0.0
        %818 = vmatprep.subr.mxu0 0.0
        %819 = vmatpush1.msra.mxu0 0.0
        %820 = vmatprep.subr.mxu0 0.0
        %821 = vmatpush1.msra.mxu0 0.0
        %822 = vmatprep.subr.mxu0 0.0
        %823 = vmatpush1.msra.mxu0 0.0
        %824 = vmatprep.subr.mxu0 0.0
        %825 = vmatpush1.msra.mxu0 0.0
        %826 = vmatprep.subr.mxu0 0.0
        %827 = vmatpush1.msra.mxu0 0.0
        %828 = vmatprep.subr.mxu0 0.0
        %829 = vmatpush1.msra.mxu0 0.0
        %830 = vmatprep.subr.mxu0 0.0
        %831 = vmatpush1.msra.mxu0 0.0
        %832 = vmatprep.subr.mxu0 %v796
        %833 = vmatpush1.msra.mxu0 %v795
        %834 = vmatprep.subr.mxu0 %v794
        %835 = vmatpush1.msra.mxu0 %v793
        %836 = vmatprep.subr.mxu0 %v792
        %837 = vmatpush1.msra.mxu0 %v791
        %838 = vmatprep.subr.mxu0 %v790
        %839 = vmatpush1.msra.mxu0 %v789
        %840 = vmatprep.subr.mxu0 %v788
        %841 = vmatpush1.msra.mxu0 %v787
        %842 = vmatprep.subr.mxu0 %v786
        %843 = vmatpush1.msra.mxu0 %v785
        %844 = vmatprep.subr.mxu0 %v784
        %845 = vmatpush1.msra.mxu0 %v783
        %846 = vmatprep.subr.mxu0 %v782
        %847 = vmatpush1.msra.mxu0 %v781
        %848 = vmatprep.subr.mxu0 0.0
        %849 = vmatpush2.msra.mxu0 0.0
        %850 = vmatprep.subr.mxu0 0.0
        %851 = vmatpush2.msra.mxu0 0.0
        %852 = vmatprep.subr.mxu0 0.0
        %853 = vmatpush2.msra.mxu0 0.0
        %854 = vmatprep.subr.mxu0 0.0
        %855 = vmatpush2.msra.mxu0 0.0
        %856 = vmatprep.subr.mxu0 0.0
        %857 = vmatpush2.msra.mxu0 0.0
        %858 = vmatprep.subr.mxu0 0.0
        %859 = vmatpush2.msra.mxu0 0.0
        %860 = vmatprep.subr.mxu0 0.0
        %861 = vmatpush2.msra.mxu0 0.0
        %862 = vmatprep.subr.mxu0 0.0
        %863 = vmatpush2.msra.mxu0 0.0
        %864 = vmatprep.subr.mxu0 0.0
        %865 = vmatpush2.msra.mxu0 0.0
        %866 = vmatprep.subr.mxu0 0.0
        %867 = vmatpush2.msra.mxu0 0.0
        %868 = vmatprep.subr.mxu0 0.0
        %869 = vmatpush2.msra.mxu0 0.0
        %870 = vmatprep.subr.mxu0 0.0
        %871 = vmatpush2.msra.mxu0 0.0
        %872 = vmatprep.subr.mxu0 0.0
        %873 = vmatpush2.msra.mxu0 0.0
        %874 = vmatprep.subr.mxu0 0.0
        %875 = vmatpush2.msra.mxu0 0.0
        %876 = vmatprep.subr.mxu0 0.0
        %877 = vmatpush2.msra.mxu0 0.0
        %878 = vmatprep.subr.mxu0 0.0
        %879 = vmatpush2.msra.mxu0 0.0
        %880 = vmatprep.mubr.f32.mxu0 0.0
        %881 = vmatmul.mubr.f32.gmra.mxu0 %v811
        %v882 = vpop.f32.mrf.mxu0
        %v883 = vadd.f32 %v802, %v882
        %v884 = vpop.f32.mrf.mxu0
        %v885 = vadd.f32 %v806, %v884
        %886 = vmatprep.mubr.f32.mxu0 0.0
        %887 = vmatmul.mubr.f32.gmra.mxu0 %v814
        %v888 = vpop.f32.mrf.mxu0
        %v889 = vadd.f32 %v802, %v888
        %v890 = vpop.f32.mrf.mxu0
        %v891 = vadd.f32 %v806, %v890
        %892 = vdwg.mxu0
        %v893 = vld [vmem:[%s4] sm:$0x1]
        %896 = vrot.lane.b32.xlu0 %v883, 64
        %v897 = vpop.permute.xlu0 %896
        %898 = vrot.lane.b32.xlu0 %v889, 64
        %v899 = vpop.permute.xlu0 %898
        %vm900 = vcmask 130048
        %v901 = vsel %vm900, %v883, 0
        %v903 = vsel %vm900, %v889, 0
        %v905 = vsel %vm900, %v897, 0
        %v907 = vsel %vm900, %v899, 0
        %909 = vmatprep.subr.mxu0 0.0
        %910 = vmatpush1.xpose.msra.mxu0 0.0
        %911 = vmatprep.subr.mxu0 0.0
        %912 = vmatpush1.xpose.msra.mxu0 0.0
        %913 = vmatprep.subr.mxu0 0.0
        %914 = vmatpush1.xpose.msra.mxu0 0.0
        %915 = vmatprep.subr.mxu0 0.0
        %916 = vmatpush1.xpose.msra.mxu0 0.0
        %917 = vmatprep.subr.mxu0 0.0
        %918 = vmatpush1.xpose.msra.mxu0 0.0
        %919 = vmatprep.subr.mxu0 0.0
        %920 = vmatpush1.xpose.msra.mxu0 0.0
        %921 = vmatprep.subr.mxu0 0.0
        %922 = vmatpush1.xpose.msra.mxu0 0.0
        %923 = vmatprep.subr.mxu0 0.0
        %924 = vmatpush1.xpose.msra.mxu0 0.0
        %925 = vmatprep.subr.mxu0 0.0
        %926 = vmatpush1.xpose.msra.mxu0 0.0
        %927 = vmatprep.subr.mxu0 0.0
        %928 = vmatpush1.xpose.msra.mxu0 0.0
        %929 = vmatprep.subr.mxu0 0.0
        %930 = vmatpush1.xpose.msra.mxu0 0.0
        %931 = vmatprep.subr.mxu0 0.0
        %932 = vmatpush1.xpose.msra.mxu0 0.0
        %933 = vmatprep.subr.mxu0 0.0
        %934 = vmatpush1.xpose.msra.mxu0 0.0
        %935 = vmatprep.subr.mxu0 0.0
        %936 = vmatpush1.xpose.msra.mxu0 0.0
        %937 = vmatprep.subr.mxu0 0.0
        %938 = vmatpush1.xpose.msra.mxu0 %v907
        %939 = vmatprep.subr.mxu0 0.0
        %940 = vmatpush1.xpose.msra.mxu0 %v905
        %941 = vmatprep.subr.mxu0 0.0
        %942 = vmatpush2.xpose.msra.mxu0 0.0
        %943 = vmatprep.subr.mxu0 0.0
        %944 = vmatpush2.xpose.msra.mxu0 0.0
        %945 = vmatprep.subr.mxu0 0.0
        %946 = vmatpush2.xpose.msra.mxu0 0.0
        %947 = vmatprep.subr.mxu0 0.0
        %948 = vmatpush2.xpose.msra.mxu0 0.0
        %949 = vmatprep.subr.mxu0 0.0
        %950 = vmatpush2.xpose.msra.mxu0 0.0
        %951 = vmatprep.subr.mxu0 0.0
        %952 = vmatpush2.xpose.msra.mxu0 0.0
        %953 = vmatprep.subr.mxu0 0.0
        %954 = vmatpush2.xpose.msra.mxu0 0.0
        %955 = vmatprep.subr.mxu0 0.0
        %956 = vmatpush2.xpose.msra.mxu0 0.0
        %957 = vmatprep.subr.mxu0 0.0
        %958 = vmatpush2.xpose.msra.mxu0 0.0
        %959 = vmatprep.subr.mxu0 0.0
        %960 = vmatpush2.xpose.msra.mxu0 0.0
        %961 = vmatprep.subr.mxu0 0.0
        %962 = vmatpush2.xpose.msra.mxu0 0.0
        %963 = vmatprep.subr.mxu0 0.0
        %964 = vmatpush2.xpose.msra.mxu0 0.0
        %965 = vmatprep.subr.mxu0 0.0
        %966 = vmatpush2.xpose.msra.mxu0 0.0
        %967 = vmatprep.subr.mxu0 0.0
        %968 = vmatpush2.xpose.msra.mxu0 0.0
        %969 = vmatprep.subr.mxu0 0.0
        %970 = vmatpush2.xpose.msra.mxu0 0.0
        %971 = vmatprep.subr.mxu0 0.0
        %972 = vmatpush2.xpose.msra.mxu0 0.0
        %973 = vmatprep.mubr.f32.mxu0 0.0
        %974 = vmatmul.mubr.f32.gmra.mxu0 %v901
        %v975 = vpop.f32.mrf.mxu0
        %v976 = vadd.f32 0.0, %v975
        %v977 = vpop.f32.mrf.mxu0
        %978 = vmatprep.mubr.f32.mxu0 0.0
        %979 = vmatmul.mubr.f32.gmra.mxu0 %v903
        %v980 = vpop.f32.mrf.mxu0
        %v981 = vadd.f32 0.0, %v980
        %v982 = vpop.f32.mrf.mxu0
        %983 = vdwg.mxu0
        %v984 = vmul.f32 %v976, 0.25
        %v985 = vmul.f32 %v981, 0.25
        %v986 = vsel %vm900, %v984, -inf
        %987 = vmax.xlane.f32.xlu0 %v986
        %v988 = vpop.xlane.xlu0 %987
        %v989 = vsel %vm900, %v985, -inf
        %990 = vmax.xlane.f32.xlu0 %v989
        %v991 = vpop.xlane.xlu0 %990
        %v992 = vsub.f32 %v984, %v988
        %v993 = vsub.f32 %v985, %v991
        %v994 = vmul.f32 %v992, 1.442695
        %v995 = vpow.pop %v994
        %v996 = vmul.f32 %v993, 1.442695
        %v997 = vpow.pop %v996
        %v998 = vsel %vm900, %v995, 0.0
        %999 = vadd.xlane.f32.xlu0 %v998
        %v1000 = vpop.xlane.xlu0 %999
        %v1001 = vsel %vm900, %v997, 0.0
        %1002 = vadd.xlane.f32.xlu0 %v1001
        %v1003 = vpop.xlane.xlu0 %1002
        %v1004 = vrcp.pop %v1000
        %v1005 = vrcp.pop %v1003
        %v1006 = vmul.f32 %v995, %v1004
        %v1007 = vmul.f32 %v997, %v1005
        %v1009 = vsel %vm900, %v1006, 0
        %v1012 = vsel %vm900, %v1007, 0
        %1014 = vmatprep.subr.mxu0 0.0
        %1015 = vmatpush1.msra.mxu0 0.0
        %1016 = vmatprep.subr.mxu0 0.0
        %1017 = vmatpush1.msra.mxu0 0.0
        %1018 = vmatprep.subr.mxu0 0.0
        %1019 = vmatpush1.msra.mxu0 0.0
        %1020 = vmatprep.subr.mxu0 0.0
        %1021 = vmatpush1.msra.mxu0 0.0
        %1022 = vmatprep.subr.mxu0 0.0
        %1023 = vmatpush1.msra.mxu0 0.0
        %1024 = vmatprep.subr.mxu0 0.0
        %1025 = vmatpush1.msra.mxu0 0.0
        %1026 = vmatprep.subr.mxu0 0.0
        %1027 = vmatpush1.msra.mxu0 0.0
        %1028 = vmatprep.subr.mxu0 0.0
        %1029 = vmatpush1.msra.mxu0 0.0
        %1030 = vmatprep.subr.mxu0 0.0
        %1031 = vmatpush1.msra.mxu0 0.0
        %1032 = vmatprep.subr.mxu0 0.0
        %1033 = vmatpush1.msra.mxu0 0.0
        %1034 = vmatprep.subr.mxu0 0.0
        %1035 = vmatpush1.msra.mxu0 0.0
        %1036 = vmatprep.subr.mxu0 0.0
        %1037 = vmatpush1.msra.mxu0 0.0
        %1038 = vmatprep.subr.mxu0 0.0
        %1039 = vmatpush1.msra.mxu0 0.0
        %1040 = vmatprep.subr.mxu0 0.0
        %1041 = vmatpush1.msra.mxu0 0.0
        %1042 = vmatprep.subr.mxu0 0.0
        %1043 = vmatpush1.msra.mxu0 %v891
        %1044 = vmatprep.subr.mxu0 0.0
        %1045 = vmatpush1.msra.mxu0 %v885
        %1046 = vmatprep.subr.mxu0 0.0
        %1047 = vmatpush2.msra.mxu0 0.0
        %1048 = vmatprep.subr.mxu0 0.0
        %1049 = vmatpush2.msra.mxu0 0.0
        %1050 = vmatprep.subr.mxu0 0.0
        %1051 = vmatpush2.msra.mxu0 0.0
        %1052 = vmatprep.subr.mxu0 0.0
        %1053 = vmatpush2.msra.mxu0 0.0
        %1054 = vmatprep.subr.mxu0 0.0
        %1055 = vmatpush2.msra.mxu0 0.0
        %1056 = vmatprep.subr.mxu0 0.0
        %1057 = vmatpush2.msra.mxu0 0.0
        %1058 = vmatprep.subr.mxu0 0.0
        %1059 = vmatpush2.msra.mxu0 0.0
        %1060 = vmatprep.subr.mxu0 0.0
        %1061 = vmatpush2.msra.mxu0 0.0
        %1062 = vmatprep.subr.mxu0 0.0
        %1063 = vmatpush2.msra.mxu0 0.0
        %1064 = vmatprep.subr.mxu0 0.0
        %1065 = vmatpush2.msra.mxu0 0.0
        %1066 = vmatprep.subr.mxu0 0.0
        %1067 = vmatpush2.msra.mxu0 0.0
        %1068 = vmatprep.subr.mxu0 0.0
        %1069 = vmatpush2.msra.mxu0 0.0
        %1070 = vmatprep.subr.mxu0 0.0
        %1071 = vmatpush2.msra.mxu0 0.0
        %1072 = vmatprep.subr.mxu0 0.0
        %1073 = vmatpush2.msra.mxu0 0.0
        %1074 = vmatprep.subr.mxu0 0.0
        %1075 = vmatpush2.msra.mxu0 0.0
        %1076 = vmatprep.subr.mxu0 0.0
        %1077 = vmatpush2.msra.mxu0 0.0
        %1078 = vmatprep.mubr.f32.mxu0 0.0
        %1079 = vmatmul.mubr.f32.gmra.mxu0 %v1009
        %v1080 = vpop.f32.mrf.mxu0
        %v1081 = vadd.f32 0.0, %v1080
        %v1082 = vpop.f32.mrf.mxu0
        %1083 = vmatprep.mubr.f32.mxu0 0.0
        %1084 = vmatmul.mubr.f32.gmra.mxu0 %v1012
        %v1085 = vpop.f32.mrf.mxu0
        %v1086 = vadd.f32 0.0, %v1085
        %v1087 = vpop.f32.mrf.mxu0
        %1088 = vdwg.mxu0
        %v1089 = vld [vmem:[#allocation8] sm:$0xff]
        %v1090 = vld [vmem:[#allocation8 + $0x8] sm:$0xff]
        %v1092 = vsel %vm900, %v1081, 0
        %v1095 = vsel %vm900, %v1086, 0
        %1097 = vmatprep.subr.mxu0 0.0
        %1098 = vmatpush1.msra.mxu0 0.0
        %1099 = vmatprep.subr.mxu0 0.0
        %1100 = vmatpush1.msra.mxu0 0.0
        %1101 = vmatprep.subr.mxu0 0.0
        %1102 = vmatpush1.msra.mxu0 0.0
        %1103 = vmatprep.subr.mxu0 0.0
        %1104 = vmatpush1.msra.mxu0 0.0
        %1105 = vmatprep.subr.mxu0 0.0
        %1106 = vmatpush1.msra.mxu0 0.0
        %1107 = vmatprep.subr.mxu0 0.0
        %1108 = vmatpush1.msra.mxu0 0.0
        %1109 = vmatprep.subr.mxu0 0.0
        %1110 = vmatpush1.msra.mxu0 0.0
        %1111 = vmatprep.subr.mxu0 0.0
        %1112 = vmatpush1.msra.mxu0 0.0
        %1113 = vmatprep.subr.mxu0 0.0
        %1114 = vmatpush1.msra.mxu0 0.0
        %1115 = vmatprep.subr.mxu0 0.0
        %1116 = vmatpush1.msra.mxu0 0.0
        %1117 = vmatprep.subr.mxu0 0.0
        %1118 = vmatpush1.msra.mxu0 0.0
        %1119 = vmatprep.subr.mxu0 0.0
        %1120 = vmatpush1.msra.mxu0 0.0
        %1121 = vmatprep.subr.mxu0 0.0
        %1122 = vmatpush1.msra.mxu0 0.0
        %1123 = vmatprep.subr.mxu0 0.0
        %1124 = vmatpush1.msra.mxu0 0.0
        %1125 = vmatprep.subr.mxu0 0.0
        %1126 = vmatpush1.msra.mxu0 %v1090
        %1127 = vmatprep.subr.mxu0 0.0
        %1128 = vmatpush1.msra.mxu0 %v1089
        %1129 = vmatprep.subr.mxu0 0.0
        %1130 = vmatpush2.msra.mxu0 0.0
        %1131 = vmatprep.subr.mxu0 0.0
        %1132 = vmatpush2.msra.mxu0 0.0
        %1133 = vmatprep.subr.mxu0 0.0
        %1134 = vmatpush2.msra.mxu0 0.0
        %1135 = vmatprep.subr.mxu0 0.0
        %1136 = vmatpush2.msra.mxu0 0.0
        %1137 = vmatprep.subr.mxu0 0.0
        %1138 = vmatpush2.msra.mxu0 0.0
        %1139 = vmatprep.subr.mxu0 0.0
        %1140 = vmatpush2.msra.mxu0 0.0
        %1141 = vmatprep.subr.mxu0 0.0
        %1142 = vmatpush2.msra.mxu0 0.0
        %1143 = vmatprep.subr.mxu0 0.0
        %1144 = vmatpush2.msra.mxu0 0.0
        %1145 = vmatprep.subr.mxu0 0.0
        %1146 = vmatpush2.msra.mxu0 0.0
        %1147 = vmatprep.subr.mxu0 0.0
        %1148 = vmatpush2.msra.mxu0 0.0
        %1149 = vmatprep.subr.mxu0 0.0
        %1150 = vmatpush2.msra.mxu0 0.0
        %1151 = vmatprep.subr.mxu0 0.0
        %1152 = vmatpush2.msra.mxu0 0.0
        %1153 = vmatprep.subr.mxu0 0.0
        %1154 = vmatpush2.msra.mxu0 0.0
        %1155 = vmatprep.subr.mxu0 0.0
        %1156 = vmatpush2.msra.mxu0 0.0
        %1157 = vmatprep.subr.mxu0 0.0
        %1158 = vmatpush2.msra.mxu0 0.0
        %1159 = vmatprep.subr.mxu0 0.0
        %1160 = vmatpush2.msra.mxu0 0.0
        %1161 = vmatprep.mubr.f32.mxu0 0.0
        %1162 = vmatmul.mubr.f32.gmra.mxu0 %v1092
        %v1163 = vpop.f32.mrf.mxu0
        %v1164 = vadd.f32 0.0, %v1163
        %v1165 = vpop.f32.mrf.mxu0
        %1166 = vmatprep.mubr.f32.mxu0 0.0
        %1167 = vmatmul.mubr.f32.gmra.mxu0 %v1095
        %v1168 = vpop.f32.mrf.mxu0
        %v1169 = vadd.f32 0.0, %v1168
        %v1170 = vpop.f32.mrf.mxu0
        %1171 = vdwg.mxu0
        %v1173 = vlaneseq
        %v1174 = vshrl.u32 %v1173, 7
        %v1175 = vsub.s32 0, %v1174
        %v1176 = vrot.slane %v893, %v1175
        %v1178 = vadd.f32 %v1176, %v1164
        %v1179 = vadd.f32 %v1176, %v1169
        %1180 = vrot.lane.b32.xlu0 %v883, 112
        %v1181 = vpop.permute.xlu0 %1180
        %1182 = vrot.lane.b32.xlu0 %v889, 112
        %v1183 = vpop.permute.xlu0 %1182
        %1184 = vrot.lane.b32.xlu0 %v883, 48
        %v1185 = vpop.permute.xlu0 %1184
        %1186 = vrot.lane.b32.xlu0 %v889, 48
        %v1187 = vpop.permute.xlu0 %1186
        %v1188 = vsel %vm900, %v1181, 0
        %v1190 = vsel %vm900, %v1183, 0
        %v1192 = vsel %vm900, %v1185, 0
        %v1194 = vsel %vm900, %v1187, 0
        %1196 = vmatprep.subr.mxu0 0.0
        %1197 = vmatpush1.xpose.msra.mxu0 0.0
        %1198 = vmatprep.subr.mxu0 0.0
        %1199 = vmatpush1.xpose.msra.mxu0 0.0
        %1200 = vmatprep.subr.mxu0 0.0
        %1201 = vmatpush1.xpose.msra.mxu0 0.0
        %1202 = vmatprep.subr.mxu0 0.0
        %1203 = vmatpush1.xpose.msra.mxu0 0.0
        %1204 = vmatprep.subr.mxu0 0.0
        %1205 = vmatpush1.xpose.msra.mxu0 0.0
        %1206 = vmatprep.subr.mxu0 0.0
        %1207 = vmatpush1.xpose.msra.mxu0 0.0
        %1208 = vmatprep.subr.mxu0 0.0
        %1209 = vmatpush1.xpose.msra.mxu0 0.0
        %1210 = vmatprep.subr.mxu0 0.0
        %1211 = vmatpush1.xpose.msra.mxu0 0.0
        %1212 = vmatprep.subr.mxu0 0.0
        %1213 = vmatpush1.xpose.msra.mxu0 0.0
        %1214 = vmatprep.subr.mxu0 0.0
        %1215 = vmatpush1.xpose.msra.mxu0 0.0
        %1216 = vmatprep.subr.mxu0 0.0
        %1217 = vmatpush1.xpose.msra.mxu0 0.0
        %1218 = vmatprep.subr.mxu0 0.0
        %1219 = vmatpush1.xpose.msra.mxu0 0.0
        %1220 = vmatprep.subr.mxu0 0.0
        %1221 = vmatpush1.xpose.msra.mxu0 0.0
        %1222 = vmatprep.subr.mxu0 0.0
        %1223 = vmatpush1.xpose.msra.mxu0 0.0
        %1224 = vmatprep.subr.mxu0 0.0
        %1225 = vmatpush1.xpose.msra.mxu0 %v1194
        %1226 = vmatprep.subr.mxu0 0.0
        %1227 = vmatpush1.xpose.msra.mxu0 %v1192
        %1228 = vmatprep.subr.mxu0 0.0
        %1229 = vmatpush2.xpose.msra.mxu0 0.0
        %1230 = vmatprep.subr.mxu0 0.0
        %1231 = vmatpush2.xpose.msra.mxu0 0.0
        %1232 = vmatprep.subr.mxu0 0.0
        %1233 = vmatpush2.xpose.msra.mxu0 0.0
        %1234 = vmatprep.subr.mxu0 0.0
        %1235 = vmatpush2.xpose.msra.mxu0 0.0
        %1236 = vmatprep.subr.mxu0 0.0
        %1237 = vmatpush2.xpose.msra.mxu0 0.0
        %1238 = vmatprep.subr.mxu0 0.0
        %1239 = vmatpush2.xpose.msra.mxu0 0.0
        %1240 = vmatprep.subr.mxu0 0.0
        %1241 = vmatpush2.xpose.msra.mxu0 0.0
        %1242 = vmatprep.subr.mxu0 0.0
        %1243 = vmatpush2.xpose.msra.mxu0 0.0
        %1244 = vmatprep.subr.mxu0 0.0
        %1245 = vmatpush2.xpose.msra.mxu0 0.0
        %1246 = vmatprep.subr.mxu0 0.0
        %1247 = vmatpush2.xpose.msra.mxu0 0.0
        %1248 = vmatprep.subr.mxu0 0.0
        %1249 = vmatpush2.xpose.msra.mxu0 0.0
        %1250 = vmatprep.subr.mxu0 0.0
        %1251 = vmatpush2.xpose.msra.mxu0 0.0
        %1252 = vmatprep.subr.mxu0 0.0
        %1253 = vmatpush2.xpose.msra.mxu0 0.0
        %1254 = vmatprep.subr.mxu0 0.0
        %1255 = vmatpush2.xpose.msra.mxu0 0.0
        %1256 = vmatprep.subr.mxu0 0.0
        %1257 = vmatpush2.xpose.msra.mxu0 0.0
        %1258 = vmatprep.subr.mxu0 0.0
        %1259 = vmatpush2.xpose.msra.mxu0 0.0
        %1260 = vmatprep.mubr.f32.mxu0 0.0
        %1261 = vmatmul.mubr.f32.gmra.mxu0 %v1188
        %v1262 = vpop.f32.mrf.mxu0
        %v1263 = vadd.f32 0.0, %v1262
        %v1264 = vpop.f32.mrf.mxu0
        %1265 = vmatprep.mubr.f32.mxu0 0.0
        %1266 = vmatmul.mubr.f32.gmra.mxu0 %v1190
        %v1267 = vpop.f32.mrf.mxu0
        %v1268 = vadd.f32 0.0, %v1267
        %v1269 = vpop.f32.mrf.mxu0
        %1270 = vdwg.mxu0
        %v1271 = vmul.f32 %v1263, 0.25
        %v1272 = vmul.f32 %v1268, 0.25
        %v1273 = vsel %vm900, %v1271, -inf
        %1274 = vmax.xlane.f32.xlu0 %v1273
        %v1275 = vpop.xlane.xlu0 %1274
        %v1276 = vsel %vm900, %v1272, -inf
        %1277 = vmax.xlane.f32.xlu0 %v1276
        %v1278 = vpop.xlane.xlu0 %1277
        %v1279 = vsub.f32 %v1271, %v1275
        %v1280 = vsub.f32 %v1272, %v1278
        %v1281 = vmul.f32 %v1279, 1.442695
        %v1282 = vpow.pop %v1281
        %v1283 = vmul.f32 %v1280, 1.442695
        %v1284 = vpow.pop %v1283
        %v1285 = vsel %vm900, %v1282, 0.0
        %1286 = vadd.xlane.f32.xlu0 %v1285
        %v1287 = vpop.xlane.xlu0 %1286
        %v1288 = vsel %vm900, %v1284, 0.0
        %1289 = vadd.xlane.f32.xlu0 %v1288
        %v1290 = vpop.xlane.xlu0 %1289
        %v1291 = vrcp.pop %v1287
        %v1292 = vrcp.pop %v1290
        %v1293 = vmul.f32 %v1282, %v1291
        %v1294 = vmul.f32 %v1284, %v1292
        %1297 = vrot.lane.b32.xlu0 %v885, 112
        %v1298 = vpop.permute.xlu0 %1297
        %1299 = vrot.lane.b32.xlu0 %v891, 112
        %v1300 = vpop.permute.xlu0 %1299
        %v1304 = vsel %vm900, %v1293, 0
        %v1307 = vsel %vm900, %v1294, 0
        %1309 = vmatprep.subr.mxu0 0.0
        %1310 = vmatpush1.msra.mxu0 0.0
        %1311 = vmatprep.subr.mxu0 0.0
        %1312 = vmatpush1.msra.mxu0 0.0
        %1313 = vmatprep.subr.mxu0 0.0
        %1314 = vmatpush1.msra.mxu0 0.0
        %1315 = vmatprep.subr.mxu0 0.0
        %1316 = vmatpush1.msra.mxu0 0.0
        %1317 = vmatprep.subr.mxu0 0.0
        %1318 = vmatpush1.msra.mxu0 0.0
        %1319 = vmatprep.subr.mxu0 0.0
        %1320 = vmatpush1.msra.mxu0 0.0
        %1321 = vmatprep.subr.mxu0 0.0
        %1322 = vmatpush1.msra.mxu0 0.0
        %1323 = vmatprep.subr.mxu0 0.0
        %1324 = vmatpush1.msra.mxu0 0.0
        %1325 = vmatprep.subr.mxu0 0.0
        %1326 = vmatpush1.msra.mxu0 0.0
        %1327 = vmatprep.subr.mxu0 0.0
        %1328 = vmatpush1.msra.mxu0 0.0
        %1329 = vmatprep.subr.mxu0 0.0
        %1330 = vmatpush1.msra.mxu0 0.0
        %1331 = vmatprep.subr.mxu0 0.0
        %1332 = vmatpush1.msra.mxu0 0.0
        %1333 = vmatprep.subr.mxu0 0.0
        %1334 = vmatpush1.msra.mxu0 0.0
        %1335 = vmatprep.subr.mxu0 0.0
        %1336 = vmatpush1.msra.mxu0 0.0
        %1337 = vmatprep.subr.mxu0 0.0
        %1338 = vmatpush1.msra.mxu0 %v1300
        %1339 = vmatprep.subr.mxu0 0.0
        %1340 = vmatpush1.msra.mxu0 %v1298
        %1341 = vmatprep.subr.mxu0 0.0
        %1342 = vmatpush2.msra.mxu0 0.0
        %1343 = vmatprep.subr.mxu0 0.0
        %1344 = vmatpush2.msra.mxu0 0.0
        %1345 = vmatprep.subr.mxu0 0.0
        %1346 = vmatpush2.msra.mxu0 0.0
        %1347 = vmatprep.subr.mxu0 0.0
        %1348 = vmatpush2.msra.mxu0 0.0
        %1349 = vmatprep.subr.mxu0 0.0
        %1350 = vmatpush2.msra.mxu0 0.0
        %1351 = vmatprep.subr.mxu0 0.0
        %1352 = vmatpush2.msra.mxu0 0.0
        %1353 = vmatprep.subr.mxu0 0.0
        %1354 = vmatpush2.msra.mxu0 0.0
        %1355 = vmatprep.subr.mxu0 0.0
        %1356 = vmatpush2.msra.mxu0 0.0
        %1357 = vmatprep.subr.mxu0 0.0
        %1358 = vmatpush2.msra.mxu0 0.0
        %1359 = vmatprep.subr.mxu0 0.0
        %1360 = vmatpush2.msra.mxu0 0.0
        %1361 = vmatprep.subr.mxu0 0.0
        %1362 = vmatpush2.msra.mxu0 0.0
        %1363 = vmatprep.subr.mxu0 0.0
        %1364 = vmatpush2.msra.mxu0 0.0
        %1365 = vmatprep.subr.mxu0 0.0
        %1366 = vmatpush2.msra.mxu0 0.0
        %1367 = vmatprep.subr.mxu0 0.0
        %1368 = vmatpush2.msra.mxu0 0.0
        %1369 = vmatprep.subr.mxu0 0.0
        %1370 = vmatpush2.msra.mxu0 0.0
        %1371 = vmatprep.subr.mxu0 0.0
        %1372 = vmatpush2.msra.mxu0 0.0
        %1373 = vmatprep.mubr.f32.mxu0 0.0
        %1374 = vmatmul.mubr.f32.gmra.mxu0 %v1304
        %v1375 = vpop.f32.mrf.mxu0
        %v1376 = vadd.f32 0.0, %v1375
        %v1377 = vpop.f32.mrf.mxu0
        %1378 = vmatprep.mubr.f32.mxu0 0.0
        %1379 = vmatmul.mubr.f32.gmra.mxu0 %v1307
        %v1380 = vpop.f32.mrf.mxu0
        %v1381 = vadd.f32 0.0, %v1380
        %v1382 = vpop.f32.mrf.mxu0
        %1383 = vdwg.mxu0
        %v1384 = vld [vmem:[#allocation8 + $0x10] sm:$0xff]
        %v1385 = vld [vmem:[#allocation8 + $0x18] sm:$0xff]
        %v1387 = vsel %vm900, %v1376, 0
        %v1390 = vsel %vm900, %v1381, 0
        %1392 = vmatprep.subr.mxu0 0.0
        %1393 = vmatpush1.msra.mxu0 0.0
        %1394 = vmatprep.subr.mxu0 0.0
        %1395 = vmatpush1.msra.mxu0 0.0
        %1396 = vmatprep.subr.mxu0 0.0
        %1397 = vmatpush1.msra.mxu0 0.0
        %1398 = vmatprep.subr.mxu0 0.0
        %1399 = vmatpush1.msra.mxu0 0.0
        %1400 = vmatprep.subr.mxu0 0.0
        %1401 = vmatpush1.msra.mxu0 0.0
        %1402 = vmatprep.subr.mxu0 0.0
        %1403 = vmatpush1.msra.mxu0 0.0
        %1404 = vmatprep.subr.mxu0 0.0
        %1405 = vmatpush1.msra.mxu0 0.0
        %1406 = vmatprep.subr.mxu0 0.0
        %1407 = vmatpush1.msra.mxu0 0.0
        %1408 = vmatprep.subr.mxu0 0.0
        %1409 = vmatpush1.msra.mxu0 0.0
        %1410 = vmatprep.subr.mxu0 0.0
        %1411 = vmatpush1.msra.mxu0 0.0
        %1412 = vmatprep.subr.mxu0 0.0
        %1413 = vmatpush1.msra.mxu0 0.0
        %1414 = vmatprep.subr.mxu0 0.0
        %1415 = vmatpush1.msra.mxu0 0.0
        %1416 = vmatprep.subr.mxu0 0.0
        %1417 = vmatpush1.msra.mxu0 0.0
        %1418 = vmatprep.subr.mxu0 0.0
        %1419 = vmatpush1.msra.mxu0 0.0
        %1420 = vmatprep.subr.mxu0 0.0
        %1421 = vmatpush1.msra.mxu0 %v1385
        %1422 = vmatprep.subr.mxu0 0.0
        %1423 = vmatpush1.msra.mxu0 %v1384
        %1424 = vmatprep.subr.mxu0 0.0
        %1425 = vmatpush2.msra.mxu0 0.0
        %1426 = vmatprep.subr.mxu0 0.0
        %1427 = vmatpush2.msra.mxu0 0.0
        %1428 = vmatprep.subr.mxu0 0.0
        %1429 = vmatpush2.msra.mxu0 0.0
        %1430 = vmatprep.subr.mxu0 0.0
        %1431 = vmatpush2.msra.mxu0 0.0
        %1432 = vmatprep.subr.mxu0 0.0
        %1433 = vmatpush2.msra.mxu0 0.0
        %1434 = vmatprep.subr.mxu0 0.0
        %1435 = vmatpush2.msra.mxu0 0.0
        %1436 = vmatprep.subr.mxu0 0.0
        %1437 = vmatpush2.msra.mxu0 0.0
        %1438 = vmatprep.subr.mxu0 0.0
        %1439 = vmatpush2.msra.mxu0 0.0
        %1440 = vmatprep.subr.mxu0 0.0
        %1441 = vmatpush2.msra.mxu0 0.0
        %1442 = vmatprep.subr.mxu0 0.0
        %1443 = vmatpush2.msra.mxu0 0.0
        %1444 = vmatprep.subr.mxu0 0.0
        %1445 = vmatpush2.msra.mxu0 0.0
        %1446 = vmatprep.subr.mxu0 0.0
        %1447 = vmatpush2.msra.mxu0 0.0
        %1448 = vmatprep.subr.mxu0 0.0
        %1449 = vmatpush2.msra.mxu0 0.0
        %1450 = vmatprep.subr.mxu0 0.0
        %1451 = vmatpush2.msra.mxu0 0.0
        %1452 = vmatprep.subr.mxu0 0.0
        %1453 = vmatpush2.msra.mxu0 0.0
        %1454 = vmatprep.subr.mxu0 0.0
        %1455 = vmatpush2.msra.mxu0 0.0
        %1456 = vmatprep.mubr.f32.mxu0 0.0
        %1457 = vmatmul.mubr.f32.gmra.mxu0 %v1387
        %v1458 = vpop.f32.mrf.mxu0
        %v1459 = vadd.f32 0.0, %v1458
        %v1460 = vpop.f32.mrf.mxu0
        %1461 = vmatprep.mubr.f32.mxu0 0.0
        %1462 = vmatmul.mubr.f32.gmra.mxu0 %v1390
        %v1463 = vpop.f32.mrf.mxu0
        %v1464 = vadd.f32 0.0, %v1463
        %v1465 = vpop.f32.mrf.mxu0
        %1466 = vdwg.mxu0
        %v1467 = vadd.f32 %v1178, %v1459
        %v1468 = vadd.f32 %v1179, %v1464
        %1469 = vrot.lane.b32.xlu0 %v883, 96
        %v1470 = vpop.permute.xlu0 %1469
        %1471 = vrot.lane.b32.xlu0 %v889, 96
        %v1472 = vpop.permute.xlu0 %1471
        %1473 = vrot.lane.b32.xlu0 %v883, 32
        %v1474 = vpop.permute.xlu0 %1473
        %1475 = vrot.lane.b32.xlu0 %v889, 32
        %v1476 = vpop.permute.xlu0 %1475
        %v1477 = vsel %vm900, %v1470, 0
        %v1479 = vsel %vm900, %v1472, 0
        %v1481 = vsel %vm900, %v1474, 0
        %v1483 = vsel %vm900, %v1476, 0
        %1485 = vmatprep.subr.mxu0 0.0
        %1486 = vmatpush1.xpose.msra.mxu0 0.0
        %1487 = vmatprep.subr.mxu0 0.0
        %1488 = vmatpush1.xpose.msra.mxu0 0.0
        %1489 = vmatprep.subr.mxu0 0.0
        %1490 = vmatpush1.xpose.msra.mxu0 0.0
        %1491 = vmatprep.subr.mxu0 0.0
        %1492 = vmatpush1.xpose.msra.mxu0 0.0
        %1493 = vmatprep.subr.mxu0 0.0
        %1494 = vmatpush1.xpose.msra.mxu0 0.0
        %1495 = vmatprep.subr.mxu0 0.0
        %1496 = vmatpush1.xpose.msra.mxu0 0.0
        %1497 = vmatprep.subr.mxu0 0.0
        %1498 = vmatpush1.xpose.msra.mxu0 0.0
        %1499 = vmatprep.subr.mxu0 0.0
        %1500 = vmatpush1.xpose.msra.mxu0 0.0
        %1501 = vmatprep.subr.mxu0 0.0
        %1502 = vmatpush1.xpose.msra.mxu0 0.0
        %1503 = vmatprep.subr.mxu0 0.0
        %1504 = vmatpush1.xpose.msra.mxu0 0.0
        %1505 = vmatprep.subr.mxu0 0.0
        %1506 = vmatpush1.xpose.msra.mxu0 0.0
        %1507 = vmatprep.subr.mxu0 0.0
        %1508 = vmatpush1.xpose.msra.mxu0 0.0
        %1509 = vmatprep.subr.mxu0 0.0
        %1510 = vmatpush1.xpose.msra.mxu0 0.0
        %1511 = vmatprep.subr.mxu0 0.0
        %1512 = vmatpush1.xpose.msra.mxu0 0.0
        %1513 = vmatprep.subr.mxu0 0.0
        %1514 = vmatpush1.xpose.msra.mxu0 %v1483
        %1515 = vmatprep.subr.mxu0 0.0
        %1516 = vmatpush1.xpose.msra.mxu0 %v1481
        %1517 = vmatprep.subr.mxu0 0.0
        %1518 = vmatpush2.xpose.msra.mxu0 0.0
        %1519 = vmatprep.subr.mxu0 0.0
        %1520 = vmatpush2.xpose.msra.mxu0 0.0
        %1521 = vmatprep.subr.mxu0 0.0
        %1522 = vmatpush2.xpose.msra.mxu0 0.0
        %1523 = vmatprep.subr.mxu0 0.0
        %1524 = vmatpush2.xpose.msra.mxu0 0.0
        %1525 = vmatprep.subr.mxu0 0.0
        %1526 = vmatpush2.xpose.msra.mxu0 0.0
        %1527 = vmatprep.subr.mxu0 0.0
        %1528 = vmatpush2.xpose.msra.mxu0 0.0
        %1529 = vmatprep.subr.mxu0 0.0
        %1530 = vmatpush2.xpose.msra.mxu0 0.0
        %1531 = vmatprep.subr.mxu0 0.0
        %1532 = vmatpush2.xpose.msra.mxu0 0.0
        %1533 = vmatprep.subr.mxu0 0.0
        %1534 = vmatpush2.xpose.msra.mxu0 0.0
        %1535 = vmatprep.subr.mxu0 0.0
        %1536 = vmatpush2.xpose.msra.mxu0 0.0
        %1537 = vmatprep.subr.mxu0 0.0
        %1538 = vmatpush2.xpose.msra.mxu0 0.0
        %1539 = vmatprep.subr.mxu0 0.0
        %1540 = vmatpush2.xpose.msra.mxu0 0.0
        %1541 = vmatprep.subr.mxu0 0.0
        %1542 = vmatpush2.xpose.msra.mxu0 0.0
        %1543 = vmatprep.subr.mxu0 0.0
        %1544 = vmatpush2.xpose.msra.mxu0 0.0
        %1545 = vmatprep.subr.mxu0 0.0
        %1546 = vmatpush2.xpose.msra.mxu0 0.0
        %1547 = vmatprep.subr.mxu0 0.0
        %1548 = vmatpush2.xpose.msra.mxu0 0.0
        %1549 = vmatprep.mubr.f32.mxu0 0.0
        %1550 = vmatmul.mubr.f32.gmra.mxu0 %v1477
        %v1551 = vpop.f32.mrf.mxu0
        %v1552 = vadd.f32 0.0, %v1551
        %v1553 = vpop.f32.mrf.mxu0
        %1554 = vmatprep.mubr.f32.mxu0 0.0
        %1555 = vmatmul.mubr.f32.gmra.mxu0 %v1479
        %v1556 = vpop.f32.mrf.mxu0
        %v1557 = vadd.f32 0.0, %v1556
        %v1558 = vpop.f32.mrf.mxu0
        %1559 = vdwg.mxu0
        %v1560 = vmul.f32 %v1552, 0.25
        %v1561 = vmul.f32 %v1557, 0.25
        %v1562 = vsel %vm900, %v1560, -inf
        %1563 = vmax.xlane.f32.xlu0 %v1562
        %v1564 = vpop.xlane.xlu0 %1563
        %v1565 = vsel %vm900, %v1561, -inf
        %1566 = vmax.xlane.f32.xlu0 %v1565
        %v1567 = vpop.xlane.xlu0 %1566
        %v1568 = vsub.f32 %v1560, %v1564
        %v1569 = vsub.f32 %v1561, %v1567
        %v1570 = vmul.f32 %v1568, 1.442695
        %v1571 = vpow.pop %v1570
        %v1572 = vmul.f32 %v1569, 1.442695
        %v1573 = vpow.pop %v1572
        %v1574 = vsel %vm900, %v1571, 0.0
        %1575 = vadd.xlane.f32.xlu0 %v1574
        %v1576 = vpop.xlane.xlu0 %1575
        %v1577 = vsel %vm900, %v1573, 0.0
        %1578 = vadd.xlane.f32.xlu0 %v1577
        %v1579 = vpop.xlane.xlu0 %1578
        %v1580 = vrcp.pop %v1576
        %v1581 = vrcp.pop %v1579
        %v1582 = vmul.f32 %v1571, %v1580
        %v1583 = vmul.f32 %v1573, %v1581
        %1584 = vrot.lane.b32.xlu0 %v885, 96
        %v1585 = vpop.permute.xlu0 %1584
        %1586 = vrot.lane.b32.xlu0 %v891, 96
        %v1587 = vpop.permute.xlu0 %1586
        %v1591 = vsel %vm900, %v1582, 0
        %v1594 = vsel %vm900, %v1583, 0
        %1596 = vmatprep.subr.mxu0 0.0
        %1597 = vmatpush1.msra.mxu0 0.0
        %1598 = vmatprep.subr.mxu0 0.0
        %1599 = vmatpush1.msra.mxu0 0.0
        %1600 = vmatprep.subr.mxu0 0.0
        %1601 = vmatpush1.msra.mxu0 0.0
        %1602 = vmatprep.subr.mxu0 0.0
        %1603 = vmatpush1.msra.mxu0 0.0
        %1604 = vmatprep.subr.mxu0 0.0
        %1605 = vmatpush1.msra.mxu0 0.0
        %1606 = vmatprep.subr.mxu0 0.0
        %1607 = vmatpush1.msra.mxu0 0.0
        %1608 = vmatprep.subr.mxu0 0.0
        %1609 = vmatpush1.msra.mxu0 0.0
        %1610 = vmatprep.subr.mxu0 0.0
        %1611 = vmatpush1.msra.mxu0 0.0
        %1612 = vmatprep.subr.mxu0 0.0
        %1613 = vmatpush1.msra.mxu0 0.0
        %1614 = vmatprep.subr.mxu0 0.0
        %1615 = vmatpush1.msra.mxu0 0.0
        %1616 = vmatprep.subr.mxu0 0.0
        %1617 = vmatpush1.msra.mxu0 0.0
        %1618 = vmatprep.subr.mxu0 0.0
        %1619 = vmatpush1.msra.mxu0 0.0
        %1620 = vmatprep.subr.mxu0 0.0
        %1621 = vmatpush1.msra.mxu0 0.0
        %1622 = vmatprep.subr.mxu0 0.0
        %1623 = vmatpush1.msra.mxu0 0.0
        %1624 = vmatprep.subr.mxu0 0.0
        %1625 = vmatpush1.msra.mxu0 %v1587
        %1626 = vmatprep.subr.mxu0 0.0
        %1627 = vmatpush1.msra.mxu0 %v1585
        %1628 = vmatprep.subr.mxu0 0.0
        %1629 = vmatpush2.msra.mxu0 0.0
        %1630 = vmatprep.subr.mxu0 0.0
        %1631 = vmatpush2.msra.mxu0 0.0
        %1632 = vmatprep.subr.mxu0 0.0
        %1633 = vmatpush2.msra.mxu0 0.0
        %1634 = vmatprep.subr.mxu0 0.0
        %1635 = vmatpush2.msra.mxu0 0.0
        %1636 = vmatprep.subr.mxu0 0.0
        %1637 = vmatpush2.msra.mxu0 0.0
        %1638 = vmatprep.subr.mxu0 0.0
        %1639 = vmatpush2.msra.mxu0 0.0
        %1640 = vmatprep.subr.mxu0 0.0
        %1641 = vmatpush2.msra.mxu0 0.0
        %1642 = vmatprep.subr.mxu0 0.0
        %1643 = vmatpush2.msra.mxu0 0.0
        %1644 = vmatprep.subr.mxu0 0.0
        %1645 = vmatpush2.msra.mxu0 0.0
        %1646 = vmatprep.subr.mxu0 0.0
        %1647 = vmatpush2.msra.mxu0 0.0
        %1648 = vmatprep.subr.mxu0 0.0
        %1649 = vmatpush2.msra.mxu0 0.0
        %1650 = vmatprep.subr.mxu0 0.0
        %1651 = vmatpush2.msra.mxu0 0.0
        %1652 = vmatprep.subr.mxu0 0.0
        %1653 = vmatpush2.msra.mxu0 0.0
        %1654 = vmatprep.subr.mxu0 0.0
        %1655 = vmatpush2.msra.mxu0 0.0
        %1656 = vmatprep.subr.mxu0 0.0
        %1657 = vmatpush2.msra.mxu0 0.0
        %1658 = vmatprep.subr.mxu0 0.0
        %1659 = vmatpush2.msra.mxu0 0.0
        %1660 = vmatprep.mubr.f32.mxu0 0.0
        %1661 = vmatmul.mubr.f32.gmra.mxu0 %v1591
        %v1662 = vpop.f32.mrf.mxu0
        %v1663 = vadd.f32 0.0, %v1662
        %v1664 = vpop.f32.mrf.mxu0
        %1665 = vmatprep.mubr.f32.mxu0 0.0
        %1666 = vmatmul.mubr.f32.gmra.mxu0 %v1594
        %v1667 = vpop.f32.mrf.mxu0
        %v1668 = vadd.f32 0.0, %v1667
        %v1669 = vpop.f32.mrf.mxu0
        %1670 = vdwg.mxu0
        %v1671 = vld [vmem:[#allocation8 + $0x20] sm:$0xff]
        %v1672 = vld [vmem:[#allocation8 + $0x28] sm:$0xff]
        %v1674 = vsel %vm900, %v1663, 0
        %v1677 = vsel %vm900, %v1668, 0
        %1679 = vmatprep.subr.mxu0 0.0
        %1680 = vmatpush1.msra.mxu0 0.0
        %1681 = vmatprep.subr.mxu0 0.0
        %1682 = vmatpush1.msra.mxu0 0.0
        %1683 = vmatprep.subr.mxu0 0.0
        %1684 = vmatpush1.msra.mxu0 0.0
        %1685 = vmatprep.subr.mxu0 0.0
        %1686 = vmatpush1.msra.mxu0 0.0
        %1687 = vmatprep.subr.mxu0 0.0
        %1688 = vmatpush1.msra.mxu0 0.0
        %1689 = vmatprep.subr.mxu0 0.0
        %1690 = vmatpush1.msra.mxu0 0.0
        %1691 = vmatprep.subr.mxu0 0.0
        %1692 = vmatpush1.msra.mxu0 0.0
        %1693 = vmatprep.subr.mxu0 0.0
        %1694 = vmatpush1.msra.mxu0 0.0
        %1695 = vmatprep.subr.mxu0 0.0
        %1696 = vmatpush1.msra.mxu0 0.0
        %1697 = vmatprep.subr.mxu0 0.0
        %1698 = vmatpush1.msra.mxu0 0.0
        %1699 = vmatprep.subr.mxu0 0.0
        %1700 = vmatpush1.msra.mxu0 0.0
        %1701 = vmatprep.subr.mxu0 0.0
        %1702 = vmatpush1.msra.mxu0 0.0
        %1703 = vmatprep.subr.mxu0 0.0
        %1704 = vmatpush1.msra.mxu0 0.0
        %1705 = vmatprep.subr.mxu0 0.0
        %1706 = vmatpush1.msra.mxu0 0.0
        %1707 = vmatprep.subr.mxu0 0.0
        %1708 = vmatpush1.msra.mxu0 %v1672
        %1709 = vmatprep.subr.mxu0 0.0
        %1710 = vmatpush1.msra.mxu0 %v1671
        %1711 = vmatprep.subr.mxu0 0.0
        %1712 = vmatpush2.msra.mxu0 0.0
        %1713 = vmatprep.subr.mxu0 0.0
        %1714 = vmatpush2.msra.mxu0 0.0
        %1715 = vmatprep.subr.mxu0 0.0
        %1716 = vmatpush2.msra.mxu0 0.0
        %1717 = vmatprep.subr.mxu0 0.0
        %1718 = vmatpush2.msra.mxu0 0.0
        %1719 = vmatprep.subr.mxu0 0.0
        %1720 = vmatpush2.msra.mxu0 0.0
        %1721 = vmatprep.subr.mxu0 0.0
        %1722 = vmatpush2.msra.mxu0 0.0
        %1723 = vmatprep.subr.mxu0 0.0
        %1724 = vmatpush2.msra.mxu0 0.0
        %1725 = vmatprep.subr.mxu0 0.0
        %1726 = vmatpush2.msra.mxu0 0.0
        %1727 = vmatprep.subr.mxu0 0.0
        %1728 = vmatpush2.msra.mxu0 0.0
        %1729 = vmatprep.subr.mxu0 0.0
        %1730 = vmatpush2.msra.mxu0 0.0
        %1731 = vmatprep.subr.mxu0 0.0
        %1732 = vmatpush2.msra.mxu0 0.0
        %1733 = vmatprep.subr.mxu0 0.0
        %1734 = vmatpush2.msra.mxu0 0.0
        %1735 = vmatprep.subr.mxu0 0.0
        %1736 = vmatpush2.msra.mxu0 0.0
        %1737 = vmatprep.subr.mxu0 0.0
        %1738 = vmatpush2.msra.mxu0 0.0
        %1739 = vmatprep.subr.mxu0 0.0
        %1740 = vmatpush2.msra.mxu0 0.0
        %1741 = vmatprep.subr.mxu0 0.0
        %1742 = vmatpush2.msra.mxu0 0.0
        %1743 = vmatprep.mubr.f32.mxu0 0.0
        %1744 = vmatmul.mubr.f32.gmra.mxu0 %v1674
        %v1745 = vpop.f32.mrf.mxu0
        %v1746 = vadd.f32 0.0, %v1745
        %v1747 = vpop.f32.mrf.mxu0
        %1748 = vmatprep.mubr.f32.mxu0 0.0
        %1749 = vmatmul.mubr.f32.gmra.mxu0 %v1677
        %v1750 = vpop.f32.mrf.mxu0
        %v1751 = vadd.f32 0.0, %v1750
        %v1752 = vpop.f32.mrf.mxu0
        %1753 = vdwg.mxu0
        %v1754 = vadd.f32 %v1467, %v1746
        %v1755 = vadd.f32 %v1468, %v1751
        %1756 = vrot.lane.b32.xlu0 %v883, 80
        %v1757 = vpop.permute.xlu0 %1756
        %1758 = vrot.lane.b32.xlu0 %v889, 80
        %v1759 = vpop.permute.xlu0 %1758
        %1760 = vrot.lane.b32.xlu0 %v883, 16
        %v1761 = vpop.permute.xlu0 %1760
        %1762 = vrot.lane.b32.xlu0 %v889, 16
        %v1763 = vpop.permute.xlu0 %1762
        %v1764 = vsel %vm900, %v1757, 0
        %v1766 = vsel %vm900, %v1759, 0
        %v1768 = vsel %vm900, %v1761, 0
        %v1770 = vsel %vm900, %v1763, 0
        %1772 = vmatprep.subr.mxu0 0.0
        %1773 = vmatpush1.xpose.msra.mxu0 0.0
        %1774 = vmatprep.subr.mxu0 0.0
        %1775 = vmatpush1.xpose.msra.mxu0 0.0
        %1776 = vmatprep.subr.mxu0 0.0
        %1777 = vmatpush1.xpose.msra.mxu0 0.0
        %1778 = vmatprep.subr.mxu0 0.0
        %1779 = vmatpush1.xpose.msra.mxu0 0.0
        %1780 = vmatprep.subr.mxu0 0.0
        %1781 = vmatpush1.xpose.msra.mxu0 0.0
        %1782 = vmatprep.subr.mxu0 0.0
        %1783 = vmatpush1.xpose.msra.mxu0 0.0
        %1784 = vmatprep.subr.mxu0 0.0
        %1785 = vmatpush1.xpose.msra.mxu0 0.0
        %1786 = vmatprep.subr.mxu0 0.0
        %1787 = vmatpush1.xpose.msra.mxu0 0.0
        %1788 = vmatprep.subr.mxu0 0.0
        %1789 = vmatpush1.xpose.msra.mxu0 0.0
        %1790 = vmatprep.subr.mxu0 0.0
        %1791 = vmatpush1.xpose.msra.mxu0 0.0
        %1792 = vmatprep.subr.mxu0 0.0
        %1793 = vmatpush1.xpose.msra.mxu0 0.0
        %1794 = vmatprep.subr.mxu0 0.0
        %1795 = vmatpush1.xpose.msra.mxu0 0.0
        %1796 = vmatprep.subr.mxu0 0.0
        %1797 = vmatpush1.xpose.msra.mxu0 0.0
        %1798 = vmatprep.subr.mxu0 0.0
        %1799 = vmatpush1.xpose.msra.mxu0 0.0
        %1800 = vmatprep.subr.mxu0 0.0
        %1801 = vmatpush1.xpose.msra.mxu0 %v1770
        %1802 = vmatprep.subr.mxu0 0.0
        %1803 = vmatpush1.xpose.msra.mxu0 %v1768
        %1804 = vmatprep.subr.mxu0 0.0
        %1805 = vmatpush2.xpose.msra.mxu0 0.0
        %1806 = vmatprep.subr.mxu0 0.0
        %1807 = vmatpush2.xpose.msra.mxu0 0.0
        %1808 = vmatprep.subr.mxu0 0.0
        %1809 = vmatpush2.xpose.msra.mxu0 0.0
        %1810 = vmatprep.subr.mxu0 0.0
        %1811 = vmatpush2.xpose.msra.mxu0 0.0
        %1812 = vmatprep.subr.mxu0 0.0
        %1813 = vmatpush2.xpose.msra.mxu0 0.0
        %1814 = vmatprep.subr.mxu0 0.0
        %1815 = vmatpush2.xpose.msra.mxu0 0.0
        %1816 = vmatprep.subr.mxu0 0.0
        %1817 = vmatpush2.xpose.msra.mxu0 0.0
        %1818 = vmatprep.subr.mxu0 0.0
        %1819 = vmatpush2.xpose.msra.mxu0 0.0
        %1820 = vmatprep.subr.mxu0 0.0
        %1821 = vmatpush2.xpose.msra.mxu0 0.0
        %1822 = vmatprep.subr.mxu0 0.0
        %1823 = vmatpush2.xpose.msra.mxu0 0.0
        %1824 = vmatprep.subr.mxu0 0.0
        %1825 = vmatpush2.xpose.msra.mxu0 0.0
        %1826 = vmatprep.subr.mxu0 0.0
        %1827 = vmatpush2.xpose.msra.mxu0 0.0
        %1828 = vmatprep.subr.mxu0 0.0
        %1829 = vmatpush2.xpose.msra.mxu0 0.0
        %1830 = vmatprep.subr.mxu0 0.0
        %1831 = vmatpush2.xpose.msra.mxu0 0.0
        %1832 = vmatprep.subr.mxu0 0.0
        %1833 = vmatpush2.xpose.msra.mxu0 0.0
        %1834 = vmatprep.subr.mxu0 0.0
        %1835 = vmatpush2.xpose.msra.mxu0 0.0
        %1836 = vmatprep.mubr.f32.mxu0 0.0
        %1837 = vmatmul.mubr.f32.gmra.mxu0 %v1764
        %v1838 = vpop.f32.mrf.mxu0
        %v1839 = vadd.f32 0.0, %v1838
        %v1840 = vpop.f32.mrf.mxu0
        %1841 = vmatprep.mubr.f32.mxu0 0.0
        %1842 = vmatmul.mubr.f32.gmra.mxu0 %v1766
        %v1843 = vpop.f32.mrf.mxu0
        %v1844 = vadd.f32 0.0, %v1843
        %v1845 = vpop.f32.mrf.mxu0
        %1846 = vdwg.mxu0
        %v1847 = vmul.f32 %v1839, 0.25
        %v1848 = vmul.f32 %v1844, 0.25
        %v1849 = vsel %vm900, %v1847, -inf
        %1850 = vmax.xlane.f32.xlu0 %v1849
        %v1851 = vpop.xlane.xlu0 %1850
        %v1852 = vsel %vm900, %v1848, -inf
        %1853 = vmax.xlane.f32.xlu0 %v1852
        %v1854 = vpop.xlane.xlu0 %1853
        %v1855 = vsub.f32 %v1847, %v1851
        %v1856 = vsub.f32 %v1848, %v1854
        %v1857 = vmul.f32 %v1855, 1.442695
        %v1858 = vpow.pop %v1857
        %v1859 = vmul.f32 %v1856, 1.442695
        %v1860 = vpow.pop %v1859
        %v1861 = vsel %vm900, %v1858, 0.0
        %1862 = vadd.xlane.f32.xlu0 %v1861
        %v1863 = vpop.xlane.xlu0 %1862
        %v1864 = vsel %vm900, %v1860, 0.0
        %1865 = vadd.xlane.f32.xlu0 %v1864
        %v1866 = vpop.xlane.xlu0 %1865
        %v1867 = vrcp.pop %v1863
        %v1868 = vrcp.pop %v1866
        %v1869 = vmul.f32 %v1858, %v1867
        %v1870 = vmul.f32 %v1860, %v1868
        %1871 = vrot.lane.b32.xlu0 %v885, 80
        %v1872 = vpop.permute.xlu0 %1871
        %1873 = vrot.lane.b32.xlu0 %v891, 80
        %v1874 = vpop.permute.xlu0 %1873
        %v1878 = vsel %vm900, %v1869, 0
        %v1881 = vsel %vm900, %v1870, 0
        %1883 = vmatprep.subr.mxu0 0.0
        %1884 = vmatpush1.msra.mxu0 0.0
        %1885 = vmatprep.subr.mxu0 0.0
        %1886 = vmatpush1.msra.mxu0 0.0
        %1887 = vmatprep.subr.mxu0 0.0
        %1888 = vmatpush1.msra.mxu0 0.0
        %1889 = vmatprep.subr.mxu0 0.0
        %1890 = vmatpush1.msra.mxu0 0.0
        %1891 = vmatprep.subr.mxu0 0.0
        %1892 = vmatpush1.msra.mxu0 0.0
        %1893 = vmatprep.subr.mxu0 0.0
        %1894 = vmatpush1.msra.mxu0 0.0
        %1895 = vmatprep.subr.mxu0 0.0
        %1896 = vmatpush1.msra.mxu0 0.0
        %1897 = vmatprep.subr.mxu0 0.0
        %1898 = vmatpush1.msra.mxu0 0.0
        %1899 = vmatprep.subr.mxu0 0.0
        %1900 = vmatpush1.msra.mxu0 0.0
        %1901 = vmatprep.subr.mxu0 0.0
        %1902 = vmatpush1.msra.mxu0 0.0
        %1903 = vmatprep.subr.mxu0 0.0
        %1904 = vmatpush1.msra.mxu0 0.0
        %1905 = vmatprep.subr.mxu0 0.0
        %1906 = vmatpush1.msra.mxu0 0.0
        %1907 = vmatprep.subr.mxu0 0.0
        %1908 = vmatpush1.msra.mxu0 0.0
        %1909 = vmatprep.subr.mxu0 0.0
        %1910 = vmatpush1.msra.mxu0 0.0
        %1911 = vmatprep.subr.mxu0 0.0
        %1912 = vmatpush1.msra.mxu0 %v1874
        %1913 = vmatprep.subr.mxu0 0.0
        %1914 = vmatpush1.msra.mxu0 %v1872
        %1915 = vmatprep.subr.mxu0 0.0
        %1916 = vmatpush2.msra.mxu0 0.0
        %1917 = vmatprep.subr.mxu0 0.0
        %1918 = vmatpush2.msra.mxu0 0.0
        %1919 = vmatprep.subr.mxu0 0.0
        %1920 = vmatpush2.msra.mxu0 0.0
        %1921 = vmatprep.subr.mxu0 0.0
        %1922 = vmatpush2.msra.mxu0 0.0
        %1923 = vmatprep.subr.mxu0 0.0
        %1924 = vmatpush2.msra.mxu0 0.0
        %1925 = vmatprep.subr.mxu0 0.0
        %1926 = vmatpush2.msra.mxu0 0.0
        %1927 = vmatprep.subr.mxu0 0.0
        %1928 = vmatpush2.msra.mxu0 0.0
        %1929 = vmatprep.subr.mxu0 0.0
        %1930 = vmatpush2.msra.mxu0 0.0
        %1931 = vmatprep.subr.mxu0 0.0
        %1932 = vmatpush2.msra.mxu0 0.0
        %1933 = vmatprep.subr.mxu0 0.0
        %1934 = vmatpush2.msra.mxu0 0.0
        %1935 = vmatprep.subr.mxu0 0.0
        %1936 = vmatpush2.msra.mxu0 0.0
        %1937 = vmatprep.subr.mxu0 0.0
        %1938 = vmatpush2.msra.mxu0 0.0
        %1939 = vmatprep.subr.mxu0 0.0
        %1940 = vmatpush2.msra.mxu0 0.0
        %1941 = vmatprep.subr.mxu0 0.0
        %1942 = vmatpush2.msra.mxu0 0.0
        %1943 = vmatprep.subr.mxu0 0.0
        %1944 = vmatpush2.msra.mxu0 0.0
        %1945 = vmatprep.subr.mxu0 0.0
        %1946 = vmatpush2.msra.mxu0 0.0
        %1947 = vmatprep.mubr.f32.mxu0 0.0
        %1948 = vmatmul.mubr.f32.gmra.mxu0 %v1878
        %v1949 = vpop.f32.mrf.mxu0
        %v1950 = vadd.f32 0.0, %v1949
        %v1951 = vpop.f32.mrf.mxu0
        %1952 = vmatprep.mubr.f32.mxu0 0.0
        %1953 = vmatmul.mubr.f32.gmra.mxu0 %v1881
        %v1954 = vpop.f32.mrf.mxu0
        %v1955 = vadd.f32 0.0, %v1954
        %v1956 = vpop.f32.mrf.mxu0
        %1957 = vdwg.mxu0
        %v1958 = vld [vmem:[#allocation8 + $0x30] sm:$0xff]
        %v1959 = vld [vmem:[#allocation8 + $0x38] sm:$0xff]
        %v1961 = vsel %vm900, %v1950, 0
        %v1964 = vsel %vm900, %v1955, 0
        %1966 = vmatprep.subr.mxu0 0.0
        %1967 = vmatpush1.msra.mxu0 0.0
        %1968 = vmatprep.subr.mxu0 0.0
        %1969 = vmatpush1.msra.mxu0 0.0
        %1970 = vmatprep.subr.mxu0 0.0
        %1971 = vmatpush1.msra.mxu0 0.0
        %1972 = vmatprep.subr.mxu0 0.0
        %1973 = vmatpush1.msra.mxu0 0.0
        %1974 = vmatprep.subr.mxu0 0.0
        %1975 = vmatpush1.msra.mxu0 0.0
        %1976 = vmatprep.subr.mxu0 0.0
        %1977 = vmatpush1.msra.mxu0 0.0
        %1978 = vmatprep.subr.mxu0 0.0
        %1979 = vmatpush1.msra.mxu0 0.0
        %1980 = vmatprep.subr.mxu0 0.0
        %1981 = vmatpush1.msra.mxu0 0.0
        %1982 = vmatprep.subr.mxu0 0.0
        %1983 = vmatpush1.msra.mxu0 0.0
        %1984 = vmatprep.subr.mxu0 0.0
        %1985 = vmatpush1.msra.mxu0 0.0
        %1986 = vmatprep.subr.mxu0 0.0
        %1987 = vmatpush1.msra.mxu0 0.0
        %1988 = vmatprep.subr.mxu0 0.0
        %1989 = vmatpush1.msra.mxu0 0.0
        %1990 = vmatprep.subr.mxu0 0.0
        %1991 = vmatpush1.msra.mxu0 0.0
        %1992 = vmatprep.subr.mxu0 0.0
        %1993 = vmatpush1.msra.mxu0 0.0
        %1994 = vmatprep.subr.mxu0 0.0
        %1995 = vmatpush1.msra.mxu0 %v1959
        %1996 = vmatprep.subr.mxu0 0.0
        %1997 = vmatpush1.msra.mxu0 %v1958
        %1998 = vmatprep.subr.mxu0 0.0
        %1999 = vmatpush2.msra.mxu0 0.0
        %2000 = vmatprep.subr.mxu0 0.0
        %2001 = vmatpush2.msra.mxu0 0.0
        %2002 = vmatprep.subr.mxu0 0.0
        %2003 = vmatpush2.msra.mxu0 0.0
        %2004 = vmatprep.subr.mxu0 0.0
        %2005 = vmatpush2.msra.mxu0 0.0
        %2006 = vmatprep.subr.mxu0 0.0
        %2007 = vmatpush2.msra.mxu0 0.0
        %2008 = vmatprep.subr.mxu0 0.0
        %2009 = vmatpush2.msra.mxu0 0.0
        %2010 = vmatprep.subr.mxu0 0.0
        %2011 = vmatpush2.msra.mxu0 0.0
        %2012 = vmatprep.subr.mxu0 0.0
        %2013 = vmatpush2.msra.mxu0 0.0
        %2014 = vmatprep.subr.mxu0 0.0
        %2015 = vmatpush2.msra.mxu0 0.0
        %2016 = vmatprep.subr.mxu0 0.0
        %2017 = vmatpush2.msra.mxu0 0.0
        %2018 = vmatprep.subr.mxu0 0.0
        %2019 = vmatpush2.msra.mxu0 0.0
        %2020 = vmatprep.subr.mxu0 0.0
        %2021 = vmatpush2.msra.mxu0 0.0
        %2022 = vmatprep.subr.mxu0 0.0
        %2023 = vmatpush2.msra.mxu0 0.0
        %2024 = vmatprep.subr.mxu0 0.0
        %2025 = vmatpush2.msra.mxu0 0.0
        %2026 = vmatprep.subr.mxu0 0.0
        %2027 = vmatpush2.msra.mxu0 0.0
        %2028 = vmatprep.subr.mxu0 0.0
        %2029 = vmatpush2.msra.mxu0 0.0
        %2030 = vmatprep.mubr.f32.mxu0 0.0
        %2031 = vmatmul.mubr.f32.gmra.mxu0 %v1961
        %v2032 = vpop.f32.mrf.mxu0
        %v2033 = vadd.f32 0.0, %v2032
        %v2034 = vpop.f32.mrf.mxu0
        %2035 = vmatprep.mubr.f32.mxu0 0.0
        %2036 = vmatmul.mubr.f32.gmra.mxu0 %v1964
        %v2037 = vpop.f32.mrf.mxu0
        %v2038 = vadd.f32 0.0, %v2037
        %v2039 = vpop.f32.mrf.mxu0
        %2040 = vdwg.mxu0
        %v2041 = vadd.f32 %v1754, %v2033
        %v2042 = vadd.f32 %v1755, %v2038
        %v2043 = vadd.f32 %v779, %v2041
        %v2044 = vadd.f32 %v780, %v2042
        %v2045 = vld [vmem:[#allocation10] sm:$0x1]
        %v2046 = vld [vmem:[#allocation11] sm:$0x1]
        %v2047 = vsel %vm809, %v2043, 0.0
        %2048 = vadd.xlane.f32.xlu0 %v2047
        %v2049 = vpop.xlane.xlu0 %2048
        %v2050 = vsel %vm809, %v2044, 0.0
        %2051 = vadd.xlane.f32.xlu0 %v2050
        %v2052 = vpop.xlane.xlu0 %2051
        %v2053 = vrcp.pop 64.0
        %v2054 = vmul.f32 %v2049, %v2053
        %v2055 = vmul.f32 %v2052, %v2053
        %v2056 = vsub.f32 %v2043, %v2054
        %v2057 = vsub.f32 %v2044, %v2055
        %v2058 = vmul.f32 %v2056, %v2056
        %v2059 = vmul.f32 %v2057, %v2057
        %v2060 = vsel %vm809, %v2058, 0.0
        %2061 = vadd.xlane.f32.xlu0 %v2060
        %v2062 = vpop.xlane.xlu0 %2061
        %v2063 = vsel %vm809, %v2059, 0.0
        %2064 = vadd.xlane.f32.xlu0 %v2063
        %v2065 = vpop.xlane.xlu0 %2064
        %v2066 = vmul.f32 %v2062, %v2053
        %v2067 = vmul.f32 %v2065, %v2053
        %v2068 = vadd.f32 %v2066, 1e-05
        %v2069 = vadd.f32 %v2067, 1e-05
        %v2070 = vrsqrt.pop %v2068
        %v2071 = vrsqrt.pop %v2069
        %v2072 = vmul.f32 %v2056, %v2070
        %v2073 = vmul.f32 %v2057, %v2071
        %v2075 = vlaneseq
        %v2076 = vshrl.u32 %v2075, 7
        %v2077 = vsub.s32 0, %v2076
        %v2078 = vrot.slane %v2045, %v2077
        %v2080 = vmul.f32 %v2072, %v2078
        %v2081 = vmul.f32 %v2073, %v2078
        %v2083 = vlaneseq
        %v2084 = vshrl.u32 %v2083, 7
        %v2085 = vsub.s32 0, %v2084
        %v2086 = vrot.slane %v2046, %v2085
        %v2088 = vadd.f32 %v2080, %v2086
        %v2089 = vadd.f32 %v2081, %v2086
        %v2090 = vld [vmem:[%s9] sm:$0xff]
        %v2091 = vld [vmem:[%s9 + $0x8] sm:$0xff]
        %v2092 = vld [vmem:[%s9 + $0x10] sm:$0xff]
        %v2093 = vld [vmem:[%s9 + $0x18] sm:$0xff]
        %v2094 = vld [vmem:[%s9 + $0x20] sm:$0xff]
        %v2095 = vld [vmem:[%s9 + $0x28] sm:$0xff]
        %v2096 = vld [vmem:[%s9 + $0x30] sm:$0xff]
        %v2097 = vld [vmem:[%s9 + $0x38] sm:$0xff]
        %v2098 = vld [vmem:[%s9 + $0x40] sm:$0xff]
        %v2099 = vld [vmem:[%s9 + $0x48] sm:$0xff]
        %v2100 = vld [vmem:[%s9 + $0x50] sm:$0xff]
        %v2101 = vld [vmem:[%s9 + $0x58] sm:$0xff]
        %v2102 = vld [vmem:[%s9 + $0x60] sm:$0xff]
        %v2103 = vld [vmem:[%s9 + $0x68] sm:$0xff]
        %v2104 = vld [vmem:[%s9 + $0x70] sm:$0xff]
        %v2105 = vld [vmem:[%s9 + $0x78] sm:$0xff]
        %v2107 = vsel %vm809, %v2088, 0
        %v2110 = vsel %vm809, %v2089, 0
        %2112 = vmatprep.subr.mxu0 0.0
        %2113 = vmatpush1.msra.mxu0 0.0
        %2114 = vmatprep.subr.mxu0 0.0
        %2115 = vmatpush1.msra.mxu0 0.0
        %2116 = vmatprep.subr.mxu0 0.0
        %2117 = vmatpush1.msra.mxu0 0.0
        %2118 = vmatprep.subr.mxu0 0.0
        %2119 = vmatpush1.msra.mxu0 0.0
        %2120 = vmatprep.subr.mxu0 0.0
        %2121 = vmatpush1.msra.mxu0 0.0
        %2122 = vmatprep.subr.mxu0 0.0
        %2123 = vmatpush1.msra.mxu0 0.0
        %2124 = vmatprep.subr.mxu0 0.0
        %2125 = vmatpush1.msra.mxu0 0.0
        %2126 = vmatprep.subr.mxu0 0.0
        %2127 = vmatpush1.msra.mxu0 0.0
        %2128 = vmatprep.subr.mxu0 %v2105
        %2129 = vmatpush1.msra.mxu0 %v2104
        %2130 = vmatprep.subr.mxu0 %v2103
        %2131 = vmatpush1.msra.mxu0 %v2102
        %2132 = vmatprep.subr.mxu0 %v2101
        %2133 = vmatpush1.msra.mxu0 %v2100
        %2134 = vmatprep.subr.mxu0 %v2099
        %2135 = vmatpush1.msra.mxu0 %v2098
        %2136 = vmatprep.subr.mxu0 %v2097
        %2137 = vmatpush1.msra.mxu0 %v2096
        %2138 = vmatprep.subr.mxu0 %v2095
        %2139 = vmatpush1.msra.mxu0 %v2094
        %2140 = vmatprep.subr.mxu0 %v2093
        %2141 = vmatpush1.msra.mxu0 %v2092
        %2142 = vmatprep.subr.mxu0 %v2091
        %2143 = vmatpush1.msra.mxu0 %v2090
        %2144 = vmatprep.subr.mxu0 0.0
        %2145 = vmatpush2.msra.mxu0 0.0
        %2146 = vmatprep.subr.mxu0 0.0
        %2147 = vmatpush2.msra.mxu0 0.0
        %2148 = vmatprep.subr.mxu0 0.0
        %2149 = vmatpush2.msra.mxu0 0.0
        %2150 = vmatprep.subr.mxu0 0.0
        %2151 = vmatpush2.msra.mxu0 0.0
        %2152 = vmatprep.subr.mxu0 0.0
        %2153 = vmatpush2.msra.mxu0 0.0
        %2154 = vmatprep.subr.mxu0 0.0
        %2155 = vmatpush2.msra.mxu0 0.0
        %2156 = vmatprep.subr.mxu0 0.0
        %2157 = vmatpush2.msra.mxu0 0.0
        %2158 = vmatprep.subr.mxu0 0.0
        %2159 = vmatpush2.msra.mxu0 0.0
        %2160 = vmatprep.subr.mxu0 0.0
        %2161 = vmatpush2.msra.mxu0 0.0
        %2162 = vmatprep.subr.mxu0 0.0
        %2163 = vmatpush2.msra.mxu0 0.0
        %2164 = vmatprep.subr.mxu0 0.0
        %2165 = vmatpush2.msra.mxu0 0.0
        %2166 = vmatprep.subr.mxu0 0.0
        %2167 = vmatpush2.msra.mxu0 0.0
        %2168 = vmatprep.subr.mxu0 0.0
        %2169 = vmatpush2.msra.mxu0 0.0
        %2170 = vmatprep.subr.mxu0 0.0
        %2171 = vmatpush2.msra.mxu0 0.0
        %2172 = vmatprep.subr.mxu0 0.0
        %2173 = vmatpush2.msra.mxu0 0.0
        %2174 = vmatprep.subr.mxu0 0.0
        %2175 = vmatpush2.msra.mxu0 0.0
        %2176 = vmatprep.mubr.f32.mxu0 0.0
        %2177 = vmatmul.mubr.f32.gmra.mxu0 %v2107
        %v2178 = vpop.f32.mrf.mxu0
        %v2179 = vadd.f32 0.0, %v2178
        %v2180 = vpop.f32.mrf.mxu0
        %v2181 = vadd.f32 0.0, %v2180
        %2182 = vmatprep.mubr.f32.mxu0 0.0
        %2183 = vmatmul.mubr.f32.gmra.mxu0 %v2110
        %v2184 = vpop.f32.mrf.mxu0
        %v2185 = vadd.f32 0.0, %v2184
        %v2186 = vpop.f32.mrf.mxu0
        %v2187 = vadd.f32 0.0, %v2186
        %2188 = vdwg.mxu0
        %v2189 = vld [vmem:[#allocation16] sm:$0x1]
        %v2190 = vlaneseq
        %v2191 = vshrl.u32 %v2190, 7
        %v2192 = vsub.s32 3, %v2191
        %v2193 = vrot.slane %v752, %v2192
        %v2194 = vmul.f32 %v2179, %v2193
        %v2195 = vmul.f32 %v2185, %v2193
        %v2197 = vlaneseq
        %v2198 = vshrl.u32 %v2197, 7
        %v2199 = vsub.s32 0, %v2198
        %v2200 = vrot.slane %v2189, %v2199
        %v2202 = vadd.f32 %v2200, %v2194
        %v2203 = vadd.f32 %v2200, %v2195
        %vm2206 = vcmask 1042432
        %v2207 = vrot.slane %v2179, 5
        %v2208 = vrot.slane %v2185, 5
        %v2209 = vsel %vm2206, %v2207, %v2208
        %v2212 = vsel %vm2206, 0.0, %v2207
        %v2213 = vlaneseq
        %v2214 = vshrl.u32 %v2213, 7
        %v2215 = vsub.s32 0, %v2214
        %v2216 = vrot.slane %v752, %v2215
        %v2217 = vmul.f32 %v2212, %v2216
        %v2218 = vmul.f32 %v2209, %v2216
        %v2219 = vadd.f32 %v2202, %v2217
        %v2220 = vadd.f32 %v2203, %v2218
        %vm2221 = vcmask 1041408
        %v2222 = vrot.slane %v2179, 6
        %v2223 = vrot.slane %v2185, 6
        %v2224 = vsel %vm2221, %v2222, %v2223
        %v2227 = vsel %vm2221, 0.0, %v2222
        %v2228 = vlaneseq
        %v2229 = vshrl.u32 %v2228, 7
        %v2230 = vsub.s32 1, %v2229
        %v2231 = vrot.slane %v752, %v2230
        %v2232 = vmul.f32 %v2227, %v2231
        %v2233 = vmul.f32 %v2224, %v2231
        %v2234 = vadd.f32 %v2219, %v2232
        %v2235 = vadd.f32 %v2220, %v2233
        %vm2236 = vcmask 1040384
        %v2237 = vrot.slane %v2179, 7
        %v2238 = vrot.slane %v2185, 7
        %v2239 = vsel %vm2236, %v2237, %v2238
        %v2242 = vsel %vm2236, 0.0, %v2237
        %v2243 = vlaneseq
        %v2244 = vshrl.u32 %v2243, 7
        %v2245 = vsub.s32 2, %v2244
        %v2246 = vrot.slane %v752, %v2245
        %v2247 = vmul.f32 %v2242, %v2246
        %v2248 = vmul.f32 %v2239, %v2246
        %v2249 = vadd.f32 %v2234, %v2247
        %v2250 = vadd.f32 %v2235, %v2248
        %v2251 = vmul.f32 %v2249, 0.5
        %v2252 = vmul.f32 %v2250, 0.5
        %v2253 = vtanh.pop %v2251
        %v2254 = vtanh.pop %v2252
        %v2255 = vmul.f32 %v2253, 0.5
        %v2256 = vmul.f32 %v2254, 0.5
        %v2257 = vadd.f32 %v2255, 0.5
        %v2258 = vadd.f32 %v2256, 0.5
        %v2259 = vmul.f32 %v2249, %v2257
        %v2260 = vmul.f32 %v2250, %v2258
        %v2261 = vld [vmem:[#allocation17] sm:$0xff]
        %v2262 = vld [vmem:[#allocation17 + $0x8] sm:$0xff]
        %v2263 = vld [vmem:[#allocation17 + $0x10] sm:$0xff]
        %v2264 = vld [vmem:[#allocation17 + $0x18] sm:$0xff]
        %v2265 = vld [vmem:[#allocation17 + $0x20] sm:$0xff]
        %v2266 = vld [vmem:[#allocation17 + $0x28] sm:$0xff]
        %v2267 = vld [vmem:[#allocation17 + $0x30] sm:$0xff]
        %v2268 = vld [vmem:[#allocation17 + $0x38] sm:$0xff]
        %v2269 = vld [vmem:[#allocation17 + $0x40] sm:$0xff]
        %v2270 = vld [vmem:[#allocation17 + $0x48] sm:$0xff]
        %v2271 = vld [vmem:[#allocation17 + $0x50] sm:$0xff]
        %v2272 = vld [vmem:[#allocation17 + $0x58] sm:$0xff]
        %v2273 = vld [vmem:[#allocation17 + $0x60] sm:$0xff]
        %v2274 = vld [vmem:[#allocation17 + $0x68] sm:$0xff]
        %v2275 = vld [vmem:[#allocation17 + $0x70] sm:$0xff]
        %v2276 = vld [vmem:[#allocation17 + $0x78] sm:$0xff]
        %v2277 = vld [vmem:[#allocation19] sm:$0x1]
        %v2279 = vlaneseq
        %v2280 = vshrl.u32 %v2279, 7
        %v2281 = vsub.s32 0, %v2280
        %v2282 = vrot.slane %v2277, %v2281
        %2284 = vmatprep.subr.mxu0 0.0
        %2285 = vmatpush1.msra.mxu0 %v2276
        %2286 = vmatprep.subr.mxu0 0.0
        %2287 = vmatpush1.msra.mxu0 %v2275
        %2288 = vmatprep.subr.mxu0 0.0
        %2289 = vmatpush1.msra.mxu0 %v2274
        %2290 = vmatprep.subr.mxu0 0.0
        %2291 = vmatpush1.msra.mxu0 %v2273
        %2292 = vmatprep.subr.mxu0 0.0
        %2293 = vmatpush1.msra.mxu0 %v2272
        %2294 = vmatprep.subr.mxu0 0.0
        %2295 = vmatpush1.msra.mxu0 %v2271
        %2296 = vmatprep.subr.mxu0 0.0
        %2297 = vmatpush1.msra.mxu0 %v2270
        %2298 = vmatprep.subr.mxu0 0.0
        %2299 = vmatpush1.msra.mxu0 %v2269
        %2300 = vmatprep.subr.mxu0 0.0
        %2301 = vmatpush1.msra.mxu0 %v2268
        %2302 = vmatprep.subr.mxu0 0.0
        %2303 = vmatpush1.msra.mxu0 %v2267
        %2304 = vmatprep.subr.mxu0 0.0
        %2305 = vmatpush1.msra.mxu0 %v2266
        %2306 = vmatprep.subr.mxu0 0.0
        %2307 = vmatpush1.msra.mxu0 %v2265
        %2308 = vmatprep.subr.mxu0 0.0
        %2309 = vmatpush1.msra.mxu0 %v2264
        %2310 = vmatprep.subr.mxu0 0.0
        %2311 = vmatpush1.msra.mxu0 %v2263
        %2312 = vmatprep.subr.mxu0 0.0
        %2313 = vmatpush1.msra.mxu0 %v2262
        %2314 = vmatprep.subr.mxu0 0.0
        %2315 = vmatpush1.msra.mxu0 %v2261
        %2316 = vmatprep.subr.mxu0 0.0
        %2317 = vmatpush2.msra.mxu0 0.0
        %2318 = vmatprep.subr.mxu0 0.0
        %2319 = vmatpush2.msra.mxu0 0.0
        %2320 = vmatprep.subr.mxu0 0.0
        %2321 = vmatpush2.msra.mxu0 0.0
        %2322 = vmatprep.subr.mxu0 0.0
        %2323 = vmatpush2.msra.mxu0 0.0
        %2324 = vmatprep.subr.mxu0 0.0
        %2325 = vmatpush2.msra.mxu0 0.0
        %2326 = vmatprep.subr.mxu0 0.0
        %2327 = vmatpush2.msra.mxu0 0.0
        %2328 = vmatprep.subr.mxu0 0.0
        %2329 = vmatpush2.msra.mxu0 0.0
        %2330 = vmatprep.subr.mxu0 0.0
        %2331 = vmatpush2.msra.mxu0 0.0
        %2332 = vmatprep.subr.mxu0 0.0
        %2333 = vmatpush2.msra.mxu0 0.0
        %2334 = vmatprep.subr.mxu0 0.0
        %2335 = vmatpush2.msra.mxu0 0.0
        %2336 = vmatprep.subr.mxu0 0.0
        %2337 = vmatpush2.msra.mxu0 0.0
        %2338 = vmatprep.subr.mxu0 0.0
        %2339 = vmatpush2.msra.mxu0 0.0
        %2340 = vmatprep.subr.mxu0 0.0
        %2341 = vmatpush2.msra.mxu0 0.0
        %2342 = vmatprep.subr.mxu0 0.0
        %2343 = vmatpush2.msra.mxu0 0.0
        %2344 = vmatprep.subr.mxu0 0.0
        %2345 = vmatpush2.msra.mxu0 0.0
        %2346 = vmatprep.subr.mxu0 0.0
        %2347 = vmatpush2.msra.mxu0 0.0
        %2348 = vmatprep.mubr.f32.mxu0 0.0
        %2349 = vmatmul.mubr.f32.gmra.mxu0 %v2259
        %v2350 = vpop.f32.mrf.mxu0
        %v2351 = vadd.f32 %v2282, %v2350
        %v2352 = vpop.f32.mrf.mxu0
        %2353 = vmatprep.mubr.f32.mxu0 0.0
        %2354 = vmatmul.mubr.f32.gmra.mxu0 %v2260
        %v2355 = vpop.f32.mrf.mxu0
        %v2356 = vadd.f32 %v2282, %v2355
        %v2357 = vpop.f32.mrf.mxu0
        %2358 = vdwg.mxu0
        %v2359 = vmax.f32 %v2351, 0.0
        %v2360 = vmax.f32 %v2356, 0.0
        %v2361 = vand.u32 2147483647, %v2351
        %v2362 = vand.u32 2147483647, %v2356
        %v2363 = vsub.f32 0.0, %v2361
        %v2364 = vsub.f32 0.0, %v2362
        %v2365 = vmul.f32 %v2363, 1.442695
        %v2366 = vpow.pop %v2365
        %v2367 = vmul.f32 %v2364, 1.442695
        %v2368 = vpow.pop %v2367
        %v2369 = vadd.f32 %v2366, 1.0
        %v2370 = vadd.f32 %v2368, 1.0
        %v2371 = vlog2.pop %v2369
        %v2372 = vmul.f32 %v2371, 0.6931472
        %v2373 = vlog2.pop %v2370
        %v2374 = vmul.f32 %v2373, 0.6931472
        %v2375 = vadd.f32 %v2359, %v2372
        %v2376 = vadd.f32 %v2360, %v2374
        %v2377 = vld [vmem:[%s14] sm:$0xff]
        %v2378 = vld [vmem:[%s14 + $0x8] sm:$0xff]
        %2379 = vmatprep.subr.mxu0 0.0
        %2380 = vmatpush1.xpose.msra.mxu0 0.0
        %2381 = vmatprep.subr.mxu0 0.0
        %2382 = vmatpush1.xpose.msra.mxu0 0.0
        %2383 = vmatprep.subr.mxu0 0.0
        %2384 = vmatpush1.xpose.msra.mxu0 0.0
        %2385 = vmatprep.subr.mxu0 0.0
        %2386 = vmatpush1.xpose.msra.mxu0 0.0
        %2387 = vmatprep.subr.mxu0 0.0
        %2388 = vmatpush1.xpose.msra.mxu0 0.0
        %2389 = vmatprep.subr.mxu0 0.0
        %2390 = vmatpush1.xpose.msra.mxu0 0.0
        %2391 = vmatprep.subr.mxu0 0.0
        %2392 = vmatpush1.xpose.msra.mxu0 0.0
        %2393 = vmatprep.subr.mxu0 0.0
        %2394 = vmatpush1.xpose.msra.mxu0 0.0
        %2395 = vmatprep.subr.mxu0 0.0
        %2396 = vmatpush1.xpose.msra.mxu0 0.0
        %2397 = vmatprep.subr.mxu0 0.0
        %2398 = vmatpush1.xpose.msra.mxu0 0.0
        %2399 = vmatprep.subr.mxu0 0.0
        %2400 = vmatpush1.xpose.msra.mxu0 0.0
        %2401 = vmatprep.subr.mxu0 0.0
        %2402 = vmatpush1.xpose.msra.mxu0 0.0
        %2403 = vmatprep.subr.mxu0 0.0
        %2404 = vmatpush1.xpose.msra.mxu0 0.0
        %2405 = vmatprep.subr.mxu0 0.0
        %2406 = vmatpush1.xpose.msra.mxu0 0.0
        %2407 = vmatprep.subr.mxu0 0.0
        %2408 = vmatpush1.xpose.msra.mxu0 %v2260
        %2409 = vmatprep.subr.mxu0 0.0
        %2410 = vmatpush1.xpose.msra.mxu0 %v2259
        %2411 = vmatprep.subr.mxu0 0.0
        %2412 = vmatpush2.xpose.msra.mxu0 0.0
        %2413 = vmatprep.subr.mxu0 0.0
        %2414 = vmatpush2.xpose.msra.mxu0 0.0
        %2415 = vmatprep.subr.mxu0 0.0
        %2416 = vmatpush2.xpose.msra.mxu0 0.0
        %2417 = vmatprep.subr.mxu0 0.0
        %2418 = vmatpush2.xpose.msra.mxu0 0.0
        %2419 = vmatprep.subr.mxu0 0.0
        %2420 = vmatpush2.xpose.msra.mxu0 0.0
        %2421 = vmatprep.subr.mxu0 0.0
        %2422 = vmatpush2.xpose.msra.mxu0 0.0
        %2423 = vmatprep.subr.mxu0 0.0
        %2424 = vmatpush2.xpose.msra.mxu0 0.0
        %2425 = vmatprep.subr.mxu0 0.0
        %2426 = vmatpush2.xpose.msra.mxu0 0.0
        %2427 = vmatprep.subr.mxu0 0.0
        %2428 = vmatpush2.xpose.msra.mxu0 0.0
        %2429 = vmatprep.subr.mxu0 0.0
        %2430 = vmatpush2.xpose.msra.mxu0 0.0
        %2431 = vmatprep.subr.mxu0 0.0
        %2432 = vmatpush2.xpose.msra.mxu0 0.0
        %2433 = vmatprep.subr.mxu0 0.0
        %2434 = vmatpush2.xpose.msra.mxu0 0.0
        %2435 = vmatprep.subr.mxu0 0.0
        %2436 = vmatpush2.xpose.msra.mxu0 0.0
        %2437 = vmatprep.subr.mxu0 0.0
        %2438 = vmatpush2.xpose.msra.mxu0 0.0
        %2439 = vmatprep.subr.mxu0 0.0
        %2440 = vmatpush2.xpose.msra.mxu0 0.0
        %2441 = vmatprep.subr.mxu0 0.0
        %2442 = vmatpush2.xpose.msra.mxu0 0.0
        %2443 = vmatprep.mubr.f32.mxu0 0.0
        %2444 = vmatmul.mubr.f32.gmra.mxu0 %v2377
        %v2445 = vpop.f32.mrf.mxu0
        %v2446 = vadd.f32 0.0, %v2445
        %v2447 = vpop.f32.mrf.mxu0
        %2448 = vmatprep.mubr.f32.mxu0 0.0
        %2449 = vmatmul.mubr.f32.gmra.mxu0 %v2378
        %v2450 = vpop.f32.mrf.mxu0
        %v2451 = vadd.f32 0.0, %v2450
        %v2452 = vpop.f32.mrf.mxu0
        %2453 = vdwg.mxu0
        %v2454 = vld [vmem:[%s15] sm:$0xff]
        %v2455 = vld [vmem:[%s15 + $0x8] sm:$0xff]
        %v2456 = vld [vmem:[%s15 + $0x10] sm:$0xff]
        %v2457 = vld [vmem:[%s15 + $0x18] sm:$0xff]
        %v2458 = vld [vmem:[%s15 + $0x20] sm:$0xff]
        %v2459 = vld [vmem:[%s15 + $0x28] sm:$0xff]
        %v2460 = vld [vmem:[%s15 + $0x30] sm:$0xff]
        %v2461 = vld [vmem:[%s15 + $0x38] sm:$0xff]
        %v2462 = vld [vmem:[%s15 + $0x40] sm:$0xff]
        %v2463 = vld [vmem:[%s15 + $0x48] sm:$0xff]
        %v2464 = vld [vmem:[%s15 + $0x50] sm:$0xff]
        %v2465 = vld [vmem:[%s15 + $0x58] sm:$0xff]
        %v2466 = vld [vmem:[%s15 + $0x60] sm:$0xff]
        %v2467 = vld [vmem:[%s15 + $0x68] sm:$0xff]
        %v2468 = vld [vmem:[%s15 + $0x70] sm:$0xff]
        %v2469 = vld [vmem:[%s15 + $0x78] sm:$0xff]
        %2470 = vmatprep.subr.mxu0 0.0
        %2471 = vmatpush1.msra.mxu0 %v2469
        %2472 = vmatprep.subr.mxu0 0.0
        %2473 = vmatpush1.msra.mxu0 %v2468
        %2474 = vmatprep.subr.mxu0 0.0
        %2475 = vmatpush1.msra.mxu0 %v2467
        %2476 = vmatprep.subr.mxu0 0.0
        %2477 = vmatpush1.msra.mxu0 %v2466
        %2478 = vmatprep.subr.mxu0 0.0
        %2479 = vmatpush1.msra.mxu0 %v2465
        %2480 = vmatprep.subr.mxu0 0.0
        %2481 = vmatpush1.msra.mxu0 %v2464
        %2482 = vmatprep.subr.mxu0 0.0
        %2483 = vmatpush1.msra.mxu0 %v2463
        %2484 = vmatprep.subr.mxu0 0.0
        %2485 = vmatpush1.msra.mxu0 %v2462
        %2486 = vmatprep.subr.mxu0 0.0
        %2487 = vmatpush1.msra.mxu0 %v2461
        %2488 = vmatprep.subr.mxu0 0.0
        %2489 = vmatpush1.msra.mxu0 %v2460
        %2490 = vmatprep.subr.mxu0 0.0
        %2491 = vmatpush1.msra.mxu0 %v2459
        %2492 = vmatprep.subr.mxu0 0.0
        %2493 = vmatpush1.msra.mxu0 %v2458
        %2494 = vmatprep.subr.mxu0 0.0
        %2495 = vmatpush1.msra.mxu0 %v2457
        %2496 = vmatprep.subr.mxu0 0.0
        %2497 = vmatpush1.msra.mxu0 %v2456
        %2498 = vmatprep.subr.mxu0 0.0
        %2499 = vmatpush1.msra.mxu0 %v2455
        %2500 = vmatprep.subr.mxu0 0.0
        %2501 = vmatpush1.msra.mxu0 %v2454
        %2502 = vmatprep.subr.mxu0 0.0
        %2503 = vmatpush2.msra.mxu0 0.0
        %2504 = vmatprep.subr.mxu0 0.0
        %2505 = vmatpush2.msra.mxu0 0.0
        %2506 = vmatprep.subr.mxu0 0.0
        %2507 = vmatpush2.msra.mxu0 0.0
        %2508 = vmatprep.subr.mxu0 0.0
        %2509 = vmatpush2.msra.mxu0 0.0
        %2510 = vmatprep.subr.mxu0 0.0
        %2511 = vmatpush2.msra.mxu0 0.0
        %2512 = vmatprep.subr.mxu0 0.0
        %2513 = vmatpush2.msra.mxu0 0.0
        %2514 = vmatprep.subr.mxu0 0.0
        %2515 = vmatpush2.msra.mxu0 0.0
        %2516 = vmatprep.subr.mxu0 0.0
        %2517 = vmatpush2.msra.mxu0 0.0
        %2518 = vmatprep.subr.mxu0 0.0
        %2519 = vmatpush2.msra.mxu0 0.0
        %2520 = vmatprep.subr.mxu0 0.0
        %2521 = vmatpush2.msra.mxu0 0.0
        %2522 = vmatprep.subr.mxu0 0.0
        %2523 = vmatpush2.msra.mxu0 0.0
        %2524 = vmatprep.subr.mxu0 0.0
        %2525 = vmatpush2.msra.mxu0 0.0
        %2526 = vmatprep.subr.mxu0 0.0
        %2527 = vmatpush2.msra.mxu0 0.0
        %2528 = vmatprep.subr.mxu0 0.0
        %2529 = vmatpush2.msra.mxu0 0.0
        %2530 = vmatprep.subr.mxu0 0.0
        %2531 = vmatpush2.msra.mxu0 0.0
        %2532 = vmatprep.subr.mxu0 0.0
        %2533 = vmatpush2.msra.mxu0 0.0
        %2534 = vmatprep.mubr.f32.mxu0 0.0
        %2535 = vmatmul.mubr.f32.gmra.mxu0 %v2259
        %v2536 = vpop.f32.mrf.mxu0
        %v2537 = vadd.f32 0.0, %v2536
        %v2538 = vpop.f32.mrf.mxu0
        %2539 = vmatprep.mubr.f32.mxu0 0.0
        %2540 = vmatmul.mubr.f32.gmra.mxu0 %v2260
        %v2541 = vpop.f32.mrf.mxu0
        %v2542 = vadd.f32 0.0, %v2541
        %v2543 = vpop.f32.mrf.mxu0
        %2544 = vdwg.mxu0
        %v2545 = vmul.f32 %v2375, %v2259
        %v2546 = vmul.f32 %v2376, %v2260
        %v2547 = vlaneseq
        %v2548 = vshrl.u32 %v2547, 7
        %v2549 = vsub.s32 0, %v2548
        %v2550 = vrot.slane %v2375, %v2549
        %v2551 = vmul.f32 %v2550, %v753
        %v2552 = vmul.f32 %v2550, %v754
        %v2553 = vmul.f32 %v2551, 1.442695
        %v2554 = vpow.pop %v2553
        %v2555 = vmul.f32 %v2552, 1.442695
        %v2556 = vpow.pop %v2555
        %2557 = vst [vmem:[#allocation2] sm:$0xff] %v2554
        %2558 = vst [vmem:[#allocation2 + $0x8] sm:$0xff] %v2556
        %v2559 = vlaneseq
        %v2560 = vshrl.u32 %v2559, 7
        %v2561 = vsub.s32 0, %v2560
        %v2562 = vrot.slane %v2545, %v2561
        %2564 = vset.pattern.permute.xlu0 0
        %2565 = vperm.xlu0 %2564, %v2446
        %v2566 = vpop.permute.xlu0 %2565
        %2569 = vset.pattern.permute.xlu0 0
        %2570 = vperm.xlu0 %2569, %v2451
        %v2571 = vpop.permute.xlu0 %2570
        %v2573 = vmul.f32 %v2562, %v2566
        %v2574 = vmul.f32 %v2562, %v2571
        %2575 = vst [vmem:[#allocation3] sm:$0xff] %v2573
        %2576 = vst [vmem:[#allocation3 + $0x8] sm:$0xff] %v2574
        %v2577 = vlaneseq
        %v2578 = vshrl.u32 %v2577, 7
        %v2579 = vsub.s32 1, %v2578
        %v2580 = vrot.slane %v2375, %v2579
        %v2581 = vmul.f32 %v2580, %v753
        %v2582 = vmul.f32 %v2580, %v754
        %v2583 = vmul.f32 %v2581, 1.442695
        %v2584 = vpow.pop %v2583
        %v2585 = vmul.f32 %v2582, 1.442695
        %v2586 = vpow.pop %v2585
        %2587 = vst [vmem:[#allocation2 + $0x10] sm:$0xff] %v2584
        %2588 = vst [vmem:[#allocation2 + $0x18] sm:$0xff] %v2586
        %v2589 = vlaneseq
        %v2590 = vshrl.u32 %v2589, 7
        %v2591 = vsub.s32 1, %v2590
        %v2592 = vrot.slane %v2545, %v2591
        %2593 = vset.pattern.permute.xlu0 1
        %2594 = vperm.xlu0 %2593, %v2446
        %v2595 = vpop.permute.xlu0 %2594
        %2597 = vset.pattern.permute.xlu0 1
        %2598 = vperm.xlu0 %2597, %v2451
        %v2599 = vpop.permute.xlu0 %2598
        %v2601 = vmul.f32 %v2592, %v2595
        %v2602 = vmul.f32 %v2592, %v2599
        %2603 = vst [vmem:[#allocation3 + $0x10] sm:$0xff] %v2601
        %2604 = vst [vmem:[#allocation3 + $0x18] sm:$0xff] %v2602
        %v2605 = vlaneseq
        %v2606 = vshrl.u32 %v2605, 7
        %v2607 = vsub.s32 2, %v2606
        %v2608 = vrot.slane %v2375, %v2607
        %v2609 = vmul.f32 %v2608, %v753
        %v2610 = vmul.f32 %v2608, %v754
        %v2611 = vmul.f32 %v2609, 1.442695
        %v2612 = vpow.pop %v2611
        %v2613 = vmul.f32 %v2610, 1.442695
        %v2614 = vpow.pop %v2613
        %2615 = vst [vmem:[#allocation2 + $0x20] sm:$0xff] %v2612
        %2616 = vst [vmem:[#allocation2 + $0x28] sm:$0xff] %v2614
        %v2617 = vlaneseq
        %v2618 = vshrl.u32 %v2617, 7
        %v2619 = vsub.s32 2, %v2618
        %v2620 = vrot.slane %v2545, %v2619
        %2621 = vset.pattern.permute.xlu0 2
        %2622 = vperm.xlu0 %2621, %v2446
        %v2623 = vpop.permute.xlu0 %2622
        %2625 = vset.pattern.permute.xlu0 2
        %2626 = vperm.xlu0 %2625, %v2451
        %v2627 = vpop.permute.xlu0 %2626
        %v2629 = vmul.f32 %v2620, %v2623
        %v2630 = vmul.f32 %v2620, %v2627
        %2631 = vst [vmem:[#allocation3 + $0x20] sm:$0xff] %v2629
        %2632 = vst [vmem:[#allocation3 + $0x28] sm:$0xff] %v2630
        %v2633 = vlaneseq
        %v2634 = vshrl.u32 %v2633, 7
        %v2635 = vsub.s32 3, %v2634
        %v2636 = vrot.slane %v2375, %v2635
        %v2637 = vmul.f32 %v2636, %v753
        %v2638 = vmul.f32 %v2636, %v754
        %v2639 = vmul.f32 %v2637, 1.442695
        %v2640 = vpow.pop %v2639
        %v2641 = vmul.f32 %v2638, 1.442695
        %v2642 = vpow.pop %v2641
        %2643 = vst [vmem:[#allocation2 + $0x30] sm:$0xff] %v2640
        %2644 = vst [vmem:[#allocation2 + $0x38] sm:$0xff] %v2642
        %v2645 = vlaneseq
        %v2646 = vshrl.u32 %v2645, 7
        %v2647 = vsub.s32 3, %v2646
        %v2648 = vrot.slane %v2545, %v2647
        %2649 = vset.pattern.permute.xlu0 3
        %2650 = vperm.xlu0 %2649, %v2446
        %v2651 = vpop.permute.xlu0 %2650
        %2653 = vset.pattern.permute.xlu0 3
        %2654 = vperm.xlu0 %2653, %v2451
        %v2655 = vpop.permute.xlu0 %2654
        %v2657 = vmul.f32 %v2648, %v2651
        %v2658 = vmul.f32 %v2648, %v2655
        %2659 = vst [vmem:[#allocation3 + $0x30] sm:$0xff] %v2657
        %2660 = vst [vmem:[#allocation3 + $0x38] sm:$0xff] %v2658
        %v2661 = vlaneseq
        %v2662 = vshrl.u32 %v2661, 7
        %v2663 = vsub.s32 4, %v2662
        %v2664 = vrot.slane %v2375, %v2663
        %v2665 = vmul.f32 %v2664, %v753
        %v2666 = vmul.f32 %v2664, %v754
        %v2667 = vmul.f32 %v2665, 1.442695
        %v2668 = vpow.pop %v2667
        %v2669 = vmul.f32 %v2666, 1.442695
        %v2670 = vpow.pop %v2669
        %2671 = vst [vmem:[#allocation2 + $0x40] sm:$0xff] %v2668
        %2672 = vst [vmem:[#allocation2 + $0x48] sm:$0xff] %v2670
        %v2673 = vlaneseq
        %v2674 = vshrl.u32 %v2673, 7
        %v2675 = vsub.s32 4, %v2674
        %v2676 = vrot.slane %v2545, %v2675
        %2677 = vset.pattern.permute.xlu0 4
        %2678 = vperm.xlu0 %2677, %v2446
        %v2679 = vpop.permute.xlu0 %2678
        %2681 = vset.pattern.permute.xlu0 4
        %2682 = vperm.xlu0 %2681, %v2451
        %v2683 = vpop.permute.xlu0 %2682
        %v2685 = vmul.f32 %v2676, %v2679
        %v2686 = vmul.f32 %v2676, %v2683
        %2687 = vst [vmem:[#allocation3 + $0x40] sm:$0xff] %v2685
        %2688 = vst [vmem:[#allocation3 + $0x48] sm:$0xff] %v2686
        %v2689 = vlaneseq
        %v2690 = vshrl.u32 %v2689, 7
        %v2691 = vsub.s32 5, %v2690
        %v2692 = vrot.slane %v2375, %v2691
        %v2693 = vmul.f32 %v2692, %v753
        %v2694 = vmul.f32 %v2692, %v754
        %v2695 = vmul.f32 %v2693, 1.442695
        %v2696 = vpow.pop %v2695
        %v2697 = vmul.f32 %v2694, 1.442695
        %v2698 = vpow.pop %v2697
        %2699 = vst [vmem:[#allocation2 + $0x50] sm:$0xff] %v2696
        %2700 = vst [vmem:[#allocation2 + $0x58] sm:$0xff] %v2698
        %v2701 = vlaneseq
        %v2702 = vshrl.u32 %v2701, 7
        %v2703 = vsub.s32 5, %v2702
        %v2704 = vrot.slane %v2545, %v2703
        %2705 = vset.pattern.permute.xlu0 5
        %2706 = vperm.xlu0 %2705, %v2446
        %v2707 = vpop.permute.xlu0 %2706
        %2709 = vset.pattern.permute.xlu0 5
        %2710 = vperm.xlu0 %2709, %v2451
        %v2711 = vpop.permute.xlu0 %2710
        %v2713 = vmul.f32 %v2704, %v2707
        %v2714 = vmul.f32 %v2704, %v2711
        %2715 = vst [vmem:[#allocation3 + $0x50] sm:$0xff] %v2713
        %2716 = vst [vmem:[#allocation3 + $0x58] sm:$0xff] %v2714
        %v2717 = vlaneseq
        %v2718 = vshrl.u32 %v2717, 7
        %v2719 = vsub.s32 6, %v2718
        %v2720 = vrot.slane %v2375, %v2719
        %v2721 = vmul.f32 %v2720, %v753
        %v2722 = vmul.f32 %v2720, %v754
        %v2723 = vmul.f32 %v2721, 1.442695
        %v2724 = vpow.pop %v2723
        %v2725 = vmul.f32 %v2722, 1.442695
        %v2726 = vpow.pop %v2725
        %2727 = vst [vmem:[#allocation2 + $0x60] sm:$0xff] %v2724
        %2728 = vst [vmem:[#allocation2 + $0x68] sm:$0xff] %v2726
        %v2729 = vlaneseq
        %v2730 = vshrl.u32 %v2729, 7
        %v2731 = vsub.s32 6, %v2730
        %v2732 = vrot.slane %v2545, %v2731
        %2733 = vset.pattern.permute.xlu0 6
        %2734 = vperm.xlu0 %2733, %v2446
        %v2735 = vpop.permute.xlu0 %2734
        %2737 = vset.pattern.permute.xlu0 6
        %2738 = vperm.xlu0 %2737, %v2451
        %v2739 = vpop.permute.xlu0 %2738
        %v2741 = vmul.f32 %v2732, %v2735
        %v2742 = vmul.f32 %v2732, %v2739
        %2743 = vst [vmem:[#allocation3 + $0x60] sm:$0xff] %v2741
        %2744 = vst [vmem:[#allocation3 + $0x68] sm:$0xff] %v2742
        %v2745 = vlaneseq
        %v2746 = vshrl.u32 %v2745, 7
        %v2747 = vsub.s32 7, %v2746
        %v2748 = vrot.slane %v2375, %v2747
        %v2749 = vmul.f32 %v2748, %v753
        %v2750 = vmul.f32 %v2748, %v754
        %v2751 = vmul.f32 %v2749, 1.442695
        %v2752 = vpow.pop %v2751
        %v2753 = vmul.f32 %v2750, 1.442695
        %v2754 = vpow.pop %v2753
        %2755 = vst [vmem:[#allocation2 + $0x70] sm:$0xff] %v2752
        %2756 = vst [vmem:[#allocation2 + $0x78] sm:$0xff] %v2754
        %v2757 = vlaneseq
        %v2758 = vshrl.u32 %v2757, 7
        %v2759 = vsub.s32 7, %v2758
        %v2760 = vrot.slane %v2545, %v2759
        %2761 = vset.pattern.permute.xlu0 7
        %2762 = vperm.xlu0 %2761, %v2446
        %v2763 = vpop.permute.xlu0 %2762
        %2765 = vset.pattern.permute.xlu0 7
        %2766 = vperm.xlu0 %2765, %v2451
        %v2767 = vpop.permute.xlu0 %2766
        %v2769 = vmul.f32 %v2760, %v2763
        %v2770 = vmul.f32 %v2760, %v2767
        %2771 = vst [vmem:[#allocation3 + $0x70] sm:$0xff] %v2769
        %2772 = vst [vmem:[#allocation3 + $0x78] sm:$0xff] %v2770
        %v2773 = vlaneseq
        %v2774 = vshrl.u32 %v2773, 7
        %v2775 = vsub.s32 0, %v2774
        %v2776 = vrot.slane %v2376, %v2775
        %v2777 = vmul.f32 %v2776, %v753
        %v2778 = vmul.f32 %v2776, %v754
        %v2779 = vmul.f32 %v2777, 1.442695
        %v2780 = vpow.pop %v2779
        %v2781 = vmul.f32 %v2778, 1.442695
        %v2782 = vpow.pop %v2781
        %2783 = vst [vmem:[#allocation2 + $0x80] sm:$0xff] %v2780
        %2784 = vst [vmem:[#allocation2 + $0x88] sm:$0xff] %v2782
        %v2785 = vlaneseq
        %v2786 = vshrl.u32 %v2785, 7
        %v2787 = vsub.s32 0, %v2786
        %v2788 = vrot.slane %v2546, %v2787
        %2789 = vset.pattern.permute.xlu0 8
        %2790 = vperm.xlu0 %2789, %v2446
        %v2791 = vpop.permute.xlu0 %2790
        %2793 = vset.pattern.permute.xlu0 8
        %2794 = vperm.xlu0 %2793, %v2451
        %v2795 = vpop.permute.xlu0 %2794
        %v2797 = vmul.f32 %v2788, %v2791
        %v2798 = vmul.f32 %v2788, %v2795
        %2799 = vst [vmem:[#allocation3 + $0x80] sm:$0xff] %v2797
        %2800 = vst [vmem:[#allocation3 + $0x88] sm:$0xff] %v2798
        %v2801 = vlaneseq
        %v2802 = vshrl.u32 %v2801, 7
        %v2803 = vsub.s32 1, %v2802
        %v2804 = vrot.slane %v2376, %v2803
        %v2805 = vmul.f32 %v2804, %v753
        %v2806 = vmul.f32 %v2804, %v754
        %v2807 = vmul.f32 %v2805, 1.442695
        %v2808 = vpow.pop %v2807
        %v2809 = vmul.f32 %v2806, 1.442695
        %v2810 = vpow.pop %v2809
        %2811 = vst [vmem:[#allocation2 + $0x90] sm:$0xff] %v2808
        %2812 = vst [vmem:[#allocation2 + $0x98] sm:$0xff] %v2810
        %v2813 = vlaneseq
        %v2814 = vshrl.u32 %v2813, 7
        %v2815 = vsub.s32 1, %v2814
        %v2816 = vrot.slane %v2546, %v2815
        %2817 = vset.pattern.permute.xlu0 9
        %2818 = vperm.xlu0 %2817, %v2446
        %v2819 = vpop.permute.xlu0 %2818
        %2821 = vset.pattern.permute.xlu0 9
        %2822 = vperm.xlu0 %2821, %v2451
        %v2823 = vpop.permute.xlu0 %2822
        %v2825 = vmul.f32 %v2816, %v2819
        %v2826 = vmul.f32 %v2816, %v2823
        %2827 = vst [vmem:[#allocation3 + $0x90] sm:$0xff] %v2825
        %2828 = vst [vmem:[#allocation3 + $0x98] sm:$0xff] %v2826
        %v2829 = vlaneseq
        %v2830 = vshrl.u32 %v2829, 7
        %v2831 = vsub.s32 2, %v2830
        %v2832 = vrot.slane %v2376, %v2831
        %v2833 = vmul.f32 %v2832, %v753
        %v2834 = vmul.f32 %v2832, %v754
        %v2835 = vmul.f32 %v2833, 1.442695
        %v2836 = vpow.pop %v2835
        %v2837 = vmul.f32 %v2834, 1.442695
        %v2838 = vpow.pop %v2837
        %2839 = vst [vmem:[#allocation2 + $0xa0] sm:$0xff] %v2836
        %2840 = vst [vmem:[#allocation2 + $0xa8] sm:$0xff] %v2838
        %v2841 = vlaneseq
        %v2842 = vshrl.u32 %v2841, 7
        %v2843 = vsub.s32 2, %v2842
        %v2844 = vrot.slane %v2546, %v2843
        %2845 = vset.pattern.permute.xlu0 10
        %2846 = vperm.xlu0 %2845, %v2446
        %v2847 = vpop.permute.xlu0 %2846
        %2849 = vset.pattern.permute.xlu0 10
        %2850 = vperm.xlu0 %2849, %v2451
        %v2851 = vpop.permute.xlu0 %2850
        %v2853 = vmul.f32 %v2844, %v2847
        %v2854 = vmul.f32 %v2844, %v2851
        %2855 = vst [vmem:[#allocation3 + $0xa0] sm:$0xff] %v2853
        %2856 = vst [vmem:[#allocation3 + $0xa8] sm:$0xff] %v2854
        %v2857 = vlaneseq
        %v2858 = vshrl.u32 %v2857, 7
        %v2859 = vsub.s32 3, %v2858
        %v2860 = vrot.slane %v2376, %v2859
        %v2861 = vmul.f32 %v2860, %v753
        %v2862 = vmul.f32 %v2860, %v754
        %v2863 = vmul.f32 %v2861, 1.442695
        %v2864 = vpow.pop %v2863
        %v2865 = vmul.f32 %v2862, 1.442695
        %v2866 = vpow.pop %v2865
        %2867 = vst [vmem:[#allocation2 + $0xb0] sm:$0xff] %v2864
        %2868 = vst [vmem:[#allocation2 + $0xb8] sm:$0xff] %v2866
        %v2869 = vlaneseq
        %v2870 = vshrl.u32 %v2869, 7
        %v2871 = vsub.s32 3, %v2870
        %v2872 = vrot.slane %v2546, %v2871
        %2873 = vset.pattern.permute.xlu0 11
        %2874 = vperm.xlu0 %2873, %v2446
        %v2875 = vpop.permute.xlu0 %2874
        %2877 = vset.pattern.permute.xlu0 11
        %2878 = vperm.xlu0 %2877, %v2451
        %v2879 = vpop.permute.xlu0 %2878
        %v2881 = vmul.f32 %v2872, %v2875
        %v2882 = vmul.f32 %v2872, %v2879
        %2883 = vst [vmem:[#allocation3 + $0xb0] sm:$0xff] %v2881
        %2884 = vst [vmem:[#allocation3 + $0xb8] sm:$0xff] %v2882
        %v2885 = vlaneseq
        %v2886 = vshrl.u32 %v2885, 7
        %v2887 = vsub.s32 4, %v2886
        %v2888 = vrot.slane %v2376, %v2887
        %v2889 = vmul.f32 %v2888, %v753
        %v2890 = vmul.f32 %v2888, %v754
        %v2891 = vmul.f32 %v2889, 1.442695
        %v2892 = vpow.pop %v2891
        %v2893 = vmul.f32 %v2890, 1.442695
        %v2894 = vpow.pop %v2893
        %2895 = vst [vmem:[#allocation2 + $0xc0] sm:$0xff] %v2892
        %2896 = vst [vmem:[#allocation2 + $0xc8] sm:$0xff] %v2894
        %v2897 = vlaneseq
        %v2898 = vshrl.u32 %v2897, 7
        %v2899 = vsub.s32 4, %v2898
        %v2900 = vrot.slane %v2546, %v2899
        %2901 = vset.pattern.permute.xlu0 12
        %2902 = vperm.xlu0 %2901, %v2446
        %v2903 = vpop.permute.xlu0 %2902
        %2905 = vset.pattern.permute.xlu0 12
        %2906 = vperm.xlu0 %2905, %v2451
        %v2907 = vpop.permute.xlu0 %2906
        %v2909 = vmul.f32 %v2900, %v2903
        %v2910 = vmul.f32 %v2900, %v2907
        %2911 = vst [vmem:[#allocation3 + $0xc0] sm:$0xff] %v2909
        %2912 = vst [vmem:[#allocation3 + $0xc8] sm:$0xff] %v2910
        %v2913 = vlaneseq
        %v2914 = vshrl.u32 %v2913, 7
        %v2915 = vsub.s32 5, %v2914
        %v2916 = vrot.slane %v2376, %v2915
        %v2917 = vmul.f32 %v2916, %v753
        %v2918 = vmul.f32 %v2916, %v754
        %v2919 = vmul.f32 %v2917, 1.442695
        %v2920 = vpow.pop %v2919
        %v2921 = vmul.f32 %v2918, 1.442695
        %v2922 = vpow.pop %v2921
        %2923 = vst [vmem:[#allocation2 + $0xd0] sm:$0xff] %v2920
        %2924 = vst [vmem:[#allocation2 + $0xd8] sm:$0xff] %v2922
        %v2925 = vlaneseq
        %v2926 = vshrl.u32 %v2925, 7
        %v2927 = vsub.s32 5, %v2926
        %v2928 = vrot.slane %v2546, %v2927
        %2929 = vset.pattern.permute.xlu0 13
        %2930 = vperm.xlu0 %2929, %v2446
        %v2931 = vpop.permute.xlu0 %2930
        %2933 = vset.pattern.permute.xlu0 13
        %2934 = vperm.xlu0 %2933, %v2451
        %v2935 = vpop.permute.xlu0 %2934
        %v2937 = vmul.f32 %v2928, %v2931
        %v2938 = vmul.f32 %v2928, %v2935
        %2939 = vst [vmem:[#allocation3 + $0xd0] sm:$0xff] %v2937
        %2940 = vst [vmem:[#allocation3 + $0xd8] sm:$0xff] %v2938
        %v2941 = vlaneseq
        %v2942 = vshrl.u32 %v2941, 7
        %v2943 = vsub.s32 6, %v2942
        %v2944 = vrot.slane %v2376, %v2943
        %v2945 = vmul.f32 %v2944, %v753
        %v2946 = vmul.f32 %v2944, %v754
        %v2947 = vmul.f32 %v2945, 1.442695
        %v2948 = vpow.pop %v2947
        %v2949 = vmul.f32 %v2946, 1.442695
        %v2950 = vpow.pop %v2949
        %2951 = vst [vmem:[#allocation2 + $0xe0] sm:$0xff] %v2948
        %2952 = vst [vmem:[#allocation2 + $0xe8] sm:$0xff] %v2950
        %v2953 = vlaneseq
        %v2954 = vshrl.u32 %v2953, 7
        %v2955 = vsub.s32 6, %v2954
        %v2956 = vrot.slane %v2546, %v2955
        %2957 = vset.pattern.permute.xlu0 14
        %2958 = vperm.xlu0 %2957, %v2446
        %v2959 = vpop.permute.xlu0 %2958
        %2961 = vset.pattern.permute.xlu0 14
        %2962 = vperm.xlu0 %2961, %v2451
        %v2963 = vpop.permute.xlu0 %2962
        %v2965 = vmul.f32 %v2956, %v2959
        %v2966 = vmul.f32 %v2956, %v2963
        %2967 = vst [vmem:[#allocation3 + $0xe0] sm:$0xff] %v2965
        %2968 = vst [vmem:[#allocation3 + $0xe8] sm:$0xff] %v2966
        %v2969 = vlaneseq
        %v2970 = vshrl.u32 %v2969, 7
        %v2971 = vsub.s32 7, %v2970
        %v2972 = vrot.slane %v2376, %v2971
        %v2973 = vmul.f32 %v2972, %v753
        %v2974 = vmul.f32 %v2972, %v754
        %v2975 = vmul.f32 %v2973, 1.442695
        %v2976 = vpow.pop %v2975
        %v2977 = vmul.f32 %v2974, 1.442695
        %v2978 = vpow.pop %v2977
        %2979 = vst [vmem:[#allocation2 + $0xf0] sm:$0xff] %v2976
        %2980 = vst [vmem:[#allocation2 + $0xf8] sm:$0xff] %v2978
        %v2981 = vlaneseq
        %v2982 = vshrl.u32 %v2981, 7
        %v2983 = vsub.s32 7, %v2982
        %v2984 = vrot.slane %v2546, %v2983
        %2985 = vset.pattern.permute.xlu0 15
        %2986 = vperm.xlu0 %2985, %v2446
        %v2987 = vpop.permute.xlu0 %2986
        %2989 = vset.pattern.permute.xlu0 15
        %2990 = vperm.xlu0 %2989, %v2451
        %v2991 = vpop.permute.xlu0 %2990
        %v2993 = vmul.f32 %v2984, %v2987
        %v2994 = vmul.f32 %v2984, %v2991
        %2995 = vst [vmem:[#allocation3 + $0xf0] sm:$0xff] %v2993
        %2996 = vst [vmem:[#allocation3 + $0xf8] sm:$0xff] %v2994
        %v2997 = vld [vmem:[#allocation2] sm:$0xff]
        %v2998 = vld [vmem:[#allocation2 + $0x8] sm:$0xff]
        %v2999 = vmul.f32 %v2997, 0.0
        %v3000 = vmul.f32 %v2998, 0.0
        %v3001 = vld [vmem:[#allocation3] sm:$0xff]
        %v3002 = vld [vmem:[#allocation3 + $0x8] sm:$0xff]
        %v3003 = vadd.f32 %v2999, %v3001
        %v3004 = vadd.f32 %v3000, %v3002
        %3005 = vst [vmem:[#allocation4] sm:$0xff] %v3003
        %3006 = vst [vmem:[#allocation4 + $0x8] sm:$0xff] %v3004
        %v3007 = vld [vmem:[#allocation2 + $0x10] sm:$0xff]
        %v3008 = vld [vmem:[#allocation2 + $0x18] sm:$0xff]
        %v3009 = vmul.f32 %v3007, %v3003
        %v3010 = vmul.f32 %v3008, %v3004
        %v3011 = vld [vmem:[#allocation3 + $0x10] sm:$0xff]
        %v3012 = vld [vmem:[#allocation3 + $0x18] sm:$0xff]
        %v3013 = vadd.f32 %v3009, %v3011
        %v3014 = vadd.f32 %v3010, %v3012
        %3015 = vst [vmem:[#allocation4 + $0x10] sm:$0xff] %v3013
        %3016 = vst [vmem:[#allocation4 + $0x18] sm:$0xff] %v3014
        %v3017 = vld [vmem:[#allocation2 + $0x20] sm:$0xff]
        %v3018 = vld [vmem:[#allocation2 + $0x28] sm:$0xff]
        %v3019 = vmul.f32 %v3017, %v3013
        %v3020 = vmul.f32 %v3018, %v3014
        %v3021 = vld [vmem:[#allocation3 + $0x20] sm:$0xff]
        %v3022 = vld [vmem:[#allocation3 + $0x28] sm:$0xff]
        %v3023 = vadd.f32 %v3019, %v3021
        %v3024 = vadd.f32 %v3020, %v3022
        %3025 = vst [vmem:[#allocation4 + $0x20] sm:$0xff] %v3023
        %3026 = vst [vmem:[#allocation4 + $0x28] sm:$0xff] %v3024
        %v3027 = vld [vmem:[#allocation2 + $0x30] sm:$0xff]
        %v3028 = vld [vmem:[#allocation2 + $0x38] sm:$0xff]
        %v3029 = vmul.f32 %v3027, %v3023
        %v3030 = vmul.f32 %v3028, %v3024
        %v3031 = vld [vmem:[#allocation3 + $0x30] sm:$0xff]
        %v3032 = vld [vmem:[#allocation3 + $0x38] sm:$0xff]
        %v3033 = vadd.f32 %v3029, %v3031
        %v3034 = vadd.f32 %v3030, %v3032
        %3035 = vst [vmem:[#allocation4 + $0x30] sm:$0xff] %v3033
        %3036 = vst [vmem:[#allocation4 + $0x38] sm:$0xff] %v3034
        %v3037 = vld [vmem:[#allocation2 + $0x40] sm:$0xff]
        %v3038 = vld [vmem:[#allocation2 + $0x48] sm:$0xff]
        %v3039 = vmul.f32 %v3037, %v3033
        %v3040 = vmul.f32 %v3038, %v3034
        %v3041 = vld [vmem:[#allocation3 + $0x40] sm:$0xff]
        %v3042 = vld [vmem:[#allocation3 + $0x48] sm:$0xff]
        %v3043 = vadd.f32 %v3039, %v3041
        %v3044 = vadd.f32 %v3040, %v3042
        %3045 = vst [vmem:[#allocation4 + $0x40] sm:$0xff] %v3043
        %3046 = vst [vmem:[#allocation4 + $0x48] sm:$0xff] %v3044
        %v3047 = vld [vmem:[#allocation2 + $0x50] sm:$0xff]
        %v3048 = vld [vmem:[#allocation2 + $0x58] sm:$0xff]
        %v3049 = vmul.f32 %v3047, %v3043
        %v3050 = vmul.f32 %v3048, %v3044
        %v3051 = vld [vmem:[#allocation3 + $0x50] sm:$0xff]
        %v3052 = vld [vmem:[#allocation3 + $0x58] sm:$0xff]
        %v3053 = vadd.f32 %v3049, %v3051
        %v3054 = vadd.f32 %v3050, %v3052
        %3055 = vst [vmem:[#allocation4 + $0x50] sm:$0xff] %v3053
        %3056 = vst [vmem:[#allocation4 + $0x58] sm:$0xff] %v3054
        %v3057 = vld [vmem:[#allocation2 + $0x60] sm:$0xff]
        %v3058 = vld [vmem:[#allocation2 + $0x68] sm:$0xff]
        %v3059 = vmul.f32 %v3057, %v3053
        %v3060 = vmul.f32 %v3058, %v3054
        %v3061 = vld [vmem:[#allocation3 + $0x60] sm:$0xff]
        %v3062 = vld [vmem:[#allocation3 + $0x68] sm:$0xff]
        %v3063 = vadd.f32 %v3059, %v3061
        %v3064 = vadd.f32 %v3060, %v3062
        %3065 = vst [vmem:[#allocation4 + $0x60] sm:$0xff] %v3063
        %3066 = vst [vmem:[#allocation4 + $0x68] sm:$0xff] %v3064
        %v3067 = vld [vmem:[#allocation2 + $0x70] sm:$0xff]
        %v3068 = vld [vmem:[#allocation2 + $0x78] sm:$0xff]
        %v3069 = vmul.f32 %v3067, %v3063
        %v3070 = vmul.f32 %v3068, %v3064
        %v3071 = vld [vmem:[#allocation3 + $0x70] sm:$0xff]
        %v3072 = vld [vmem:[#allocation3 + $0x78] sm:$0xff]
        %v3073 = vadd.f32 %v3069, %v3071
        %v3074 = vadd.f32 %v3070, %v3072
        %3075 = vst [vmem:[#allocation4 + $0x70] sm:$0xff] %v3073
        %3076 = vst [vmem:[#allocation4 + $0x78] sm:$0xff] %v3074
        %v3077 = vld [vmem:[#allocation2 + $0x80] sm:$0xff]
        %v3078 = vld [vmem:[#allocation2 + $0x88] sm:$0xff]
        %v3079 = vmul.f32 %v3077, %v3073
        %v3080 = vmul.f32 %v3078, %v3074
        %v3081 = vld [vmem:[#allocation3 + $0x80] sm:$0xff]
        %v3082 = vld [vmem:[#allocation3 + $0x88] sm:$0xff]
        %v3083 = vadd.f32 %v3079, %v3081
        %v3084 = vadd.f32 %v3080, %v3082
        %3085 = vst [vmem:[#allocation4 + $0x80] sm:$0xff] %v3083
        %3086 = vst [vmem:[#allocation4 + $0x88] sm:$0xff] %v3084
        %v3087 = vld [vmem:[#allocation2 + $0x90] sm:$0xff]
        %v3088 = vld [vmem:[#allocation2 + $0x98] sm:$0xff]
        %v3089 = vmul.f32 %v3087, %v3083
        %v3090 = vmul.f32 %v3088, %v3084
        %v3091 = vld [vmem:[#allocation3 + $0x90] sm:$0xff]
        %v3092 = vld [vmem:[#allocation3 + $0x98] sm:$0xff]
        %v3093 = vadd.f32 %v3089, %v3091
        %v3094 = vadd.f32 %v3090, %v3092
        %3095 = vst [vmem:[#allocation4 + $0x90] sm:$0xff] %v3093
        %3096 = vst [vmem:[#allocation4 + $0x98] sm:$0xff] %v3094
        %v3097 = vld [vmem:[#allocation2 + $0xa0] sm:$0xff]
        %v3098 = vld [vmem:[#allocation2 + $0xa8] sm:$0xff]
        %v3099 = vmul.f32 %v3097, %v3093
        %v3100 = vmul.f32 %v3098, %v3094
        %v3101 = vld [vmem:[#allocation3 + $0xa0] sm:$0xff]
        %v3102 = vld [vmem:[#allocation3 + $0xa8] sm:$0xff]
        %v3103 = vadd.f32 %v3099, %v3101
        %v3104 = vadd.f32 %v3100, %v3102
        %3105 = vst [vmem:[#allocation4 + $0xa0] sm:$0xff] %v3103
        %3106 = vst [vmem:[#allocation4 + $0xa8] sm:$0xff] %v3104
        %v3107 = vld [vmem:[#allocation2 + $0xb0] sm:$0xff]
        %v3108 = vld [vmem:[#allocation2 + $0xb8] sm:$0xff]
        %v3109 = vmul.f32 %v3107, %v3103
        %v3110 = vmul.f32 %v3108, %v3104
        %v3111 = vld [vmem:[#allocation3 + $0xb0] sm:$0xff]
        %v3112 = vld [vmem:[#allocation3 + $0xb8] sm:$0xff]
        %v3113 = vadd.f32 %v3109, %v3111
        %v3114 = vadd.f32 %v3110, %v3112
        %3115 = vst [vmem:[#allocation4 + $0xb0] sm:$0xff] %v3113
        %3116 = vst [vmem:[#allocation4 + $0xb8] sm:$0xff] %v3114
        %v3117 = vld [vmem:[#allocation2 + $0xc0] sm:$0xff]
        %v3118 = vld [vmem:[#allocation2 + $0xc8] sm:$0xff]
        %v3119 = vmul.f32 %v3117, %v3113
        %v3120 = vmul.f32 %v3118, %v3114
        %v3121 = vld [vmem:[#allocation3 + $0xc0] sm:$0xff]
        %v3122 = vld [vmem:[#allocation3 + $0xc8] sm:$0xff]
        %v3123 = vadd.f32 %v3119, %v3121
        %v3124 = vadd.f32 %v3120, %v3122
        %3125 = vst [vmem:[#allocation4 + $0xc0] sm:$0xff] %v3123
        %3126 = vst [vmem:[#allocation4 + $0xc8] sm:$0xff] %v3124
        %v3127 = vld [vmem:[#allocation2 + $0xd0] sm:$0xff]
        %v3128 = vld [vmem:[#allocation2 + $0xd8] sm:$0xff]
        %v3129 = vmul.f32 %v3127, %v3123
        %v3130 = vmul.f32 %v3128, %v3124
        %v3131 = vld [vmem:[#allocation3 + $0xd0] sm:$0xff]
        %v3132 = vld [vmem:[#allocation3 + $0xd8] sm:$0xff]
        %v3133 = vadd.f32 %v3129, %v3131
        %v3134 = vadd.f32 %v3130, %v3132
        %3135 = vst [vmem:[#allocation4 + $0xd0] sm:$0xff] %v3133
        %3136 = vst [vmem:[#allocation4 + $0xd8] sm:$0xff] %v3134
        %v3137 = vld [vmem:[#allocation2 + $0xe0] sm:$0xff]
        %v3138 = vld [vmem:[#allocation2 + $0xe8] sm:$0xff]
        %v3139 = vmul.f32 %v3137, %v3133
        %v3140 = vmul.f32 %v3138, %v3134
        %v3141 = vld [vmem:[#allocation3 + $0xe0] sm:$0xff]
        %v3142 = vld [vmem:[#allocation3 + $0xe8] sm:$0xff]
        %v3143 = vadd.f32 %v3139, %v3141
        %v3144 = vadd.f32 %v3140, %v3142
        %3145 = vst [vmem:[#allocation4 + $0xe0] sm:$0xff] %v3143
        %3146 = vst [vmem:[#allocation4 + $0xe8] sm:$0xff] %v3144
        %v3147 = vld [vmem:[#allocation2 + $0xf0] sm:$0xff]
        %v3148 = vld [vmem:[#allocation2 + $0xf8] sm:$0xff]
        %v3149 = vmul.f32 %v3147, %v3143
        %v3150 = vmul.f32 %v3148, %v3144
        %v3151 = vld [vmem:[#allocation3 + $0xf0] sm:$0xff]
        %v3152 = vld [vmem:[#allocation3 + $0xf8] sm:$0xff]
        %v3153 = vadd.f32 %v3149, %v3151
        %v3154 = vadd.f32 %v3150, %v3152
        %3155 = vst [vmem:[#allocation4 + $0xf0] sm:$0xff] %v3153
        %3156 = vst [vmem:[#allocation4 + $0xf8] sm:$0xff] %v3154
        %3159 = vrot.lane.b32.xlu0 %v2537, 16
        %v3160 = vpop.permute.xlu0 %3159
        %3161 = vrot.lane.b32.xlu0 %v2542, 16
        %v3162 = vpop.permute.xlu0 %3161
        %3165 = vrot.lane.b32.xlu0 %v2537, 32
        %v3166 = vpop.permute.xlu0 %3165
        %3167 = vrot.lane.b32.xlu0 %v2542, 32
        %v3168 = vpop.permute.xlu0 %3167
        %3171 = vrot.lane.b32.xlu0 %v2537, 48
        %v3172 = vpop.permute.xlu0 %3171
        %3173 = vrot.lane.b32.xlu0 %v2542, 48
        %v3174 = vpop.permute.xlu0 %3173
        %3177 = vrot.lane.b32.xlu0 %v2537, 64
        %v3178 = vpop.permute.xlu0 %3177
        %3179 = vrot.lane.b32.xlu0 %v2542, 64
        %v3180 = vpop.permute.xlu0 %3179
        %3183 = vrot.lane.b32.xlu0 %v2537, 80
        %v3184 = vpop.permute.xlu0 %3183
        %3185 = vrot.lane.b32.xlu0 %v2542, 80
        %v3186 = vpop.permute.xlu0 %3185
        %3189 = vrot.lane.b32.xlu0 %v2537, 96
        %v3190 = vpop.permute.xlu0 %3189
        %3191 = vrot.lane.b32.xlu0 %v2542, 96
        %v3192 = vpop.permute.xlu0 %3191
        %3195 = vrot.lane.b32.xlu0 %v2537, 112
        %v3196 = vpop.permute.xlu0 %3195
        %3197 = vrot.lane.b32.xlu0 %v2542, 112
        %v3198 = vpop.permute.xlu0 %3197
        %v3201 = vsel %vm900, %v2537, %v3160
        %v3202 = vsel %vm900, %v2542, %v3162
        %vm3203 = vcmask 261120
        %v3204 = vsel %vm3203, %v3201, %v3166
        %v3205 = vsel %vm3203, %v3202, %v3168
        %vm3206 = vcmask 392192
        %v3207 = vsel %vm3206, %v3204, %v3172
        %v3208 = vsel %vm3206, %v3205, %v3174
        %v3209 = vsel %vm809, %v3207, %v3178
        %v3210 = vsel %vm809, %v3208, %v3180
        %vm3211 = vcmask 654336
        %v3212 = vsel %vm3211, %v3209, %v3184
        %v3213 = vsel %vm3211, %v3210, %v3186
        %vm3214 = vcmask 785408
        %v3215 = vsel %vm3214, %v3212, %v3190
        %v3216 = vsel %vm3214, %v3213, %v3192
        %vm3217 = vcmask 916480
        %v3218 = vsel %vm3217, %v3215, %v3196
        %v3219 = vsel %vm3217, %v3216, %v3198
        %v3220 = vsel %vm775, %v3218, 0.0
        %v3221 = vsel %vm776, %v3218, 0.0
        %v3222 = vsel %vm777, %v3219, 0.0
        %v3223 = vsel %vm778, %v3219, 0.0
        %v3224 = vld [vmem:[#allocation4] sm:$0xff]
        %v3225 = vld [vmem:[#allocation4 + $0x8] sm:$0xff]
        %v3226 = vld [vmem:[#allocation4 + $0x10] sm:$0xff]
        %v3227 = vld [vmem:[#allocation4 + $0x18] sm:$0xff]
        %v3228 = vld [vmem:[#allocation4 + $0x20] sm:$0xff]
        %v3229 = vld [vmem:[#allocation4 + $0x28] sm:$0xff]
        %v3230 = vld [vmem:[#allocation4 + $0x30] sm:$0xff]
        %v3231 = vld [vmem:[#allocation4 + $0x38] sm:$0xff]
        %v3232 = vld [vmem:[#allocation4 + $0x40] sm:$0xff]
        %v3233 = vld [vmem:[#allocation4 + $0x48] sm:$0xff]
        %v3234 = vld [vmem:[#allocation4 + $0x50] sm:$0xff]
        %v3235 = vld [vmem:[#allocation4 + $0x58] sm:$0xff]
        %v3236 = vld [vmem:[#allocation4 + $0x60] sm:$0xff]
        %v3237 = vld [vmem:[#allocation4 + $0x68] sm:$0xff]
        %v3238 = vld [vmem:[#allocation4 + $0x70] sm:$0xff]
        %v3239 = vld [vmem:[#allocation4 + $0x78] sm:$0xff]
        %v3240 = vld [vmem:[#allocation4 + $0x80] sm:$0xff]
        %v3241 = vld [vmem:[#allocation4 + $0x88] sm:$0xff]
        %v3242 = vld [vmem:[#allocation4 + $0x90] sm:$0xff]
        %v3243 = vld [vmem:[#allocation4 + $0x98] sm:$0xff]
        %v3244 = vld [vmem:[#allocation4 + $0xa0] sm:$0xff]
        %v3245 = vld [vmem:[#allocation4 + $0xa8] sm:$0xff]
        %v3246 = vld [vmem:[#allocation4 + $0xb0] sm:$0xff]
        %v3247 = vld [vmem:[#allocation4 + $0xb8] sm:$0xff]
        %v3248 = vld [vmem:[#allocation4 + $0xc0] sm:$0xff]
        %v3249 = vld [vmem:[#allocation4 + $0xc8] sm:$0xff]
        %v3250 = vld [vmem:[#allocation4 + $0xd0] sm:$0xff]
        %v3251 = vld [vmem:[#allocation4 + $0xd8] sm:$0xff]
        %v3252 = vld [vmem:[#allocation4 + $0xe0] sm:$0xff]
        %v3253 = vld [vmem:[#allocation4 + $0xe8] sm:$0xff]
        %v3254 = vld [vmem:[#allocation4 + $0xf0] sm:$0xff]
        %v3255 = vld [vmem:[#allocation4 + $0xf8] sm:$0xff]
        %v3256 = vld [vmem:[#allocation22] sm:$0x1]
        %v3258 = vlaneseq
        %v3259 = vshrl.u32 %v3258, 7
        %v3260 = vsub.s32 0, %v3259
        %v3261 = vrot.slane %v3256, %v3260
        %v3263 = vmul.f32 %v3261, %v2259
        %v3264 = vmul.f32 %v3261, %v2260
        %3265 = vmatprep.subr.mxu0 0.0
        %3266 = vmatpush1.msra.mxu0 %v3239
        %3267 = vmatprep.subr.mxu0 0.0
        %3268 = vmatpush1.msra.mxu0 %v3238
        %3269 = vmatprep.subr.mxu0 0.0
        %3270 = vmatpush1.msra.mxu0 %v3237
        %3271 = vmatprep.subr.mxu0 0.0
        %3272 = vmatpush1.msra.mxu0 %v3236
        %3273 = vmatprep.subr.mxu0 0.0
        %3274 = vmatpush1.msra.mxu0 %v3235
        %3275 = vmatprep.subr.mxu0 0.0
        %3276 = vmatpush1.msra.mxu0 %v3234
        %3277 = vmatprep.subr.mxu0 0.0
        %3278 = vmatpush1.msra.mxu0 %v3233
        %3279 = vmatprep.subr.mxu0 0.0
        %3280 = vmatpush1.msra.mxu0 %v3232
        %3281 = vmatprep.subr.mxu0 0.0
        %3282 = vmatpush1.msra.mxu0 %v3231
        %3283 = vmatprep.subr.mxu0 0.0
        %3284 = vmatpush1.msra.mxu0 %v3230
        %3285 = vmatprep.subr.mxu0 0.0
        %3286 = vmatpush1.msra.mxu0 %v3229
        %3287 = vmatprep.subr.mxu0 0.0
        %3288 = vmatpush1.msra.mxu0 %v3228
        %3289 = vmatprep.subr.mxu0 0.0
        %3290 = vmatpush1.msra.mxu0 %v3227
        %3291 = vmatprep.subr.mxu0 0.0
        %3292 = vmatpush1.msra.mxu0 %v3226
        %3293 = vmatprep.subr.mxu0 0.0
        %3294 = vmatpush1.msra.mxu0 %v3225
        %3295 = vmatprep.subr.mxu0 0.0
        %3296 = vmatpush1.msra.mxu0 %v3224
        %3297 = vmatprep.subr.mxu0 0.0
        %3298 = vmatpush2.msra.mxu0 %v3255
        %3299 = vmatprep.subr.mxu0 0.0
        %3300 = vmatpush2.msra.mxu0 %v3254
        %3301 = vmatprep.subr.mxu0 0.0
        %3302 = vmatpush2.msra.mxu0 %v3253
        %3303 = vmatprep.subr.mxu0 0.0
        %3304 = vmatpush2.msra.mxu0 %v3252
        %3305 = vmatprep.subr.mxu0 0.0
        %3306 = vmatpush2.msra.mxu0 %v3251
        %3307 = vmatprep.subr.mxu0 0.0
        %3308 = vmatpush2.msra.mxu0 %v3250
        %3309 = vmatprep.subr.mxu0 0.0
        %3310 = vmatpush2.msra.mxu0 %v3249
        %3311 = vmatprep.subr.mxu0 0.0
        %3312 = vmatpush2.msra.mxu0 %v3248
        %3313 = vmatprep.subr.mxu0 0.0
        %3314 = vmatpush2.msra.mxu0 %v3247
        %3315 = vmatprep.subr.mxu0 0.0
        %3316 = vmatpush2.msra.mxu0 %v3246
        %3317 = vmatprep.subr.mxu0 0.0
        %3318 = vmatpush2.msra.mxu0 %v3245
        %3319 = vmatprep.subr.mxu0 0.0
        %3320 = vmatpush2.msra.mxu0 %v3244
        %3321 = vmatprep.subr.mxu0 0.0
        %3322 = vmatpush2.msra.mxu0 %v3243
        %3323 = vmatprep.subr.mxu0 0.0
        %3324 = vmatpush2.msra.mxu0 %v3242
        %3325 = vmatprep.subr.mxu0 0.0
        %3326 = vmatpush2.msra.mxu0 %v3241
        %3327 = vmatprep.subr.mxu0 0.0
        %3328 = vmatpush2.msra.mxu0 %v3240
        %3329 = vmatprep.mubr.f32.mxu0 %v3221
        %3330 = vmatmul.mubr.f32.gmra.mxu0 %v3220
        %v3331 = vpop.f32.mrf.mxu0
        %v3332 = vadd.f32 %v3263, %v3331
        %v3333 = vpop.f32.mrf.mxu0
        %3334 = vmatprep.mubr.f32.mxu0 %v3223
        %3335 = vmatmul.mubr.f32.gmra.mxu0 %v3222
        %v3336 = vpop.f32.mrf.mxu0
        %v3337 = vadd.f32 %v3264, %v3336
        %v3338 = vpop.f32.mrf.mxu0
        %3339 = vdwg.mxu0
        %v3340 = vmul.f32 %v2181, 0.5
        %v3341 = vmul.f32 %v2187, 0.5
        %v3342 = vtanh.pop %v3340
        %v3343 = vtanh.pop %v3341
        %v3344 = vmul.f32 %v3342, 0.5
        %v3345 = vmul.f32 %v3343, 0.5
        %v3346 = vadd.f32 %v3344, 0.5
        %v3347 = vadd.f32 %v3345, 0.5
        %v3348 = vmul.f32 %v2181, %v3346
        %v3349 = vmul.f32 %v2187, %v3347
        %v3350 = vmul.f32 %v3332, %v3348
        %v3351 = vmul.f32 %v3337, %v3349
        %v3352 = vld [vmem:[%s18] sm:$0xff]
        %v3353 = vld [vmem:[%s18 + $0x8] sm:$0xff]
        %v3354 = vld [vmem:[%s18 + $0x10] sm:$0xff]
        %v3355 = vld [vmem:[%s18 + $0x18] sm:$0xff]
        %v3356 = vld [vmem:[%s18 + $0x20] sm:$0xff]
        %v3357 = vld [vmem:[%s18 + $0x28] sm:$0xff]
        %v3358 = vld [vmem:[%s18 + $0x30] sm:$0xff]
        %v3359 = vld [vmem:[%s18 + $0x38] sm:$0xff]
        %v3360 = vld [vmem:[%s18 + $0x40] sm:$0xff]
        %v3361 = vld [vmem:[%s18 + $0x48] sm:$0xff]
        %v3362 = vld [vmem:[%s18 + $0x50] sm:$0xff]
        %v3363 = vld [vmem:[%s18 + $0x58] sm:$0xff]
        %v3364 = vld [vmem:[%s18 + $0x60] sm:$0xff]
        %v3365 = vld [vmem:[%s18 + $0x68] sm:$0xff]
        %v3366 = vld [vmem:[%s18 + $0x70] sm:$0xff]
        %v3367 = vld [vmem:[%s18 + $0x78] sm:$0xff]
        %3368 = vmatprep.subr.mxu0 0.0
        %3369 = vmatpush1.msra.mxu0 %v3367
        %3370 = vmatprep.subr.mxu0 0.0
        %3371 = vmatpush1.msra.mxu0 %v3366
        %3372 = vmatprep.subr.mxu0 0.0
        %3373 = vmatpush1.msra.mxu0 %v3365
        %3374 = vmatprep.subr.mxu0 0.0
        %3375 = vmatpush1.msra.mxu0 %v3364
        %3376 = vmatprep.subr.mxu0 0.0
        %3377 = vmatpush1.msra.mxu0 %v3363
        %3378 = vmatprep.subr.mxu0 0.0
        %3379 = vmatpush1.msra.mxu0 %v3362
        %3380 = vmatprep.subr.mxu0 0.0
        %3381 = vmatpush1.msra.mxu0 %v3361
        %3382 = vmatprep.subr.mxu0 0.0
        %3383 = vmatpush1.msra.mxu0 %v3360
        %3384 = vmatprep.subr.mxu0 0.0
        %3385 = vmatpush1.msra.mxu0 %v3359
        %3386 = vmatprep.subr.mxu0 0.0
        %3387 = vmatpush1.msra.mxu0 %v3358
        %3388 = vmatprep.subr.mxu0 0.0
        %3389 = vmatpush1.msra.mxu0 %v3357
        %3390 = vmatprep.subr.mxu0 0.0
        %3391 = vmatpush1.msra.mxu0 %v3356
        %3392 = vmatprep.subr.mxu0 0.0
        %3393 = vmatpush1.msra.mxu0 %v3355
        %3394 = vmatprep.subr.mxu0 0.0
        %3395 = vmatpush1.msra.mxu0 %v3354
        %3396 = vmatprep.subr.mxu0 0.0
        %3397 = vmatpush1.msra.mxu0 %v3353
        %3398 = vmatprep.subr.mxu0 0.0
        %3399 = vmatpush1.msra.mxu0 %v3352
        %3400 = vmatprep.subr.mxu0 0.0
        %3401 = vmatpush2.msra.mxu0 0.0
        %3402 = vmatprep.subr.mxu0 0.0
        %3403 = vmatpush2.msra.mxu0 0.0
        %3404 = vmatprep.subr.mxu0 0.0
        %3405 = vmatpush2.msra.mxu0 0.0
        %3406 = vmatprep.subr.mxu0 0.0
        %3407 = vmatpush2.msra.mxu0 0.0
        %3408 = vmatprep.subr.mxu0 0.0
        %3409 = vmatpush2.msra.mxu0 0.0
        %3410 = vmatprep.subr.mxu0 0.0
        %3411 = vmatpush2.msra.mxu0 0.0
        %3412 = vmatprep.subr.mxu0 0.0
        %3413 = vmatpush2.msra.mxu0 0.0
        %3414 = vmatprep.subr.mxu0 0.0
        %3415 = vmatpush2.msra.mxu0 0.0
        %3416 = vmatprep.subr.mxu0 0.0
        %3417 = vmatpush2.msra.mxu0 0.0
        %3418 = vmatprep.subr.mxu0 0.0
        %3419 = vmatpush2.msra.mxu0 0.0
        %3420 = vmatprep.subr.mxu0 0.0
        %3421 = vmatpush2.msra.mxu0 0.0
        %3422 = vmatprep.subr.mxu0 0.0
        %3423 = vmatpush2.msra.mxu0 0.0
        %3424 = vmatprep.subr.mxu0 0.0
        %3425 = vmatpush2.msra.mxu0 0.0
        %3426 = vmatprep.subr.mxu0 0.0
        %3427 = vmatpush2.msra.mxu0 0.0
        %3428 = vmatprep.subr.mxu0 0.0
        %3429 = vmatpush2.msra.mxu0 0.0
        %3430 = vmatprep.subr.mxu0 0.0
        %3431 = vmatpush2.msra.mxu0 0.0
        %3432 = vmatprep.mubr.f32.mxu0 0.0
        %3433 = vmatmul.mubr.f32.gmra.mxu0 %v3350
        %v3434 = vpop.f32.mrf.mxu0
        %v3435 = vadd.f32 0.0, %v3434
        %v3436 = vpop.f32.mrf.mxu0
        %3437 = vmatprep.mubr.f32.mxu0 0.0
        %3438 = vmatmul.mubr.f32.gmra.mxu0 %v3351
        %v3439 = vpop.f32.mrf.mxu0
        %v3440 = vadd.f32 0.0, %v3439
        %v3441 = vpop.f32.mrf.mxu0
        %3442 = vdwg.mxu0
        %v3443 = vadd.f32 %v2088, %v3435
        %v3444 = vadd.f32 %v2089, %v3440
        %v3445 = vld [vmem:[#allocation13] sm:$0x1]
        %v3446 = vld [vmem:[#allocation14] sm:$0x1]
        %v3447 = vsel %vm809, %v3443, 0.0
        %3448 = vadd.xlane.f32.xlu0 %v3447
        %v3449 = vpop.xlane.xlu0 %3448
        %v3450 = vsel %vm809, %v3444, 0.0
        %3451 = vadd.xlane.f32.xlu0 %v3450
        %v3452 = vpop.xlane.xlu0 %3451
        %v3453 = vmul.f32 %v3449, %v2053
        %v3454 = vmul.f32 %v3452, %v2053
        %v3455 = vsub.f32 %v3443, %v3453
        %v3456 = vsub.f32 %v3444, %v3454
        %v3457 = vmul.f32 %v3455, %v3455
        %v3458 = vmul.f32 %v3456, %v3456
        %v3459 = vsel %vm809, %v3457, 0.0
        %3460 = vadd.xlane.f32.xlu0 %v3459
        %v3461 = vpop.xlane.xlu0 %3460
        %v3462 = vsel %vm809, %v3458, 0.0
        %3463 = vadd.xlane.f32.xlu0 %v3462
        %v3464 = vpop.xlane.xlu0 %3463
        %v3465 = vmul.f32 %v3461, %v2053
        %v3466 = vmul.f32 %v3464, %v2053
        %v3467 = vadd.f32 %v3465, 1e-05
        %v3468 = vadd.f32 %v3466, 1e-05
        %v3469 = vrsqrt.pop %v3467
        %v3470 = vrsqrt.pop %v3468
        %v3471 = vmul.f32 %v3455, %v3469
        %v3472 = vmul.f32 %v3456, %v3470
        %v3474 = vlaneseq
        %v3475 = vshrl.u32 %v3474, 7
        %v3476 = vsub.s32 0, %v3475
        %v3477 = vrot.slane %v3445, %v3476
        %v3479 = vmul.f32 %v3471, %v3477
        %v3480 = vmul.f32 %v3472, %v3477
        %v3482 = vlaneseq
        %v3483 = vshrl.u32 %v3482, 7
        %v3484 = vsub.s32 0, %v3483
        %v3485 = vrot.slane %v3446, %v3484
        %v3487 = vadd.f32 %v3479, %v3485
        %v3488 = vadd.f32 %v3480, %v3485
        %3489 = vst.msk [vmem:[%s751] sm:$0xff] %vm809, %v3487
        %3490 = vst.msk [vmem:[%s751 + $0x8] sm:$0xff] %vm809, %v3488
        %s3491 = sand.u32 %s453, 1
        %s3492 = scalar_lea.sflag [#allocation7], %s3491
        %s3493 = sand.u32 %s453, 1
        %s3494 = smul.addr %s3493, 16
        %s3495 = scalar_lea.vmem [#allocation23], %s3494
        // Predicated region
        $region141: #{am_layer_forward.1} parent=95 // pred_check
          %p3496 = pneg %p463
        $region142: #{am_layer_forward.1} parent=95 // pred_check_branch
          %3498 = sbr.rel (%p3496) target = $region144
        $region143: #{am_layer_forward.1} parent=95 // pred_region
          %s3500 = ssub.s32 256, 256
          %3501 = vsyncadd %s3492, %s3500
          %s3502 = smul.addr %s41, 2
          %s3503 = smul.addr %s3502, 128
          %s3504 = scalar_lea.hbm %s19, %s3503
          %s3505 = sshll.u32 %s3495, 4
          %s3506 = int_to_ptr.vmem [resolvable:$true] %s3505
          %3511 = dma.vmem_to_hbm [thread:$0]  %s3506, 256, %s3504, %s3492, 128, 128, 8
        $region144: #{am_layer_forward.1} parent=95 // pred_fallthru
          _
      $region96: #{am_layer_forward.1} parent=5 // pred_fallthru
        _
      %p3512 = scmp.le.s32.totalorder 2, %s36
      // Predicated region
      $region145: #{am_layer_forward.1} parent=5 // pred_check
        %p3513 = pneg %p3512
      $region146: #{am_layer_forward.1} parent=5 // pred_check_branch
        %3515 = sbr.rel (%p3513) target = $region148
      $region147: #{am_layer_forward.1} parent=5 // pred_region
        %s3516 = ssub.s32 %s36, 2
        // Predicated region
        $region149: #{am_layer_forward.1} parent=147 // pred_check
          %p3517 = pneg %p469
        $region150: #{am_layer_forward.1} parent=147 // pred_check_branch
          %3519 = sbr.rel (%p3517) target = $region152
        $region151: #{am_layer_forward.1} parent=147 // pred_region
          %s3520 = sand.u32 %s454, 1
          %s3521 = scalar_lea.sflag [#allocation7], %s3520
          %s3522 = sand.u32 %s454, 1
          %s3523 = smul.addr %s3522, 16
          %s3524 = scalar_lea.vmem [#allocation23], %s3523
          %3525 = dma.done %s3521, 256
        $region152: #{am_layer_forward.1} parent=147 // pred_fallthru
          _
      $region148: #{am_layer_forward.1} parent=5 // pred_fallthru
        _
    $region6: #{am_layer_forward.1} parent=1 // loop_footer
      %s40 = sadd.s32 1, %s36
    $region7: #{am_layer_forward.1} parent=1 // loop_footer_branch
      %35 = sbr.rel target = $region3
    $region8: #{am_layer_forward.1} parent=1 // loop_exit
      _
    %3526 = vsyncpa [#allocation6], 1
    %s3527 = scalar_lea.sflag [#allocation6], 1
    %3528 = vsyncpa %s3527, 1
    %3529 = vsyncpa [#allocation9], 1
    %3530 = vsyncpa [#allocation12], 1
    %3531 = vsyncpa [#allocation15], 1
    %3532 = vsyncpa [#allocation18], 1
    %3533 = vsyncpa [#allocation21], 1
    %3534 = vsyncpa [#allocation7], 1
    %s3535 = scalar_lea.sflag [#allocation7], 1
    %3536 = vsyncpa %s3535, 1

</llo_original>
